<compile_context>
chip_gen: v6e
topology: v6e:2x2x1
jax: 0.10.0
libtpu: 0.0.40
codegen_flags: <defaults>
</compile_context>

<pallas_src>
import functools

import jax
import jax.numpy as jnp
from jax.experimental import pallas as pl
from jax.experimental.pallas import tpu as pltpu

_LG = 128  # lane-group width used by the fused pooling loop


def rise_kernel(maskT_ref, mask_ref, d_ref, w2t_ref, b2eff_ref, sal_ref,
                featT_ref, *, inv_scale):
    """One (shard, mask-block) grid step.

    maskT_ref : [N, TM]  f32  masks^T block (points on sublanes, masks on lanes)
    mask_ref  : [TM, N]  f32  same mask block, row-major (saliency matmul rhs)
    d_ref     : [N, H]   f32  relu(x @ W1 + b1) - relu(b1)
    w2t_ref   : [CL, H]  f32  W2^T
    b2eff_ref : [CL, 1]  f32  relu(b1) @ W2 + b2  (effective per-class bias)
    sal_ref   : [CL, N]  f32  per-shard saliency accumulator (VMEM resident)
    featT_ref : [H, TM]  f32  scratch: pooled features, transposed
    """
    j = pl.program_id(1)

    @pl.when(j == 0)
    def _():
        sal_ref[...] = jnp.zeros(sal_ref.shape, sal_ref.dtype)

    n_pts, tm = maskT_ref.shape
    h_dim = d_ref.shape[1]

    # Fused mask-select + max-pool over points (binary masks):
    #     feat^T[h, m] = max_n  mask[m, n] * d[n, h]
    # Only [N, 128] tiles are live per (h, lane-group), so nothing spills; the
    # reduction over points runs along sublanes (VPU maxes + 1 sublane reduce).
    for h in range(h_dim):
        dcol = jnp.broadcast_to(d_ref[:, h:h + 1], (n_pts, _LG))   # [N, 128]
        for c in range(tm // _LG):
            sl = slice(c * _LG, (c + 1) * _LG)
            featT_ref[h:h + 1, sl] = jnp.max(maskT_ref[:, sl] * dcol,
                                             axis=0, keepdims=True)

    # Second linear, already transposed: predsT = W2^T @ feat^T + b2eff  [CL, TM]
    predsT = jnp.dot(w2t_ref[...], featT_ref[...],
                     preferred_element_type=jnp.float32) + b2eff_ref[...]

    # Saliency accumulation in natural MXU orientation: sal += predsT @ masks.
    sal_ref[...] += jnp.dot(predsT, mask_ref[...],
                            preferred_element_type=jnp.float32)     # [CL, N]

    @pl.when(j == pl.num_programs(1) - 1)
    def _():
        sal_ref[...] *= inv_scale


def _round_up(a, b):
    return (a + b - 1) // b * b


def rise_forward(x, masks, w1, b1, w2, b2, *, p1, tm=512, num_shards=1):
    """sal[c, n] = sum_m model(masks[m] * x)[c] * masks[m, n] / M / p1."""
    M, N = masks.shape
    H = w1.shape[1]
    CL = w2.shape[1]
    assert N % 8 == 0, "point count must be a multiple of 8 (sublane tiling)"

    # The fused kernel rewrites relu(mask*xw + b1) as mask*d + relu(b1), which is
    # only valid for binary masks. Check eagerly when the masks are concrete.
    try:
        if not bool(jnp.all((masks == 0) | (masks == 1))):
            raise ValueError("rise_forward fast path requires binary {0,1} masks")
    except jax.errors.ConcretizationTypeError:
        pass  # traced under jit: caller guarantees binariness

    # Tile sizing: lane-group multiples; pad M with all-zero masks (exact: zero
    # mask rows contribute nothing to preds^T @ masks; scaling uses the true M).
    tm = min(int(tm), _round_up(pl.cdiv(M, num_shards), _LG))
    tm = max(_LG, _round_up(tm, _LG))
    per_shard = _round_up(pl.cdiv(M, num_shards), tm)
    steps = per_shard // tm
    m_pad = per_shard * num_shards

    masks_f = masks.astype(jnp.float32)
    if m_pad > M:
        masks_f = jnp.concatenate(
            [masks_f, jnp.zeros((m_pad - M, N), jnp.float32)], axis=0)
    masksT_f = masks_f.T                                            # [N, m_pad]

    # Mask-independent layer-1 work hoisted out of the kernel; relu(b1) folded
    # into an effective bias of the second linear (tiny XLA-side glue).
    hi = jax.lax.Precision.HIGHEST
    w1f = w1.astype(jnp.float32)
    b1f = b1.astype(jnp.float32).reshape(1, H)
    w2f = w2.astype(jnp.float32)
    b2f = b2.astype(jnp.float32).reshape(1, CL)
    y = jnp.maximum(jnp.dot(x.astype(jnp.float32), w1f, precision=hi) + b1f, 0.0)
    rb1 = jnp.maximum(b1f, 0.0)                                     # [1, H]
    d = y - rb1                                                     # [N, H]
    w2t = w2f.T                                                     # [CL, H]
    b2eff = (jnp.dot(rb1, w2f, precision=hi) + b2f).T               # [CL, 1]

    inv_scale = 1.0 / (float(M) * float(p1))
    kernel = functools.partial(rise_kernel, inv_scale=inv_scale)

    # Per-step VMEM ~ (2*tm*N + N*H + H*tm)*4 B plus double buffers (~2 MiB at
    # tm=512): comfortably under v5e/v6e (128 MiB) and v7x (64 MiB) limits.
    partials = pl.pallas_call(
        kernel,
        out_shape=jax.ShapeDtypeStruct((num_shards, CL, N), jnp.float32),
        grid_spec=pltpu.PrefetchScalarGridSpec(
            num_scalar_prefetch=0,
            grid=(num_shards, steps),
            in_specs=[
                pl.BlockSpec((N, tm), lambda c, j: (0, c * steps + j)),   # masks^T
                pl.BlockSpec((tm, N), lambda c, j: (c * steps + j, 0)),   # masks
                pl.BlockSpec((N, H), lambda c, j: (0, 0)),                # d
                pl.BlockSpec((CL, H), lambda c, j: (0, 0)),               # W2^T
                pl.BlockSpec((CL, 1), lambda c, j: (0, 0)),               # b2eff
            ],
            out_specs=pl.BlockSpec((None, CL, N), lambda c, j: (c, 0, 0)),
            scratch_shapes=[pltpu.VMEM((H, tm), jnp.float32)],
        ),
        compiler_params=pltpu.CompilerParams(
            dimension_semantics=("parallel", "arbitrary")),
    )(masksT_f, masks_f, d, w2t, b2eff)

    return jnp.sum(partials, axis=0)                                # [CL, N]


def generate_masks(key, xyz, M, s, p1):
    """Simplified, deterministic JAX version of RISE.generate_masks (glue, not hot path)."""
    xyz = xyz[:, :3]
    N = xyz.shape[0]
    per = M // len(s)
    masks = []
    for n_sample in s:
        # TODO(synk): farthest_point_sample replaced by deterministic strided subsampling.
        idx = (jnp.arange(n_sample) * (N // n_sample)) % N
        centers = xyz[idx]                                                # [S, 3]
        sqrdists = jnp.sum((xyz[:, None, :] - centers[None, :, :]) ** 2, axis=-1)
        assign = jnp.argmin(sqrdists, axis=1)                             # cluster per point
        key, sub = jax.random.split(key)
        acts = (jax.random.uniform(sub, (per, n_sample)) > p1).astype(jnp.float32)
        masks.append(acts[:, assign])                                     # [per, N]
    return jnp.concatenate(masks, axis=0)                                 # [M, N]
    # NOTE: PyTorch keeps masks as float64; TPU path uses float32 (0/1 masks are exact).


if __name__ == "__main__":
    jax.config.update("jax_default_matmul_precision", "highest")

    key = jax.random.PRNGKey(0)
    N, C, M, H, CL = 128, 3, 64, 32, 16
    p1 = 0.15
    k1, k2, k3, k4, k5, k6 = jax.random.split(key, 6)

    x = jax.random.normal(k1, (N, C), jnp.float32)
    masks = generate_masks(k2, x, M=M, s=(8, 16, 32, 64), p1=p1)

    # deterministic synthetic "model" parameters (PointNet-lite)
    w1 = jax.random.normal(k3, (C, H), jnp.float32) * 0.1
    b1 = jax.random.normal(k4, (1, H), jnp.float32) * 0.1
    w2 = jax.random.normal(k5, (H, CL), jnp.float32) * 0.1
    b2 = jax.random.normal(k6, (1, CL), jnp.float32) * 0.1

    sal = rise_forward(x, masks, w1, b1, w2, b2, p1=p1)
    sal = jax.block_until_ready(sal)

    # pure-JAX reference (same semantics as canonical RISE forward)
    stack = masks[:, :, None] * x[None, :, :]
    h_ref = jnp.maximum(jnp.einsum('mnc,ch->mnh', stack, w1) + b1[None], 0.0)
    feat_ref = jnp.max(h_ref, axis=1)
    preds_ref = feat_ref @ w2 + b2
    sal_ref = (preds_ref.T @ masks) / M / p1
    assert sal.shape == (CL, N)
    assert jnp.allclose(sal, sal_ref, atol=1e-4, rtol=1e-4)

    print("KERNEL_OK")
</pallas_src>

<mosaic_0001>
module attributes {stable_mosaic.version = 11 : i64} {
  func.func @rise_kernel(%arg0: i32, %arg1: i32, %arg2: memref<128x128xf32, #tpu.memory_space<vmem>>, %arg3: memref<128x128xf32, #tpu.memory_space<vmem>>, %arg4: memref<128x32xf32, #tpu.memory_space<vmem>>, %arg5: memref<16x32xf32, #tpu.memory_space<vmem>>, %arg6: memref<16x1xf32, #tpu.memory_space<vmem>>, %arg7: memref<1x16x128xf32, #tpu.memory_space<vmem>>, %arg8: memref<32x128xf32, #tpu.memory_space<vmem>>) attributes {dimension_semantics = [#tpu.dimension_semantics<parallel>, #tpu.dimension_semantics<arbitrary>], iteration_bounds = array<i64: 1, 1>, scalar_prefetch = 0 : i64, scratch_operands = 1 : i64, tpu.core_type = #tpu.core_type<tc>, window_params = [{transform_indices = @transform_0, window_bounds = array<i64: 128, 128>}, {transform_indices = @transform_1, window_bounds = array<i64: 128, 128>}, {pipeline_mode = #tpu.pipeline_mode<synchronous>, transform_indices = @transform_2, window_bounds = array<i64: 128, 32>}, {pipeline_mode = #tpu.pipeline_mode<synchronous>, transform_indices = @transform_3, window_bounds = array<i64: 16, 32>}, {pipeline_mode = #tpu.pipeline_mode<synchronous>, transform_indices = @transform_4, window_bounds = array<i64: 16, 1>}, {transform_indices = @transform_5, window_bounds = array<i64: 1, 16, 128>}]} {
    %c0_i32 = arith.constant 0 : i32
    %0 = arith.cmpi eq, %arg1, %c0_i32 : i32
    %1 = arith.extui %0 : i1 to i32
    %c0_i32_0 = arith.constant 0 : i32
    %2 = arith.cmpi ne, %1, %c0_i32_0 : i32
    scf.if %2 {
      %cst_210 = arith.constant 0.000000e+00 : f32
      %276 = vector.broadcast %cst_210 : f32 to vector<16x128xf32>
      %c0_211 = arith.constant 0 : index
      %c0_212 = arith.constant 0 : index
      %c0_213 = arith.constant 0 : index
      %277 = vector.load %arg7[%c0_211, %c0_212, %c0_213] : memref<1x16x128xf32, #tpu.memory_space<vmem>>, vector<1x16x128xf32>
      %278 = vector.shape_cast %277 : vector<1x16x128xf32> to vector<16x128xf32>
      %279 = vector.shape_cast %276 : vector<16x128xf32> to vector<1x16x128xf32>
      tpu.vector_store %arg7[%c0_211, %c0_212, %c0_213], %279 {strides = array<i32>} : memref<1x16x128xf32, #tpu.memory_space<vmem>>, vector<1x16x128xf32>,
    } else {
    }
    %c0 = arith.constant 0 : index
    %c0_1 = arith.constant 0 : index
    %3 = vector.load %arg4[%c0, %c0_1] : memref<128x32xf32, #tpu.memory_space<vmem>>, vector<128x1xf32>
    %4 = vector.shape_cast %3 : vector<128x1xf32> to vector<128x1xf32>
    %5 = vector.broadcast %4 : vector<128x1xf32> to vector<128x128xf32>
    %c0_2 = arith.constant 0 : index
    %c0_3 = arith.constant 0 : index
    %6 = vector.load %arg2[%c0_2, %c0_3] : memref<128x128xf32, #tpu.memory_space<vmem>>, vector<128x128xf32>
    %7 = arith.mulf %6, %5 : vector<128x128xf32>
    %cst = arith.constant dense<0xFF800000> : vector<128xf32>
    %8 = vector.multi_reduction <maximumf>, %7, %cst [0] : vector<128x128xf32> to vector<128xf32>
    %9 = vector.shape_cast %8 : vector<128xf32> to vector<1x128xf32>
    %c0_4 = arith.constant 0 : index
    %c0_5 = arith.constant 0 : index
    %10 = vector.load %arg8[%c0_4, %c0_5] : memref<32x128xf32, #tpu.memory_space<vmem>>, vector<1x128xf32>
    tpu.vector_store %arg8[%c0_4, %c0_5], %9 {strides = array<i32>} : memref<32x128xf32, #tpu.memory_space<vmem>>, vector<1x128xf32>,
    %c0_6 = arith.constant 0 : index
    %c1 = arith.constant 1 : index
    %11 = vector.load %arg4[%c0_6, %c1] : memref<128x32xf32, #tpu.memory_space<vmem>>, vector<128x1xf32>
    %12 = vector.shape_cast %11 : vector<128x1xf32> to vector<128x1xf32>
    %13 = vector.broadcast %12 : vector<128x1xf32> to vector<128x128xf32>
    %c0_7 = arith.constant 0 : index
    %c0_8 = arith.constant 0 : index
    %14 = vector.load %arg2[%c0_7, %c0_8] : memref<128x128xf32, #tpu.memory_space<vmem>>, vector<128x128xf32>
    %15 = arith.mulf %14, %13 : vector<128x128xf32>
    %cst_9 = arith.constant dense<0xFF800000> : vector<128xf32>
    %16 = vector.multi_reduction <maximumf>, %15, %cst_9 [0] : vector<128x128xf32> to vector<128xf32>
    %17 = vector.shape_cast %16 : vector<128xf32> to vector<1x128xf32>
    %c1_10 = arith.constant 1 : index
    %c0_11 = arith.constant 0 : index
    %18 = vector.load %arg8[%c1_10, %c0_11] : memref<32x128xf32, #tpu.memory_space<vmem>>, vector<1x128xf32>
    tpu.vector_store %arg8[%c1_10, %c0_11], %17 {strides = array<i32>} : memref<32x128xf32, #tpu.memory_space<vmem>>, vector<1x128xf32>,
    %c0_12 = arith.constant 0 : index
    %c2 = arith.constant 2 : index
    %19 = vector.load %arg4[%c0_12, %c2] : memref<128x32xf32, #tpu.memory_space<vmem>>, vector<128x1xf32>
    %20 = vector.shape_cast %19 : vector<128x1xf32> to vector<128x1xf32>
    %21 = vector.broadcast %20 : vector<128x1xf32> to vector<128x128xf32>
    %c0_13 = arith.constant 0 : index
    %c0_14 = arith.constant 0 : index
    %22 = vector.load %arg2[%c0_13, %c0_14] : memref<128x128xf32, #tpu.memory_space<vmem>>, vector<128x128xf32>
    %23 = arith.mulf %22, %21 : vector<128x128xf32>
    %cst_15 = arith.constant dense<0xFF800000> : vector<128xf32>
    %24 = vector.multi_reduction <maximumf>, %23, %cst_15 [0] : vector<128x128xf32> to vector<128xf32>
    %25 = vector.shape_cast %24 : vector<128xf32> to vector<1x128xf32>
    %c2_16 = arith.constant 2 : index
    %c0_17 = arith.constant 0 : index
    %26 = vector.load %arg8[%c2_16, %c0_17] : memref<32x128xf32, #tpu.memory_space<vmem>>, vector<1x128xf32>
    tpu.vector_store %arg8[%c2_16, %c0_17], %25 {strides = array<i32>} : memref<32x128xf32, #tpu.memory_space<vmem>>, vector<1x128xf32>,
    %c0_18 = arith.constant 0 : index
    %c3 = arith.constant 3 : index
    %27 = vector.load %arg4[%c0_18, %c3] : memref<128x32xf32, #tpu.memory_space<vmem>>, vector<128x1xf32>
    %28 = vector.shape_cast %27 : vector<128x1xf32> to vector<128x1xf32>
    %29 = vector.broadcast %28 : vector<128x1xf32> to vector<128x128xf32>
    %c0_19 = arith.constant 0 : index
    %c0_20 = arith.constant 0 : index
    %30 = vector.load %arg2[%c0_19, %c0_20] : memref<128x128xf32, #tpu.memory_space<vmem>>, vector<128x128xf32>
    %31 = arith.mulf %30, %29 : vector<128x128xf32>
    %cst_21 = arith.constant dense<0xFF800000> : vector<128xf32>
    %32 = vector.multi_reduction <maximumf>, %31, %cst_21 [0] : vector<128x128xf32> to vector<128xf32>
    %33 = vector.shape_cast %32 : vector<128xf32> to vector<1x128xf32>
    %c3_22 = arith.constant 3 : index
    %c0_23 = arith.constant 0 : index
    %34 = vector.load %arg8[%c3_22, %c0_23] : memref<32x128xf32, #tpu.memory_space<vmem>>, vector<1x128xf32>
    tpu.vector_store %arg8[%c3_22, %c0_23], %33 {strides = array<i32>} : memref<32x128xf32, #tpu.memory_space<vmem>>, vector<1x128xf32>,
    %c0_24 = arith.constant 0 : index
    %c4 = arith.constant 4 : index
    %35 = vector.load %arg4[%c0_24, %c4] : memref<128x32xf32, #tpu.memory_space<vmem>>, vector<128x1xf32>
    %36 = vector.shape_cast %35 : vector<128x1xf32> to vector<128x1xf32>
    %37 = vector.broadcast %36 : vector<128x1xf32> to vector<128x128xf32>
    %c0_25 = arith.constant 0 : index
    %c0_26 = arith.constant 0 : index
    %38 = vector.load %arg2[%c0_25, %c0_26] : memref<128x128xf32, #tpu.memory_space<vmem>>, vector<128x128xf32>
    %39 = arith.mulf %38, %37 : vector<128x128xf32>
    %cst_27 = arith.constant dense<0xFF800000> : vector<128xf32>
    %40 = vector.multi_reduction <maximumf>, %39, %cst_27 [0] : vector<128x128xf32> to vector<128xf32>
    %41 = vector.shape_cast %40 : vector<128xf32> to vector<1x128xf32>
    %c4_28 = arith.constant 4 : index
    %c0_29 = arith.constant 0 : index
    %42 = vector.load %arg8[%c4_28, %c0_29] : memref<32x128xf32, #tpu.memory_space<vmem>>, vector<1x128xf32>
    tpu.vector_store %arg8[%c4_28, %c0_29], %41 {strides = array<i32>} : memref<32x128xf32, #tpu.memory_space<vmem>>, vector<1x128xf32>,
    %c0_30 = arith.constant 0 : index
    %c5 = arith.constant 5 : index
    %43 = vector.load %arg4[%c0_30, %c5] : memref<128x32xf32, #tpu.memory_space<vmem>>, vector<128x1xf32>
    %44 = vector.shape_cast %43 : vector<128x1xf32> to vector<128x1xf32>
    %45 = vector.broadcast %44 : vector<128x1xf32> to vector<128x128xf32>
    %c0_31 = arith.constant 0 : index
    %c0_32 = arith.constant 0 : index
    %46 = vector.load %arg2[%c0_31, %c0_32] : memref<128x128xf32, #tpu.memory_space<vmem>>, vector<128x128xf32>
    %47 = arith.mulf %46, %45 : vector<128x128xf32>
    %cst_33 = arith.constant dense<0xFF800000> : vector<128xf32>
    %48 = vector.multi_reduction <maximumf>, %47, %cst_33 [0] : vector<128x128xf32> to vector<128xf32>
    %49 = vector.shape_cast %48 : vector<128xf32> to vector<1x128xf32>
    %c5_34 = arith.constant 5 : index
    %c0_35 = arith.constant 0 : index
    %50 = vector.load %arg8[%c5_34, %c0_35] : memref<32x128xf32, #tpu.memory_space<vmem>>, vector<1x128xf32>
    tpu.vector_store %arg8[%c5_34, %c0_35], %49 {strides = array<i32>} : memref<32x128xf32, #tpu.memory_space<vmem>>, vector<1x128xf32>,
    %c0_36 = arith.constant 0 : index
    %c6 = arith.constant 6 : index
    %51 = vector.load %arg4[%c0_36, %c6] : memref<128x32xf32, #tpu.memory_space<vmem>>, vector<128x1xf32>
    %52 = vector.shape_cast %51 : vector<128x1xf32> to vector<128x1xf32>
    %53 = vector.broadcast %52 : vector<128x1xf32> to vector<128x128xf32>
    %c0_37 = arith.constant 0 : index
    %c0_38 = arith.constant 0 : index
    %54 = vector.load %arg2[%c0_37, %c0_38] : memref<128x128xf32, #tpu.memory_space<vmem>>, vector<128x128xf32>
    %55 = arith.mulf %54, %53 : vector<128x128xf32>
    %cst_39 = arith.constant dense<0xFF800000> : vector<128xf32>
    %56 = vector.multi_reduction <maximumf>, %55, %cst_39 [0] : vector<128x128xf32> to vector<128xf32>
    %57 = vector.shape_cast %56 : vector<128xf32> to vector<1x128xf32>
    %c6_40 = arith.constant 6 : index
    %c0_41 = arith.constant 0 : index
    %58 = vector.load %arg8[%c6_40, %c0_41] : memref<32x128xf32, #tpu.memory_space<vmem>>, vector<1x128xf32>
    tpu.vector_store %arg8[%c6_40, %c0_41], %57 {strides = array<i32>} : memref<32x128xf32, #tpu.memory_space<vmem>>, vector<1x128xf32>,
    %c0_42 = arith.constant 0 : index
    %c7 = arith.constant 7 : index
    %59 = vector.load %arg4[%c0_42, %c7] : memref<128x32xf32, #tpu.memory_space<vmem>>, vector<128x1xf32>
    %60 = vector.shape_cast %59 : vector<128x1xf32> to vector<128x1xf32>
    %61 = vector.broadcast %60 : vector<128x1xf32> to vector<128x128xf32>
    %c0_43 = arith.constant 0 : index
    %c0_44 = arith.constant 0 : index
    %62 = vector.load %arg2[%c0_43, %c0_44] : memref<128x128xf32, #tpu.memory_space<vmem>>, vector<128x128xf32>
    %63 = arith.mulf %62, %61 : vector<128x128xf32>
    %cst_45 = arith.constant dense<0xFF800000> : vector<128xf32>
    %64 = vector.multi_reduction <maximumf>, %63, %cst_45 [0] : vector<128x128xf32> to vector<128xf32>
    %65 = vector.shape_cast %64 : vector<128xf32> to vector<1x128xf32>
    %c7_46 = arith.constant 7 : index
    %c0_47 = arith.constant 0 : index
    %66 = vector.load %arg8[%c7_46, %c0_47] : memref<32x128xf32, #tpu.memory_space<vmem>>, vector<1x128xf32>
    tpu.vector_store %arg8[%c7_46, %c0_47], %65 {strides = array<i32>} : memref<32x128xf32, #tpu.memory_space<vmem>>, vector<1x128xf32>,
    %c0_48 = arith.constant 0 : index
    %c8 = arith.constant 8 : index
    %67 = vector.load %arg4[%c0_48, %c8] : memref<128x32xf32, #tpu.memory_space<vmem>>, vector<128x1xf32>
    %68 = vector.shape_cast %67 : vector<128x1xf32> to vector<128x1xf32>
    %69 = vector.broadcast %68 : vector<128x1xf32> to vector<128x128xf32>
    %c0_49 = arith.constant 0 : index
    %c0_50 = arith.constant 0 : index
    %70 = vector.load %arg2[%c0_49, %c0_50] : memref<128x128xf32, #tpu.memory_space<vmem>>, vector<128x128xf32>
    %71 = arith.mulf %70, %69 : vector<128x128xf32>
    %cst_51 = arith.constant dense<0xFF800000> : vector<128xf32>
    %72 = vector.multi_reduction <maximumf>, %71, %cst_51 [0] : vector<128x128xf32> to vector<128xf32>
    %73 = vector.shape_cast %72 : vector<128xf32> to vector<1x128xf32>
    %c8_52 = arith.constant 8 : index
    %c0_53 = arith.constant 0 : index
    %74 = vector.load %arg8[%c8_52, %c0_53] : memref<32x128xf32, #tpu.memory_space<vmem>>, vector<1x128xf32>
    tpu.vector_store %arg8[%c8_52, %c0_53], %73 {strides = array<i32>} : memref<32x128xf32, #tpu.memory_space<vmem>>, vector<1x128xf32>,
    %c0_54 = arith.constant 0 : index
    %c9 = arith.constant 9 : index
    %75 = vector.load %arg4[%c0_54, %c9] : memref<128x32xf32, #tpu.memory_space<vmem>>, vector<128x1xf32>
    %76 = vector.shape_cast %75 : vector<128x1xf32> to vector<128x1xf32>
    %77 = vector.broadcast %76 : vector<128x1xf32> to vector<128x128xf32>
    %c0_55 = arith.constant 0 : index
    %c0_56 = arith.constant 0 : index
    %78 = vector.load %arg2[%c0_55, %c0_56] : memref<128x128xf32, #tpu.memory_space<vmem>>, vector<128x128xf32>
    %79 = arith.mulf %78, %77 : vector<128x128xf32>
    %cst_57 = arith.constant dense<0xFF800000> : vector<128xf32>
    %80 = vector.multi_reduction <maximumf>, %79, %cst_57 [0] : vector<128x128xf32> to vector<128xf32>
    %81 = vector.shape_cast %80 : vector<128xf32> to vector<1x128xf32>
    %c9_58 = arith.constant 9 : index
    %c0_59 = arith.constant 0 : index
    %82 = vector.load %arg8[%c9_58, %c0_59] : memref<32x128xf32, #tpu.memory_space<vmem>>, vector<1x128xf32>
    tpu.vector_store %arg8[%c9_58, %c0_59], %81 {strides = array<i32>} : memref<32x128xf32, #tpu.memory_space<vmem>>, vector<1x128xf32>,
    %c0_60 = arith.constant 0 : index
    %c10 = arith.constant 10 : index
    %83 = vector.load %arg4[%c0_60, %c10] : memref<128x32xf32, #tpu.memory_space<vmem>>, vector<128x1xf32>
    %84 = vector.shape_cast %83 : vector<128x1xf32> to vector<128x1xf32>
    %85 = vector.broadcast %84 : vector<128x1xf32> to vector<128x128xf32>
    %c0_61 = arith.constant 0 : index
    %c0_62 = arith.constant 0 : index
    %86 = vector.load %arg2[%c0_61, %c0_62] : memref<128x128xf32, #tpu.memory_space<vmem>>, vector<128x128xf32>
    %87 = arith.mulf %86, %85 : vector<128x128xf32>
    %cst_63 = arith.constant dense<0xFF800000> : vector<128xf32>
    %88 = vector.multi_reduction <maximumf>, %87, %cst_63 [0] : vector<128x128xf32> to vector<128xf32>
    %89 = vector.shape_cast %88 : vector<128xf32> to vector<1x128xf32>
    %c10_64 = arith.constant 10 : index
    %c0_65 = arith.constant 0 : index
    %90 = vector.load %arg8[%c10_64, %c0_65] : memref<32x128xf32, #tpu.memory_space<vmem>>, vector<1x128xf32>
    tpu.vector_store %arg8[%c10_64, %c0_65], %89 {strides = array<i32>} : memref<32x128xf32, #tpu.memory_space<vmem>>, vector<1x128xf32>,
    %c0_66 = arith.constant 0 : index
    %c11 = arith.constant 11 : index
    %91 = vector.load %arg4[%c0_66, %c11] : memref<128x32xf32, #tpu.memory_space<vmem>>, vector<128x1xf32>
    %92 = vector.shape_cast %91 : vector<128x1xf32> to vector<128x1xf32>
    %93 = vector.broadcast %92 : vector<128x1xf32> to vector<128x128xf32>
    %c0_67 = arith.constant 0 : index
    %c0_68 = arith.constant 0 : index
    %94 = vector.load %arg2[%c0_67, %c0_68] : memref<128x128xf32, #tpu.memory_space<vmem>>, vector<128x128xf32>
    %95 = arith.mulf %94, %93 : vector<128x128xf32>
    %cst_69 = arith.constant dense<0xFF800000> : vector<128xf32>
    %96 = vector.multi_reduction <maximumf>, %95, %cst_69 [0] : vector<128x128xf32> to vector<128xf32>
    %97 = vector.shape_cast %96 : vector<128xf32> to vector<1x128xf32>
    %c11_70 = arith.constant 11 : index
    %c0_71 = arith.constant 0 : index
    %98 = vector.load %arg8[%c11_70, %c0_71] : memref<32x128xf32, #tpu.memory_space<vmem>>, vector<1x128xf32>
    tpu.vector_store %arg8[%c11_70, %c0_71], %97 {strides = array<i32>} : memref<32x128xf32, #tpu.memory_space<vmem>>, vector<1x128xf32>,
    %c0_72 = arith.constant 0 : index
    %c12 = arith.constant 12 : index
    %99 = vector.load %arg4[%c0_72, %c12] : memref<128x32xf32, #tpu.memory_space<vmem>>, vector<128x1xf32>
    %100 = vector.shape_cast %99 : vector<128x1xf32> to vector<128x1xf32>
    %101 = vector.broadcast %100 : vector<128x1xf32> to vector<128x128xf32>
    %c0_73 = arith.constant 0 : index
    %c0_74 = arith.constant 0 : index
    %102 = vector.load %arg2[%c0_73, %c0_74] : memref<128x128xf32, #tpu.memory_space<vmem>>, vector<128x128xf32>
    %103 = arith.mulf %102, %101 : vector<128x128xf32>
    %cst_75 = arith.constant dense<0xFF800000> : vector<128xf32>
    %104 = vector.multi_reduction <maximumf>, %103, %cst_75 [0] : vector<128x128xf32> to vector<128xf32>
    %105 = vector.shape_cast %104 : vector<128xf32> to vector<1x128xf32>
    %c12_76 = arith.constant 12 : index
    %c0_77 = arith.constant 0 : index
    %106 = vector.load %arg8[%c12_76, %c0_77] : memref<32x128xf32, #tpu.memory_space<vmem>>, vector<1x128xf32>
    tpu.vector_store %arg8[%c12_76, %c0_77], %105 {strides = array<i32>} : memref<32x128xf32, #tpu.memory_space<vmem>>, vector<1x128xf32>,
    %c0_78 = arith.constant 0 : index
    %c13 = arith.constant 13 : index
    %107 = vector.load %arg4[%c0_78, %c13] : memref<128x32xf32, #tpu.memory_space<vmem>>, vector<128x1xf32>
    %108 = vector.shape_cast %107 : vector<128x1xf32> to vector<128x1xf32>
    %109 = vector.broadcast %108 : vector<128x1xf32> to vector<128x128xf32>
    %c0_79 = arith.constant 0 : index
    %c0_80 = arith.constant 0 : index
    %110 = vector.load %arg2[%c0_79, %c0_80] : memref<128x128xf32, #tpu.memory_space<vmem>>, vector<128x128xf32>
    %111 = arith.mulf %110, %109 : vector<128x128xf32>
    %cst_81 = arith.constant dense<0xFF800000> : vector<128xf32>
    %112 = vector.multi_reduction <maximumf>, %111, %cst_81 [0] : vector<128x128xf32> to vector<128xf32>
    %113 = vector.shape_cast %112 : vector<128xf32> to vector<1x128xf32>
    %c13_82 = arith.constant 13 : index
    %c0_83 = arith.constant 0 : index
    %114 = vector.load %arg8[%c13_82, %c0_83] : memref<32x128xf32, #tpu.memory_space<vmem>>, vector<1x128xf32>
    tpu.vector_store %arg8[%c13_82, %c0_83], %113 {strides = array<i32>} : memref<32x128xf32, #tpu.memory_space<vmem>>, vector<1x128xf32>,
    %c0_84 = arith.constant 0 : index
    %c14 = arith.constant 14 : index
    %115 = vector.load %arg4[%c0_84, %c14] : memref<128x32xf32, #tpu.memory_space<vmem>>, vector<128x1xf32>
    %116 = vector.shape_cast %115 : vector<128x1xf32> to vector<128x1xf32>
    %117 = vector.broadcast %116 : vector<128x1xf32> to vector<128x128xf32>
    %c0_85 = arith.constant 0 : index
    %c0_86 = arith.constant 0 : index
    %118 = vector.load %arg2[%c0_85, %c0_86] : memref<128x128xf32, #tpu.memory_space<vmem>>, vector<128x128xf32>
    %119 = arith.mulf %118, %117 : vector<128x128xf32>
    %cst_87 = arith.constant dense<0xFF800000> : vector<128xf32>
    %120 = vector.multi_reduction <maximumf>, %119, %cst_87 [0] : vector<128x128xf32> to vector<128xf32>
    %121 = vector.shape_cast %120 : vector<128xf32> to vector<1x128xf32>
    %c14_88 = arith.constant 14 : index
    %c0_89 = arith.constant 0 : index
    %122 = vector.load %arg8[%c14_88, %c0_89] : memref<32x128xf32, #tpu.memory_space<vmem>>, vector<1x128xf32>
    tpu.vector_store %arg8[%c14_88, %c0_89], %121 {strides = array<i32>} : memref<32x128xf32, #tpu.memory_space<vmem>>, vector<1x128xf32>,
    %c0_90 = arith.constant 0 : index
    %c15 = arith.constant 15 : index
    %123 = vector.load %arg4[%c0_90, %c15] : memref<128x32xf32, #tpu.memory_space<vmem>>, vector<128x1xf32>
    %124 = vector.shape_cast %123 : vector<128x1xf32> to vector<128x1xf32>
    %125 = vector.broadcast %124 : vector<128x1xf32> to vector<128x128xf32>
    %c0_91 = arith.constant 0 : index
    %c0_92 = arith.constant 0 : index
    %126 = vector.load %arg2[%c0_91, %c0_92] : memref<128x128xf32, #tpu.memory_space<vmem>>, vector<128x128xf32>
    %127 = arith.mulf %126, %125 : vector<128x128xf32>
    %cst_93 = arith.constant dense<0xFF800000> : vector<128xf32>
    %128 = vector.multi_reduction <maximumf>, %127, %cst_93 [0] : vector<128x128xf32> to vector<128xf32>
    %129 = vector.shape_cast %128 : vector<128xf32> to vector<1x128xf32>
    %c15_94 = arith.constant 15 : index
    %c0_95 = arith.constant 0 : index
    %130 = vector.load %arg8[%c15_94, %c0_95] : memref<32x128xf32, #tpu.memory_space<vmem>>, vector<1x128xf32>
    tpu.vector_store %arg8[%c15_94, %c0_95], %129 {strides = array<i32>} : memref<32x128xf32, #tpu.memory_space<vmem>>, vector<1x128xf32>,
    %c0_96 = arith.constant 0 : index
    %c16 = arith.constant 16 : index
    %131 = vector.load %arg4[%c0_96, %c16] : memref<128x32xf32, #tpu.memory_space<vmem>>, vector<128x1xf32>
    %132 = vector.shape_cast %131 : vector<128x1xf32> to vector<128x1xf32>
    %133 = vector.broadcast %132 : vector<128x1xf32> to vector<128x128xf32>
    %c0_97 = arith.constant 0 : index
    %c0_98 = arith.constant 0 : index
    %134 = vector.load %arg2[%c0_97, %c0_98] : memref<128x128xf32, #tpu.memory_space<vmem>>, vector<128x128xf32>
    %135 = arith.mulf %134, %133 : vector<128x128xf32>
    %cst_99 = arith.constant dense<0xFF800000> : vector<128xf32>
    %136 = vector.multi_reduction <maximumf>, %135, %cst_99 [0] : vector<128x128xf32> to vector<128xf32>
    %137 = vector.shape_cast %136 : vector<128xf32> to vector<1x128xf32>
    %c16_100 = arith.constant 16 : index
    %c0_101 = arith.constant 0 : index
    %138 = vector.load %arg8[%c16_100, %c0_101] : memref<32x128xf32, #tpu.memory_space<vmem>>, vector<1x128xf32>
    tpu.vector_store %arg8[%c16_100, %c0_101], %137 {strides = array<i32>} : memref<32x128xf32, #tpu.memory_space<vmem>>, vector<1x128xf32>,
    %c0_102 = arith.constant 0 : index
    %c17 = arith.constant 17 : index
    %139 = vector.load %arg4[%c0_102, %c17] : memref<128x32xf32, #tpu.memory_space<vmem>>, vector<128x1xf32>
    %140 = vector.shape_cast %139 : vector<128x1xf32> to vector<128x1xf32>
    %141 = vector.broadcast %140 : vector<128x1xf32> to vector<128x128xf32>
    %c0_103 = arith.constant 0 : index
    %c0_104 = arith.constant 0 : index
    %142 = vector.load %arg2[%c0_103, %c0_104] : memref<128x128xf32, #tpu.memory_space<vmem>>, vector<128x128xf32>
    %143 = arith.mulf %142, %141 : vector<128x128xf32>
    %cst_105 = arith.constant dense<0xFF800000> : vector<128xf32>
    %144 = vector.multi_reduction <maximumf>, %143, %cst_105 [0] : vector<128x128xf32> to vector<128xf32>
    %145 = vector.shape_cast %144 : vector<128xf32> to vector<1x128xf32>
    %c17_106 = arith.constant 17 : index
    %c0_107 = arith.constant 0 : index
    %146 = vector.load %arg8[%c17_106, %c0_107] : memref<32x128xf32, #tpu.memory_space<vmem>>, vector<1x128xf32>
    tpu.vector_store %arg8[%c17_106, %c0_107], %145 {strides = array<i32>} : memref<32x128xf32, #tpu.memory_space<vmem>>, vector<1x128xf32>,
    %c0_108 = arith.constant 0 : index
    %c18 = arith.constant 18 : index
    %147 = vector.load %arg4[%c0_108, %c18] : memref<128x32xf32, #tpu.memory_space<vmem>>, vector<128x1xf32>
    %148 = vector.shape_cast %147 : vector<128x1xf32> to vector<128x1xf32>
    %149 = vector.broadcast %148 : vector<128x1xf32> to vector<128x128xf32>
    %c0_109 = arith.constant 0 : index
    %c0_110 = arith.constant 0 : index
    %150 = vector.load %arg2[%c0_109, %c0_110] : memref<128x128xf32, #tpu.memory_space<vmem>>, vector<128x128xf32>
    %151 = arith.mulf %150, %149 : vector<128x128xf32>
    %cst_111 = arith.constant dense<0xFF800000> : vector<128xf32>
    %152 = vector.multi_reduction <maximumf>, %151, %cst_111 [0] : vector<128x128xf32> to vector<128xf32>
    %153 = vector.shape_cast %152 : vector<128xf32> to vector<1x128xf32>
    %c18_112 = arith.constant 18 : index
    %c0_113 = arith.constant 0 : index
    %154 = vector.load %arg8[%c18_112, %c0_113] : memref<32x128xf32, #tpu.memory_space<vmem>>, vector<1x128xf32>
    tpu.vector_store %arg8[%c18_112, %c0_113], %153 {strides = array<i32>} : memref<32x128xf32, #tpu.memory_space<vmem>>, vector<1x128xf32>,
    %c0_114 = arith.constant 0 : index
    %c19 = arith.constant 19 : index
    %155 = vector.load %arg4[%c0_114, %c19] : memref<128x32xf32, #tpu.memory_space<vmem>>, vector<128x1xf32>
    %156 = vector.shape_cast %155 : vector<128x1xf32> to vector<128x1xf32>
    %157 = vector.broadcast %156 : vector<128x1xf32> to vector<128x128xf32>
    %c0_115 = arith.constant 0 : index
    %c0_116 = arith.constant 0 : index
    %158 = vector.load %arg2[%c0_115, %c0_116] : memref<128x128xf32, #tpu.memory_space<vmem>>, vector<128x128xf32>
    %159 = arith.mulf %158, %157 : vector<128x128xf32>
    %cst_117 = arith.constant dense<0xFF800000> : vector<128xf32>
    %160 = vector.multi_reduction <maximumf>, %159, %cst_117 [0] : vector<128x128xf32> to vector<128xf32>
    %161 = vector.shape_cast %160 : vector<128xf32> to vector<1x128xf32>
    %c19_118 = arith.constant 19 : index
    %c0_119 = arith.constant 0 : index
    %162 = vector.load %arg8[%c19_118, %c0_119] : memref<32x128xf32, #tpu.memory_space<vmem>>, vector<1x128xf32>
    tpu.vector_store %arg8[%c19_118, %c0_119], %161 {strides = array<i32>} : memref<32x128xf32, #tpu.memory_space<vmem>>, vector<1x128xf32>,
    %c0_120 = arith.constant 0 : index
    %c20 = arith.constant 20 : index
    %163 = vector.load %arg4[%c0_120, %c20] : memref<128x32xf32, #tpu.memory_space<vmem>>, vector<128x1xf32>
    %164 = vector.shape_cast %163 : vector<128x1xf32> to vector<128x1xf32>
    %165 = vector.broadcast %164 : vector<128x1xf32> to vector<128x128xf32>
    %c0_121 = arith.constant 0 : index
    %c0_122 = arith.constant 0 : index
    %166 = vector.load %arg2[%c0_121, %c0_122] : memref<128x128xf32, #tpu.memory_space<vmem>>, vector<128x128xf32>
    %167 = arith.mulf %166, %165 : vector<128x128xf32>
    %cst_123 = arith.constant dense<0xFF800000> : vector<128xf32>
    %168 = vector.multi_reduction <maximumf>, %167, %cst_123 [0] : vector<128x128xf32> to vector<128xf32>
    %169 = vector.shape_cast %168 : vector<128xf32> to vector<1x128xf32>
    %c20_124 = arith.constant 20 : index
    %c0_125 = arith.constant 0 : index
    %170 = vector.load %arg8[%c20_124, %c0_125] : memref<32x128xf32, #tpu.memory_space<vmem>>, vector<1x128xf32>
    tpu.vector_store %arg8[%c20_124, %c0_125], %169 {strides = array<i32>} : memref<32x128xf32, #tpu.memory_space<vmem>>, vector<1x128xf32>,
    %c0_126 = arith.constant 0 : index
    %c21 = arith.constant 21 : index
    %171 = vector.load %arg4[%c0_126, %c21] : memref<128x32xf32, #tpu.memory_space<vmem>>, vector<128x1xf32>
    %172 = vector.shape_cast %171 : vector<128x1xf32> to vector<128x1xf32>
    %173 = vector.broadcast %172 : vector<128x1xf32> to vector<128x128xf32>
    %c0_127 = arith.constant 0 : index
    %c0_128 = arith.constant 0 : index
    %174 = vector.load %arg2[%c0_127, %c0_128] : memref<128x128xf32, #tpu.memory_space<vmem>>, vector<128x128xf32>
    %175 = arith.mulf %174, %173 : vector<128x128xf32>
    %cst_129 = arith.constant dense<0xFF800000> : vector<128xf32>
    %176 = vector.multi_reduction <maximumf>, %175, %cst_129 [0] : vector<128x128xf32> to vector<128xf32>
    %177 = vector.shape_cast %176 : vector<128xf32> to vector<1x128xf32>
    %c21_130 = arith.constant 21 : index
    %c0_131 = arith.constant 0 : index
    %178 = vector.load %arg8[%c21_130, %c0_131] : memref<32x128xf32, #tpu.memory_space<vmem>>, vector<1x128xf32>
    tpu.vector_store %arg8[%c21_130, %c0_131], %177 {strides = array<i32>} : memref<32x128xf32, #tpu.memory_space<vmem>>, vector<1x128xf32>,
    %c0_132 = arith.constant 0 : index
    %c22 = arith.constant 22 : index
    %179 = vector.load %arg4[%c0_132, %c22] : memref<128x32xf32, #tpu.memory_space<vmem>>, vector<128x1xf32>
    %180 = vector.shape_cast %179 : vector<128x1xf32> to vector<128x1xf32>
    %181 = vector.broadcast %180 : vector<128x1xf32> to vector<128x128xf32>
    %c0_133 = arith.constant 0 : index
    %c0_134 = arith.constant 0 : index
    %182 = vector.load %arg2[%c0_133, %c0_134] : memref<128x128xf32, #tpu.memory_space<vmem>>, vector<128x128xf32>
    %183 = arith.mulf %182, %181 : vector<128x128xf32>
    %cst_135 = arith.constant dense<0xFF800000> : vector<128xf32>
    %184 = vector.multi_reduction <maximumf>, %183, %cst_135 [0] : vector<128x128xf32> to vector<128xf32>
    %185 = vector.shape_cast %184 : vector<128xf32> to vector<1x128xf32>
    %c22_136 = arith.constant 22 : index
    %c0_137 = arith.constant 0 : index
    %186 = vector.load %arg8[%c22_136, %c0_137] : memref<32x128xf32, #tpu.memory_space<vmem>>, vector<1x128xf32>
    tpu.vector_store %arg8[%c22_136, %c0_137], %185 {strides = array<i32>} : memref<32x128xf32, #tpu.memory_space<vmem>>, vector<1x128xf32>,
    %c0_138 = arith.constant 0 : index
    %c23 = arith.constant 23 : index
    %187 = vector.load %arg4[%c0_138, %c23] : memref<128x32xf32, #tpu.memory_space<vmem>>, vector<128x1xf32>
    %188 = vector.shape_cast %187 : vector<128x1xf32> to vector<128x1xf32>
    %189 = vector.broadcast %188 : vector<128x1xf32> to vector<128x128xf32>
    %c0_139 = arith.constant 0 : index
    %c0_140 = arith.constant 0 : index
    %190 = vector.load %arg2[%c0_139, %c0_140] : memref<128x128xf32, #tpu.memory_space<vmem>>, vector<128x128xf32>
    %191 = arith.mulf %190, %189 : vector<128x128xf32>
    %cst_141 = arith.constant dense<0xFF800000> : vector<128xf32>
    %192 = vector.multi_reduction <maximumf>, %191, %cst_141 [0] : vector<128x128xf32> to vector<128xf32>
    %193 = vector.shape_cast %192 : vector<128xf32> to vector<1x128xf32>
    %c23_142 = arith.constant 23 : index
    %c0_143 = arith.constant 0 : index
    %194 = vector.load %arg8[%c23_142, %c0_143] : memref<32x128xf32, #tpu.memory_space<vmem>>, vector<1x128xf32>
    tpu.vector_store %arg8[%c23_142, %c0_143], %193 {strides = array<i32>} : memref<32x128xf32, #tpu.memory_space<vmem>>, vector<1x128xf32>,
    %c0_144 = arith.constant 0 : index
    %c24 = arith.constant 24 : index
    %195 = vector.load %arg4[%c0_144, %c24] : memref<128x32xf32, #tpu.memory_space<vmem>>, vector<128x1xf32>
    %196 = vector.shape_cast %195 : vector<128x1xf32> to vector<128x1xf32>
    %197 = vector.broadcast %196 : vector<128x1xf32> to vector<128x128xf32>
    %c0_145 = arith.constant 0 : index
    %c0_146 = arith.constant 0 : index
    %198 = vector.load %arg2[%c0_145, %c0_146] : memref<128x128xf32, #tpu.memory_space<vmem>>, vector<128x128xf32>
    %199 = arith.mulf %198, %197 : vector<128x128xf32>
    %cst_147 = arith.constant dense<0xFF800000> : vector<128xf32>
    %200 = vector.multi_reduction <maximumf>, %199, %cst_147 [0] : vector<128x128xf32> to vector<128xf32>
    %201 = vector.shape_cast %200 : vector<128xf32> to vector<1x128xf32>
    %c24_148 = arith.constant 24 : index
    %c0_149 = arith.constant 0 : index
    %202 = vector.load %arg8[%c24_148, %c0_149] : memref<32x128xf32, #tpu.memory_space<vmem>>, vector<1x128xf32>
    tpu.vector_store %arg8[%c24_148, %c0_149], %201 {strides = array<i32>} : memref<32x128xf32, #tpu.memory_space<vmem>>, vector<1x128xf32>,
    %c0_150 = arith.constant 0 : index
    %c25 = arith.constant 25 : index
    %203 = vector.load %arg4[%c0_150, %c25] : memref<128x32xf32, #tpu.memory_space<vmem>>, vector<128x1xf32>
    %204 = vector.shape_cast %203 : vector<128x1xf32> to vector<128x1xf32>
    %205 = vector.broadcast %204 : vector<128x1xf32> to vector<128x128xf32>
    %c0_151 = arith.constant 0 : index
    %c0_152 = arith.constant 0 : index
    %206 = vector.load %arg2[%c0_151, %c0_152] : memref<128x128xf32, #tpu.memory_space<vmem>>, vector<128x128xf32>
    %207 = arith.mulf %206, %205 : vector<128x128xf32>
    %cst_153 = arith.constant dense<0xFF800000> : vector<128xf32>
    %208 = vector.multi_reduction <maximumf>, %207, %cst_153 [0] : vector<128x128xf32> to vector<128xf32>
    %209 = vector.shape_cast %208 : vector<128xf32> to vector<1x128xf32>
    %c25_154 = arith.constant 25 : index
    %c0_155 = arith.constant 0 : index
    %210 = vector.load %arg8[%c25_154, %c0_155] : memref<32x128xf32, #tpu.memory_space<vmem>>, vector<1x128xf32>
    tpu.vector_store %arg8[%c25_154, %c0_155], %209 {strides = array<i32>} : memref<32x128xf32, #tpu.memory_space<vmem>>, vector<1x128xf32>,
    %c0_156 = arith.constant 0 : index
    %c26 = arith.constant 26 : index
    %211 = vector.load %arg4[%c0_156, %c26] : memref<128x32xf32, #tpu.memory_space<vmem>>, vector<128x1xf32>
    %212 = vector.shape_cast %211 : vector<128x1xf32> to vector<128x1xf32>
    %213 = vector.broadcast %212 : vector<128x1xf32> to vector<128x128xf32>
    %c0_157 = arith.constant 0 : index
    %c0_158 = arith.constant 0 : index
    %214 = vector.load %arg2[%c0_157, %c0_158] : memref<128x128xf32, #tpu.memory_space<vmem>>, vector<128x128xf32>
    %215 = arith.mulf %214, %213 : vector<128x128xf32>
    %cst_159 = arith.constant dense<0xFF800000> : vector<128xf32>
    %216 = vector.multi_reduction <maximumf>, %215, %cst_159 [0] : vector<128x128xf32> to vector<128xf32>
    %217 = vector.shape_cast %216 : vector<128xf32> to vector<1x128xf32>
    %c26_160 = arith.constant 26 : index
    %c0_161 = arith.constant 0 : index
    %218 = vector.load %arg8[%c26_160, %c0_161] : memref<32x128xf32, #tpu.memory_space<vmem>>, vector<1x128xf32>
    tpu.vector_store %arg8[%c26_160, %c0_161], %217 {strides = array<i32>} : memref<32x128xf32, #tpu.memory_space<vmem>>, vector<1x128xf32>,
    %c0_162 = arith.constant 0 : index
    %c27 = arith.constant 27 : index
    %219 = vector.load %arg4[%c0_162, %c27] : memref<128x32xf32, #tpu.memory_space<vmem>>, vector<128x1xf32>
    %220 = vector.shape_cast %219 : vector<128x1xf32> to vector<128x1xf32>
    %221 = vector.broadcast %220 : vector<128x1xf32> to vector<128x128xf32>
    %c0_163 = arith.constant 0 : index
    %c0_164 = arith.constant 0 : index
    %222 = vector.load %arg2[%c0_163, %c0_164] : memref<128x128xf32, #tpu.memory_space<vmem>>, vector<128x128xf32>
    %223 = arith.mulf %222, %221 : vector<128x128xf32>
    %cst_165 = arith.constant dense<0xFF800000> : vector<128xf32>
    %224 = vector.multi_reduction <maximumf>, %223, %cst_165 [0] : vector<128x128xf32> to vector<128xf32>
    %225 = vector.shape_cast %224 : vector<128xf32> to vector<1x128xf32>
    %c27_166 = arith.constant 27 : index
    %c0_167 = arith.constant 0 : index
    %226 = vector.load %arg8[%c27_166, %c0_167] : memref<32x128xf32, #tpu.memory_space<vmem>>, vector<1x128xf32>
    tpu.vector_store %arg8[%c27_166, %c0_167], %225 {strides = array<i32>} : memref<32x128xf32, #tpu.memory_space<vmem>>, vector<1x128xf32>,
    %c0_168 = arith.constant 0 : index
    %c28 = arith.constant 28 : index
    %227 = vector.load %arg4[%c0_168, %c28] : memref<128x32xf32, #tpu.memory_space<vmem>>, vector<128x1xf32>
    %228 = vector.shape_cast %227 : vector<128x1xf32> to vector<128x1xf32>
    %229 = vector.broadcast %228 : vector<128x1xf32> to vector<128x128xf32>
    %c0_169 = arith.constant 0 : index
    %c0_170 = arith.constant 0 : index
    %230 = vector.load %arg2[%c0_169, %c0_170] : memref<128x128xf32, #tpu.memory_space<vmem>>, vector<128x128xf32>
    %231 = arith.mulf %230, %229 : vector<128x128xf32>
    %cst_171 = arith.constant dense<0xFF800000> : vector<128xf32>
    %232 = vector.multi_reduction <maximumf>, %231, %cst_171 [0] : vector<128x128xf32> to vector<128xf32>
    %233 = vector.shape_cast %232 : vector<128xf32> to vector<1x128xf32>
    %c28_172 = arith.constant 28 : index
    %c0_173 = arith.constant 0 : index
    %234 = vector.load %arg8[%c28_172, %c0_173] : memref<32x128xf32, #tpu.memory_space<vmem>>, vector<1x128xf32>
    tpu.vector_store %arg8[%c28_172, %c0_173], %233 {strides = array<i32>} : memref<32x128xf32, #tpu.memory_space<vmem>>, vector<1x128xf32>,
    %c0_174 = arith.constant 0 : index
    %c29 = arith.constant 29 : index
    %235 = vector.load %arg4[%c0_174, %c29] : memref<128x32xf32, #tpu.memory_space<vmem>>, vector<128x1xf32>
    %236 = vector.shape_cast %235 : vector<128x1xf32> to vector<128x1xf32>
    %237 = vector.broadcast %236 : vector<128x1xf32> to vector<128x128xf32>
    %c0_175 = arith.constant 0 : index
    %c0_176 = arith.constant 0 : index
    %238 = vector.load %arg2[%c0_175, %c0_176] : memref<128x128xf32, #tpu.memory_space<vmem>>, vector<128x128xf32>
    %239 = arith.mulf %238, %237 : vector<128x128xf32>
    %cst_177 = arith.constant dense<0xFF800000> : vector<128xf32>
    %240 = vector.multi_reduction <maximumf>, %239, %cst_177 [0] : vector<128x128xf32> to vector<128xf32>
    %241 = vector.shape_cast %240 : vector<128xf32> to vector<1x128xf32>
    %c29_178 = arith.constant 29 : index
    %c0_179 = arith.constant 0 : index
    %242 = vector.load %arg8[%c29_178, %c0_179] : memref<32x128xf32, #tpu.memory_space<vmem>>, vector<1x128xf32>
    tpu.vector_store %arg8[%c29_178, %c0_179], %241 {strides = array<i32>} : memref<32x128xf32, #tpu.memory_space<vmem>>, vector<1x128xf32>,
    %c0_180 = arith.constant 0 : index
    %c30 = arith.constant 30 : index
    %243 = vector.load %arg4[%c0_180, %c30] : memref<128x32xf32, #tpu.memory_space<vmem>>, vector<128x1xf32>
    %244 = vector.shape_cast %243 : vector<128x1xf32> to vector<128x1xf32>
    %245 = vector.broadcast %244 : vector<128x1xf32> to vector<128x128xf32>
    %c0_181 = arith.constant 0 : index
    %c0_182 = arith.constant 0 : index
    %246 = vector.load %arg2[%c0_181, %c0_182] : memref<128x128xf32, #tpu.memory_space<vmem>>, vector<128x128xf32>
    %247 = arith.mulf %246, %245 : vector<128x128xf32>
    %cst_183 = arith.constant dense<0xFF800000> : vector<128xf32>
    %248 = vector.multi_reduction <maximumf>, %247, %cst_183 [0] : vector<128x128xf32> to vector<128xf32>
    %249 = vector.shape_cast %248 : vector<128xf32> to vector<1x128xf32>
    %c30_184 = arith.constant 30 : index
    %c0_185 = arith.constant 0 : index
    %250 = vector.load %arg8[%c30_184, %c0_185] : memref<32x128xf32, #tpu.memory_space<vmem>>, vector<1x128xf32>
    tpu.vector_store %arg8[%c30_184, %c0_185], %249 {strides = array<i32>} : memref<32x128xf32, #tpu.memory_space<vmem>>, vector<1x128xf32>,
    %c0_186 = arith.constant 0 : index
    %c31 = arith.constant 31 : index
    %251 = vector.load %arg4[%c0_186, %c31] : memref<128x32xf32, #tpu.memory_space<vmem>>, vector<128x1xf32>
    %252 = vector.shape_cast %251 : vector<128x1xf32> to vector<128x1xf32>
    %253 = vector.broadcast %252 : vector<128x1xf32> to vector<128x128xf32>
    %c0_187 = arith.constant 0 : index
    %c0_188 = arith.constant 0 : index
    %254 = vector.load %arg2[%c0_187, %c0_188] : memref<128x128xf32, #tpu.memory_space<vmem>>, vector<128x128xf32>
    %255 = arith.mulf %254, %253 : vector<128x128xf32>
    %cst_189 = arith.constant dense<0xFF800000> : vector<128xf32>
    %256 = vector.multi_reduction <maximumf>, %255, %cst_189 [0] : vector<128x128xf32> to vector<128xf32>
    %257 = vector.shape_cast %256 : vector<128xf32> to vector<1x128xf32>
    %c31_190 = arith.constant 31 : index
    %c0_191 = arith.constant 0 : index
    %258 = vector.load %arg8[%c31_190, %c0_191] : memref<32x128xf32, #tpu.memory_space<vmem>>, vector<1x128xf32>
    tpu.vector_store %arg8[%c31_190, %c0_191], %257 {strides = array<i32>} : memref<32x128xf32, #tpu.memory_space<vmem>>, vector<1x128xf32>,
    %c0_192 = arith.constant 0 : index
    %c0_193 = arith.constant 0 : index
    %259 = vector.load %arg5[%c0_192, %c0_193] : memref<16x32xf32, #tpu.memory_space<vmem>>, vector<16x32xf32>
    %c0_194 = arith.constant 0 : index
    %c0_195 = arith.constant 0 : index
    %260 = vector.load %arg8[%c0_194, %c0_195] : memref<32x128xf32, #tpu.memory_space<vmem>>, vector<32x128xf32>
    %cst_196 = arith.constant dense<0.000000e+00> : vector<16x128xf32>
    %261 = tpu.matmul %259, %260, %cst_196 {dimension_numbers = #tpu.dot_dimension_numbers<[1], [0], [0], [1], [0, 0, 1, 1], [], []>, precision = #tpu.contract_precision<fp32>} : vector<16x32xf32>, vector<32x128xf32>, vector<16x128xf32> -> vector<16x128xf32>
    %c0_197 = arith.constant 0 : index
    %c0_198 = arith.constant 0 : index
    %262 = vector.load %arg6[%c0_197, %c0_198] : memref<16x1xf32, #tpu.memory_space<vmem>>, vector<16x1xf32>
    %263 = vector.broadcast %262 : vector<16x1xf32> to vector<16x128xf32>
    %264 = arith.addf %261, %263 : vector<16x128xf32>
    %c0_199 = arith.constant 0 : index
    %c0_200 = arith.constant 0 : index
    %c0_201 = arith.constant 0 : index
    %265 = vector.load %arg7[%c0_199, %c0_200, %c0_201] : memref<1x16x128xf32, #tpu.memory_space<vmem>>, vector<1x16x128xf32>
    %266 = vector.shape_cast %265 : vector<1x16x128xf32> to vector<16x128xf32>
    %c0_202 = arith.constant 0 : index
    %c0_203 = arith.constant 0 : index
    %267 = vector.load %arg3[%c0_202, %c0_203] : memref<128x128xf32, #tpu.memory_space<vmem>>, vector<128x128xf32>
    %cst_204 = arith.constant dense<0.000000e+00> : vector<16x128xf32>
    %268 = tpu.matmul %264, %267, %cst_204 {dimension_numbers = #tpu.dot_dimension_numbers<[1], [0], [0], [1], [0, 0, 1, 1], [], []>, precision = #tpu.contract_precision<fp32>} : vector<16x128xf32>, vector<128x128xf32>, vector<16x128xf32> -> vector<16x128xf32>
    %269 = arith.addf %266, %268 : vector<16x128xf32>
    %c0_205 = arith.constant 0 : index
    %c0_206 = arith.constant 0 : index
    %c0_207 = arith.constant 0 : index
    %270 = vector.load %arg7[%c0_205, %c0_206, %c0_207] : memref<1x16x128xf32, #tpu.memory_space<vmem>>, vector<1x16x128xf32>
    %271 = vector.shape_cast %270 : vector<1x16x128xf32> to vector<16x128xf32>
    %272 = vector.shape_cast %269 : vector<16x128xf32> to vector<1x16x128xf32>
    tpu.vector_store %arg7[%c0_205, %c0_206, %c0_207], %272 {strides = array<i32>} : memref<1x16x128xf32, #tpu.memory_space<vmem>>, vector<1x16x128xf32>,
    %c0_i32_208 = arith.constant 0 : i32
    %273 = arith.cmpi eq, %arg1, %c0_i32_208 : i32
    %274 = arith.extui %273 : i1 to i32
    %c0_i32_209 = arith.constant 0 : i32
    %275 = arith.cmpi ne, %274, %c0_i32_209 : i32
    scf.if %275 {
      %c0_210 = arith.constant 0 : index
      %c0_211 = arith.constant 0 : index
      %c0_212 = arith.constant 0 : index
      %276 = vector.load %arg7[%c0_210, %c0_211, %c0_212] : memref<1x16x128xf32, #tpu.memory_space<vmem>>, vector<1x16x128xf32>
      %277 = vector.shape_cast %276 : vector<1x16x128xf32> to vector<16x128xf32>
      %cst_213 = arith.constant 0.104166664 : f32
      %278 = vector.broadcast %cst_213 : f32 to vector<16x128xf32>
      %279 = arith.mulf %277, %278 : vector<16x128xf32>
      %c0_214 = arith.constant 0 : index
      %c0_215 = arith.constant 0 : index
      %c0_216 = arith.constant 0 : index
      %280 = vector.load %arg7[%c0_214, %c0_215, %c0_216] : memref<1x16x128xf32, #tpu.memory_space<vmem>>, vector<1x16x128xf32>
      %281 = vector.shape_cast %280 : vector<1x16x128xf32> to vector<16x128xf32>
      %282 = vector.shape_cast %279 : vector<16x128xf32> to vector<1x16x128xf32>
      tpu.vector_store %arg7[%c0_214, %c0_215, %c0_216], %282 {strides = array<i32>} : memref<1x16x128xf32, #tpu.memory_space<vmem>>, vector<1x16x128xf32>,
    } else {
    }
    return
  }
  func.func @transform_0(%arg0: i32, %arg1: i32) -> (i32, i32) {
    %c1_i32 = arith.constant 1 : i32
    %0 = arith.muli %arg0, %c1_i32 : i32
    %1 = arith.addi %0, %arg1 : i32
    %c0_i32 = arith.constant 0 : i32
    %c0_i32_0 = arith.constant 0 : i32
    return %c0_i32, %1 : i32, i32
  }
  func.func @transform_1(%arg0: i32, %arg1: i32) -> (i32, i32) {
    %c1_i32 = arith.constant 1 : i32
    %0 = arith.muli %arg0, %c1_i32 : i32
    %1 = arith.addi %0, %arg1 : i32
    %c0_i32 = arith.constant 0 : i32
    %c0_i32_0 = arith.constant 0 : i32
    return %1, %c0_i32 : i32, i32
  }
  func.func @transform_2(%arg0: i32, %arg1: i32) -> (i32, i32) {
    %c0_i32 = arith.constant 0 : i32
    %c0_i32_0 = arith.constant 0 : i32
    %c0_i32_1 = arith.constant 0 : i32
    return %c0_i32, %c0_i32_0 : i32, i32
  }
  func.func @transform_3(%arg0: i32, %arg1: i32) -> (i32, i32) {
    %c0_i32 = arith.constant 0 : i32
    %c0_i32_0 = arith.constant 0 : i32
    %c0_i32_1 = arith.constant 0 : i32
    return %c0_i32, %c0_i32_0 : i32, i32
  }
  func.func @transform_4(%arg0: i32, %arg1: i32) -> (i32, i32) {
    %c0_i32 = arith.constant 0 : i32
    %c0_i32_0 = arith.constant 0 : i32
    %c0_i32_1 = arith.constant 0 : i32
    return %c0_i32, %c0_i32_0 : i32, i32
  }
  func.func @transform_5(%arg0: i32, %arg1: i32) -> (i32, i32, i32) {
    %c0_i32 = arith.constant 0 : i32
    %c0_i32_0 = arith.constant 0 : i32
    %c0_i32_1 = arith.constant 0 : i32
    return %arg0, %c0_i32, %c0_i32_0 : i32, i32, i32
  }
}

</mosaic_0001>

<llo_original>
// kernel: tpu_custom_call.1
$region0: #{tpu_custom_call.1}
  #allocation0 [shape = 'u32[]', space=smem, size = 0x4, offset = 0x4, fixed_abs, tag = 'smem constant byte address 0x4 - core index']
  #allocation1 [shape = 'u32[144,128]{1,0:T(1,128)}', space=vmem, size = 0x12000, scoped, tag = 'internal scratch']
  #allocation2 [shape = 'f32[32,128]{1,0:T(8,128)}', space=vmem, size = 0x4000, scoped, tag = 'scratch operand']
  %s0 = inlined_call_operand.vmem [shape: f32[128,128], index: 0, kind: input, shape index: {}]
  %s1 = inlined_call_operand.hbm [shape: f32[128,128], index: 1, kind: input, shape index: {}]
  %s2 = inlined_call_operand.vmem [shape: f32[128,32], index: 2, kind: input, shape index: {}]
  %s3 = inlined_call_operand.vmem [shape: f32[16,32], index: 3, kind: input, shape index: {}]
  %s4 = inlined_call_operand.vmem [shape: f32[16,1], index: 4, kind: input, shape index: {}]
  %s5 = inlined_call_operand.hbm [shape: f32[1,16,128], index: 5, kind: output, shape index: {}]
  %s6 = sld [smem:[#allocation0]]
  $region42: #{tpu_custom_call.1} parent=0
    _
  %s8 = ssub.s32 1, %s6
  %s9 = scalar_select 0, %s8, %s6
  $region1: #{tpu_custom_call.1} parent=0
    #allocation3 [shape = 'u8[65536]{0}', space=vmem, size = 0x10000, scoped, tag = 'input window, operand 1, single buffered']
    #allocation4 [shape = 's32[1]{0}', space=sflag, size = 0x4, scoped, tag = 'scoped memory for tpu_custom_call.1']
    #allocation5 [shape = 's32[1]{0}', space=sflag, size = 0x4, scoped, tag = 'scoped memory for tpu_custom_call.1']
    #allocation6 [shape = 'u8[8192]{0}', space=vmem, size = 0x2000, scoped, tag = 'output window, operand 0, single buffered']
    %10 = vsyncpa [#allocation4], 0
    %11 = vsyncpa [#allocation5], 0
    // Predicated region
    $region2: #{tpu_custom_call.1} parent=1 // pred_check
      _
    $region3: #{tpu_custom_call.1} parent=1 // pred_check_branch
      %13 = sbr.rel (0) target = $region5
    $region4: #{tpu_custom_call.1} parent=1 // pred_region
      %s14 = sadd.s32 0, 0
      %p15 = scmp.lt.s32.totalorder %s14, 0
      %s16 = scalar_select %p15, %s14, 0
      %s17 = smul.addr %s16, 8
      %s18 = scalar_lea.vmem %s0, %s17
      %s19 = sadd.s32 0, 0
    $region5: #{tpu_custom_call.1} parent=1 // pred_fallthru
      _
    // Predicated region
    $region6: #{tpu_custom_call.1} parent=1 // pred_check
      _
    $region7: #{tpu_custom_call.1} parent=1 // pred_check_branch
      %21 = sbr.rel (0) target = $region9
    $region8: #{tpu_custom_call.1} parent=1 // pred_region
      %s22 = sadd.s32 0, 0
      %s23 = smul.u32 16, %s22
      %s25 = ssub.s32 2048, 2048
      %26 = vsyncadd [#allocation4], %s25
      %s27 = smul.addr %s23, 128
      %s28 = scalar_lea.hbm %s1, %s27
      %s29 = sshll.u32 [#allocation3], 4
      %s30 = int_to_ptr.vmem [resolvable:$true] %s29
      %35 = dma.hbm_to_vmem [thread:$0]  %s28, 2048, %s30, [#allocation4], 128, 128, 8
    $region9: #{tpu_custom_call.1} parent=1 // pred_fallthru
      _
    // Predicated region
    $region10: #{tpu_custom_call.1} parent=1 // pred_check
      _
    $region11: #{tpu_custom_call.1} parent=1 // pred_check_branch
      %37 = sbr.rel (0) target = $region13
    $region12: #{tpu_custom_call.1} parent=1 // pred_region
      _
    $region13: #{tpu_custom_call.1} parent=1 // pred_fallthru
      _
    // Predicated region
    $region14: #{tpu_custom_call.1} parent=1 // pred_check
      _
    $region15: #{tpu_custom_call.1} parent=1 // pred_check_branch
      %39 = sbr.rel (0) target = $region17
    $region16: #{tpu_custom_call.1} parent=1 // pred_region
      _
    $region17: #{tpu_custom_call.1} parent=1 // pred_fallthru
      _
    // Predicated region
    $region18: #{tpu_custom_call.1} parent=1 // pred_check
      _
    $region19: #{tpu_custom_call.1} parent=1 // pred_check_branch
      %41 = sbr.rel (0) target = $region21
    $region20: #{tpu_custom_call.1} parent=1 // pred_region
      _
    $region21: #{tpu_custom_call.1} parent=1 // pred_fallthru
      _
    // Predicated region
    $region22: #{tpu_custom_call.1} parent=1 // pred_check
      _
    $region23: #{tpu_custom_call.1} parent=1 // pred_check_branch
      %43 = sbr.rel (0) target = $region25
    $region24: #{tpu_custom_call.1} parent=1 // pred_region
      %44 = dma.done [#allocation4], 2048
    $region25: #{tpu_custom_call.1} parent=1 // pred_fallthru
      _
    %s45 = sadd.s32 0, 0
    %p46 = scmp.lt.s32.totalorder %s45, 0
    %s47 = scalar_select %p46, %s45, 0
    %s48 = smul.addr %s47, 8
    %s49 = scalar_lea.vmem %s0, %s48
    %s50 = sadd.s32 0, 0
    %p51 = scmp.lt.s32.totalorder %s50, 0
    %s52 = scalar_select %p51, %s50, 0
    %s53 = smul.addr %s52, 8
    %s54 = scalar_lea.vmem %s0, %s53
    %s55 = sadd.s32 0, 0
    %s56 = sadd.s32 0, 0
    %s57 = smul.u32 16, %s56
    %p58 = scmp.eq.s32.totalorder 0, 0
    // Predicated region
    $region26: #{tpu_custom_call.1} parent=1 // pred_check
      %p59 = pneg %p58
    $region27: #{tpu_custom_call.1} parent=1 // pred_check_branch
      %61 = sbr.rel (%p59) target = $region29
    $region28: #{tpu_custom_call.1} parent=1 // pred_region
      %62 = vst [vmem:[#allocation6] sm:$0xff] 0.0
      %63 = vst [vmem:[#allocation6 + $0x8] sm:$0xff] 0.0
    $region29: #{tpu_custom_call.1} parent=1 // pred_fallthru
      _
    %v64 = vld [vmem:[%s2] sm:$0xff]
    %v65 = vld [vmem:[%s2 + $0x8] sm:$0xff]
    %v66 = vld [vmem:[%s2 + $0x10] sm:$0xff]
    %v67 = vld [vmem:[%s2 + $0x18] sm:$0xff]
    %v68 = vld [vmem:[%s2 + $0x20] sm:$0xff]
    %v69 = vld [vmem:[%s2 + $0x28] sm:$0xff]
    %v70 = vld [vmem:[%s2 + $0x30] sm:$0xff]
    %v71 = vld [vmem:[%s2 + $0x38] sm:$0xff]
    %v72 = vld [vmem:[%s2 + $0x40] sm:$0xff]
    %v73 = vld [vmem:[%s2 + $0x48] sm:$0xff]
    %v74 = vld [vmem:[%s2 + $0x50] sm:$0xff]
    %v75 = vld [vmem:[%s2 + $0x58] sm:$0xff]
    %v76 = vld [vmem:[%s2 + $0x60] sm:$0xff]
    %v77 = vld [vmem:[%s2 + $0x68] sm:$0xff]
    %v78 = vld [vmem:[%s2 + $0x70] sm:$0xff]
    %v79 = vld [vmem:[%s2 + $0x78] sm:$0xff]
    %81 = vset.pattern.permute.xlu0 0
    %82 = vperm.xlu0 %81, %v64
    %v83 = vpop.permute.xlu0 %82
    %86 = vset.pattern.permute.xlu0 0
    %87 = vperm.xlu0 %86, %v65
    %v88 = vpop.permute.xlu0 %87
    %91 = vset.pattern.permute.xlu0 0
    %92 = vperm.xlu0 %91, %v66
    %v93 = vpop.permute.xlu0 %92
    %96 = vset.pattern.permute.xlu0 0
    %97 = vperm.xlu0 %96, %v67
    %v98 = vpop.permute.xlu0 %97
    %101 = vset.pattern.permute.xlu0 0
    %102 = vperm.xlu0 %101, %v68
    %v103 = vpop.permute.xlu0 %102
    %106 = vset.pattern.permute.xlu0 0
    %107 = vperm.xlu0 %106, %v69
    %v108 = vpop.permute.xlu0 %107
    %111 = vset.pattern.permute.xlu0 0
    %112 = vperm.xlu0 %111, %v70
    %v113 = vpop.permute.xlu0 %112
    %116 = vset.pattern.permute.xlu0 0
    %117 = vperm.xlu0 %116, %v71
    %v118 = vpop.permute.xlu0 %117
    %121 = vset.pattern.permute.xlu0 0
    %122 = vperm.xlu0 %121, %v72
    %v123 = vpop.permute.xlu0 %122
    %126 = vset.pattern.permute.xlu0 0
    %127 = vperm.xlu0 %126, %v73
    %v128 = vpop.permute.xlu0 %127
    %131 = vset.pattern.permute.xlu0 0
    %132 = vperm.xlu0 %131, %v74
    %v133 = vpop.permute.xlu0 %132
    %136 = vset.pattern.permute.xlu0 0
    %137 = vperm.xlu0 %136, %v75
    %v138 = vpop.permute.xlu0 %137
    %141 = vset.pattern.permute.xlu0 0
    %142 = vperm.xlu0 %141, %v76
    %v143 = vpop.permute.xlu0 %142
    %146 = vset.pattern.permute.xlu0 0
    %147 = vperm.xlu0 %146, %v77
    %v148 = vpop.permute.xlu0 %147
    %151 = vset.pattern.permute.xlu0 0
    %152 = vperm.xlu0 %151, %v78
    %v153 = vpop.permute.xlu0 %152
    %156 = vset.pattern.permute.xlu0 0
    %157 = vperm.xlu0 %156, %v79
    %v158 = vpop.permute.xlu0 %157
    %v160 = vld [vmem:[%s54] sm:$0xff]
    %v161 = vld [vmem:[%s54 + $0x8] sm:$0xff]
    %v162 = vld [vmem:[%s54 + $0x10] sm:$0xff]
    %v163 = vld [vmem:[%s54 + $0x18] sm:$0xff]
    %v164 = vld [vmem:[%s54 + $0x20] sm:$0xff]
    %v165 = vld [vmem:[%s54 + $0x28] sm:$0xff]
    %v166 = vld [vmem:[%s54 + $0x30] sm:$0xff]
    %v167 = vld [vmem:[%s54 + $0x38] sm:$0xff]
    %v168 = vld [vmem:[%s54 + $0x40] sm:$0xff]
    %v169 = vld [vmem:[%s54 + $0x48] sm:$0xff]
    %v170 = vld [vmem:[%s54 + $0x50] sm:$0xff]
    %v171 = vld [vmem:[%s54 + $0x58] sm:$0xff]
    %v172 = vld [vmem:[%s54 + $0x60] sm:$0xff]
    %v173 = vld [vmem:[%s54 + $0x68] sm:$0xff]
    %v174 = vld [vmem:[%s54 + $0x70] sm:$0xff]
    %v175 = vld [vmem:[%s54 + $0x78] sm:$0xff]
    %v176 = vmul.f32 %v160, %v83
    %v177 = vmul.f32 %v161, %v88
    %v178 = vmul.f32 %v162, %v93
    %v179 = vmul.f32 %v163, %v98
    %v180 = vmul.f32 %v164, %v103
    %v181 = vmul.f32 %v165, %v108
    %v182 = vmul.f32 %v166, %v113
    %v183 = vmul.f32 %v167, %v118
    %v184 = vmul.f32 %v168, %v123
    %v185 = vmul.f32 %v169, %v128
    %v186 = vmul.f32 %v170, %v133
    %v187 = vmul.f32 %v171, %v138
    %v188 = vmul.f32 %v172, %v143
    %v189 = vmul.f32 %v173, %v148
    %v190 = vmul.f32 %v174, %v153
    %v191 = vmul.f32 %v175, %v158
    %v192 = vmax.f32 %v176, %v180
    %v193 = vmax.f32 %v177, %v181
    %v194 = vmax.f32 %v178, %v182
    %v195 = vmax.f32 %v179, %v183
    %v196 = vmax.f32 %v192, %v184
    %v197 = vmax.f32 %v193, %v185
    %v198 = vmax.f32 %v194, %v186
    %v199 = vmax.f32 %v195, %v187
    %v200 = vmax.f32 %v196, %v188
    %v201 = vmax.f32 %v197, %v189
    %v202 = vmax.f32 %v198, %v190
    %v203 = vmax.f32 %v199, %v191
    %v204 = vmax.f32 %v200, %v201
    %v205 = vmax.f32 %v202, %v203
    %v206 = vmax.f32 %v204, %v205
    %v207 = vrot.slane %v206, 4
    %v208 = vmax.f32 %v206, %v207
    %v209 = vrot.slane %v208, 2
    %v210 = vmax.f32 %v208, %v209
    %v211 = vrot.slane %v210, 1
    %v212 = vmax.f32 %v210, %v211
    %213 = vst [vmem:[#allocation2] sm:$0x1] %v212
    %v214 = vld [vmem:[%s2] sm:$0xff]
    %v215 = vld [vmem:[%s2 + $0x8] sm:$0xff]
    %v216 = vld [vmem:[%s2 + $0x10] sm:$0xff]
    %v217 = vld [vmem:[%s2 + $0x18] sm:$0xff]
    %v218 = vld [vmem:[%s2 + $0x20] sm:$0xff]
    %v219 = vld [vmem:[%s2 + $0x28] sm:$0xff]
    %v220 = vld [vmem:[%s2 + $0x30] sm:$0xff]
    %v221 = vld [vmem:[%s2 + $0x38] sm:$0xff]
    %v222 = vld [vmem:[%s2 + $0x40] sm:$0xff]
    %v223 = vld [vmem:[%s2 + $0x48] sm:$0xff]
    %v224 = vld [vmem:[%s2 + $0x50] sm:$0xff]
    %v225 = vld [vmem:[%s2 + $0x58] sm:$0xff]
    %v226 = vld [vmem:[%s2 + $0x60] sm:$0xff]
    %v227 = vld [vmem:[%s2 + $0x68] sm:$0xff]
    %v228 = vld [vmem:[%s2 + $0x70] sm:$0xff]
    %v229 = vld [vmem:[%s2 + $0x78] sm:$0xff]
    %231 = vset.pattern.permute.xlu0 1
    %232 = vperm.xlu0 %231, %v214
    %v233 = vpop.permute.xlu0 %232
    %236 = vset.pattern.permute.xlu0 1
    %237 = vperm.xlu0 %236, %v215
    %v238 = vpop.permute.xlu0 %237
    %241 = vset.pattern.permute.xlu0 1
    %242 = vperm.xlu0 %241, %v216
    %v243 = vpop.permute.xlu0 %242
    %246 = vset.pattern.permute.xlu0 1
    %247 = vperm.xlu0 %246, %v217
    %v248 = vpop.permute.xlu0 %247
    %251 = vset.pattern.permute.xlu0 1
    %252 = vperm.xlu0 %251, %v218
    %v253 = vpop.permute.xlu0 %252
    %256 = vset.pattern.permute.xlu0 1
    %257 = vperm.xlu0 %256, %v219
    %v258 = vpop.permute.xlu0 %257
    %261 = vset.pattern.permute.xlu0 1
    %262 = vperm.xlu0 %261, %v220
    %v263 = vpop.permute.xlu0 %262
    %266 = vset.pattern.permute.xlu0 1
    %267 = vperm.xlu0 %266, %v221
    %v268 = vpop.permute.xlu0 %267
    %271 = vset.pattern.permute.xlu0 1
    %272 = vperm.xlu0 %271, %v222
    %v273 = vpop.permute.xlu0 %272
    %276 = vset.pattern.permute.xlu0 1
    %277 = vperm.xlu0 %276, %v223
    %v278 = vpop.permute.xlu0 %277
    %281 = vset.pattern.permute.xlu0 1
    %282 = vperm.xlu0 %281, %v224
    %v283 = vpop.permute.xlu0 %282
    %286 = vset.pattern.permute.xlu0 1
    %287 = vperm.xlu0 %286, %v225
    %v288 = vpop.permute.xlu0 %287
    %291 = vset.pattern.permute.xlu0 1
    %292 = vperm.xlu0 %291, %v226
    %v293 = vpop.permute.xlu0 %292
    %296 = vset.pattern.permute.xlu0 1
    %297 = vperm.xlu0 %296, %v227
    %v298 = vpop.permute.xlu0 %297
    %301 = vset.pattern.permute.xlu0 1
    %302 = vperm.xlu0 %301, %v228
    %v303 = vpop.permute.xlu0 %302
    %306 = vset.pattern.permute.xlu0 1
    %307 = vperm.xlu0 %306, %v229
    %v308 = vpop.permute.xlu0 %307
    %v310 = vld [vmem:[%s54] sm:$0xff]
    %v311 = vld [vmem:[%s54 + $0x8] sm:$0xff]
    %v312 = vld [vmem:[%s54 + $0x10] sm:$0xff]
    %v313 = vld [vmem:[%s54 + $0x18] sm:$0xff]
    %v314 = vld [vmem:[%s54 + $0x20] sm:$0xff]
    %v315 = vld [vmem:[%s54 + $0x28] sm:$0xff]
    %v316 = vld [vmem:[%s54 + $0x30] sm:$0xff]
    %v317 = vld [vmem:[%s54 + $0x38] sm:$0xff]
    %v318 = vld [vmem:[%s54 + $0x40] sm:$0xff]
    %v319 = vld [vmem:[%s54 + $0x48] sm:$0xff]
    %v320 = vld [vmem:[%s54 + $0x50] sm:$0xff]
    %v321 = vld [vmem:[%s54 + $0x58] sm:$0xff]
    %v322 = vld [vmem:[%s54 + $0x60] sm:$0xff]
    %v323 = vld [vmem:[%s54 + $0x68] sm:$0xff]
    %v324 = vld [vmem:[%s54 + $0x70] sm:$0xff]
    %v325 = vld [vmem:[%s54 + $0x78] sm:$0xff]
    %v326 = vmul.f32 %v310, %v233
    %v327 = vmul.f32 %v311, %v238
    %v328 = vmul.f32 %v312, %v243
    %v329 = vmul.f32 %v313, %v248
    %v330 = vmul.f32 %v314, %v253
    %v331 = vmul.f32 %v315, %v258
    %v332 = vmul.f32 %v316, %v263
    %v333 = vmul.f32 %v317, %v268
    %v334 = vmul.f32 %v318, %v273
    %v335 = vmul.f32 %v319, %v278
    %v336 = vmul.f32 %v320, %v283
    %v337 = vmul.f32 %v321, %v288
    %v338 = vmul.f32 %v322, %v293
    %v339 = vmul.f32 %v323, %v298
    %v340 = vmul.f32 %v324, %v303
    %v341 = vmul.f32 %v325, %v308
    %v342 = vmax.f32 %v326, %v330
    %v343 = vmax.f32 %v327, %v331
    %v344 = vmax.f32 %v328, %v332
    %v345 = vmax.f32 %v329, %v333
    %v346 = vmax.f32 %v342, %v334
    %v347 = vmax.f32 %v343, %v335
    %v348 = vmax.f32 %v344, %v336
    %v349 = vmax.f32 %v345, %v337
    %v350 = vmax.f32 %v346, %v338
    %v351 = vmax.f32 %v347, %v339
    %v352 = vmax.f32 %v348, %v340
    %v353 = vmax.f32 %v349, %v341
    %v354 = vmax.f32 %v350, %v351
    %v355 = vmax.f32 %v352, %v353
    %v356 = vmax.f32 %v354, %v355
    %v357 = vrot.slane %v356, 4
    %v358 = vmax.f32 %v356, %v357
    %v359 = vrot.slane %v358, 2
    %v360 = vmax.f32 %v358, %v359
    %v361 = vrot.slane %v360, 1
    %v362 = vmax.f32 %v360, %v361
    %363 = vst [vmem:[#allocation2 + $0x1] sm:$0x1] %v362
    %v364 = vld [vmem:[%s2] sm:$0xff]
    %v365 = vld [vmem:[%s2 + $0x8] sm:$0xff]
    %v366 = vld [vmem:[%s2 + $0x10] sm:$0xff]
    %v367 = vld [vmem:[%s2 + $0x18] sm:$0xff]
    %v368 = vld [vmem:[%s2 + $0x20] sm:$0xff]
    %v369 = vld [vmem:[%s2 + $0x28] sm:$0xff]
    %v370 = vld [vmem:[%s2 + $0x30] sm:$0xff]
    %v371 = vld [vmem:[%s2 + $0x38] sm:$0xff]
    %v372 = vld [vmem:[%s2 + $0x40] sm:$0xff]
    %v373 = vld [vmem:[%s2 + $0x48] sm:$0xff]
    %v374 = vld [vmem:[%s2 + $0x50] sm:$0xff]
    %v375 = vld [vmem:[%s2 + $0x58] sm:$0xff]
    %v376 = vld [vmem:[%s2 + $0x60] sm:$0xff]
    %v377 = vld [vmem:[%s2 + $0x68] sm:$0xff]
    %v378 = vld [vmem:[%s2 + $0x70] sm:$0xff]
    %v379 = vld [vmem:[%s2 + $0x78] sm:$0xff]
    %381 = vset.pattern.permute.xlu0 2
    %382 = vperm.xlu0 %381, %v364
    %v383 = vpop.permute.xlu0 %382
    %386 = vset.pattern.permute.xlu0 2
    %387 = vperm.xlu0 %386, %v365
    %v388 = vpop.permute.xlu0 %387
    %391 = vset.pattern.permute.xlu0 2
    %392 = vperm.xlu0 %391, %v366
    %v393 = vpop.permute.xlu0 %392
    %396 = vset.pattern.permute.xlu0 2
    %397 = vperm.xlu0 %396, %v367
    %v398 = vpop.permute.xlu0 %397
    %401 = vset.pattern.permute.xlu0 2
    %402 = vperm.xlu0 %401, %v368
    %v403 = vpop.permute.xlu0 %402
    %406 = vset.pattern.permute.xlu0 2
    %407 = vperm.xlu0 %406, %v369
    %v408 = vpop.permute.xlu0 %407
    %411 = vset.pattern.permute.xlu0 2
    %412 = vperm.xlu0 %411, %v370
    %v413 = vpop.permute.xlu0 %412
    %416 = vset.pattern.permute.xlu0 2
    %417 = vperm.xlu0 %416, %v371
    %v418 = vpop.permute.xlu0 %417
    %421 = vset.pattern.permute.xlu0 2
    %422 = vperm.xlu0 %421, %v372
    %v423 = vpop.permute.xlu0 %422
    %426 = vset.pattern.permute.xlu0 2
    %427 = vperm.xlu0 %426, %v373
    %v428 = vpop.permute.xlu0 %427
    %431 = vset.pattern.permute.xlu0 2
    %432 = vperm.xlu0 %431, %v374
    %v433 = vpop.permute.xlu0 %432
    %436 = vset.pattern.permute.xlu0 2
    %437 = vperm.xlu0 %436, %v375
    %v438 = vpop.permute.xlu0 %437
    %441 = vset.pattern.permute.xlu0 2
    %442 = vperm.xlu0 %441, %v376
    %v443 = vpop.permute.xlu0 %442
    %446 = vset.pattern.permute.xlu0 2
    %447 = vperm.xlu0 %446, %v377
    %v448 = vpop.permute.xlu0 %447
    %451 = vset.pattern.permute.xlu0 2
    %452 = vperm.xlu0 %451, %v378
    %v453 = vpop.permute.xlu0 %452
    %456 = vset.pattern.permute.xlu0 2
    %457 = vperm.xlu0 %456, %v379
    %v458 = vpop.permute.xlu0 %457
    %v460 = vld [vmem:[%s54] sm:$0xff]
    %v461 = vld [vmem:[%s54 + $0x8] sm:$0xff]
    %v462 = vld [vmem:[%s54 + $0x10] sm:$0xff]
    %v463 = vld [vmem:[%s54 + $0x18] sm:$0xff]
    %v464 = vld [vmem:[%s54 + $0x20] sm:$0xff]
    %v465 = vld [vmem:[%s54 + $0x28] sm:$0xff]
    %v466 = vld [vmem:[%s54 + $0x30] sm:$0xff]
    %v467 = vld [vmem:[%s54 + $0x38] sm:$0xff]
    %v468 = vld [vmem:[%s54 + $0x40] sm:$0xff]
    %v469 = vld [vmem:[%s54 + $0x48] sm:$0xff]
    %v470 = vld [vmem:[%s54 + $0x50] sm:$0xff]
    %v471 = vld [vmem:[%s54 + $0x58] sm:$0xff]
    %v472 = vld [vmem:[%s54 + $0x60] sm:$0xff]
    %v473 = vld [vmem:[%s54 + $0x68] sm:$0xff]
    %v474 = vld [vmem:[%s54 + $0x70] sm:$0xff]
    %v475 = vld [vmem:[%s54 + $0x78] sm:$0xff]
    %v476 = vmul.f32 %v460, %v383
    %v477 = vmul.f32 %v461, %v388
    %v478 = vmul.f32 %v462, %v393
    %v479 = vmul.f32 %v463, %v398
    %v480 = vmul.f32 %v464, %v403
    %v481 = vmul.f32 %v465, %v408
    %v482 = vmul.f32 %v466, %v413
    %v483 = vmul.f32 %v467, %v418
    %v484 = vmul.f32 %v468, %v423
    %v485 = vmul.f32 %v469, %v428
    %v486 = vmul.f32 %v470, %v433
    %v487 = vmul.f32 %v471, %v438
    %v488 = vmul.f32 %v472, %v443
    %v489 = vmul.f32 %v473, %v448
    %v490 = vmul.f32 %v474, %v453
    %v491 = vmul.f32 %v475, %v458
    %v492 = vmax.f32 %v476, %v480
    %v493 = vmax.f32 %v477, %v481
    %v494 = vmax.f32 %v478, %v482
    %v495 = vmax.f32 %v479, %v483
    %v496 = vmax.f32 %v492, %v484
    %v497 = vmax.f32 %v493, %v485
    %v498 = vmax.f32 %v494, %v486
    %v499 = vmax.f32 %v495, %v487
    %v500 = vmax.f32 %v496, %v488
    %v501 = vmax.f32 %v497, %v489
    %v502 = vmax.f32 %v498, %v490
    %v503 = vmax.f32 %v499, %v491
    %v504 = vmax.f32 %v500, %v501
    %v505 = vmax.f32 %v502, %v503
    %v506 = vmax.f32 %v504, %v505
    %v507 = vrot.slane %v506, 4
    %v508 = vmax.f32 %v506, %v507
    %v509 = vrot.slane %v508, 2
    %v510 = vmax.f32 %v508, %v509
    %v511 = vrot.slane %v510, 1
    %v512 = vmax.f32 %v510, %v511
    %513 = vst [vmem:[#allocation2 + $0x2] sm:$0x1] %v512
    %v514 = vld [vmem:[%s2] sm:$0xff]
    %v515 = vld [vmem:[%s2 + $0x8] sm:$0xff]
    %v516 = vld [vmem:[%s2 + $0x10] sm:$0xff]
    %v517 = vld [vmem:[%s2 + $0x18] sm:$0xff]
    %v518 = vld [vmem:[%s2 + $0x20] sm:$0xff]
    %v519 = vld [vmem:[%s2 + $0x28] sm:$0xff]
    %v520 = vld [vmem:[%s2 + $0x30] sm:$0xff]
    %v521 = vld [vmem:[%s2 + $0x38] sm:$0xff]
    %v522 = vld [vmem:[%s2 + $0x40] sm:$0xff]
    %v523 = vld [vmem:[%s2 + $0x48] sm:$0xff]
    %v524 = vld [vmem:[%s2 + $0x50] sm:$0xff]
    %v525 = vld [vmem:[%s2 + $0x58] sm:$0xff]
    %v526 = vld [vmem:[%s2 + $0x60] sm:$0xff]
    %v527 = vld [vmem:[%s2 + $0x68] sm:$0xff]
    %v528 = vld [vmem:[%s2 + $0x70] sm:$0xff]
    %v529 = vld [vmem:[%s2 + $0x78] sm:$0xff]
    %531 = vset.pattern.permute.xlu0 3
    %532 = vperm.xlu0 %531, %v514
    %v533 = vpop.permute.xlu0 %532
    %536 = vset.pattern.permute.xlu0 3
    %537 = vperm.xlu0 %536, %v515
    %v538 = vpop.permute.xlu0 %537
    %541 = vset.pattern.permute.xlu0 3
    %542 = vperm.xlu0 %541, %v516
    %v543 = vpop.permute.xlu0 %542
    %546 = vset.pattern.permute.xlu0 3
    %547 = vperm.xlu0 %546, %v517
    %v548 = vpop.permute.xlu0 %547
    %551 = vset.pattern.permute.xlu0 3
    %552 = vperm.xlu0 %551, %v518
    %v553 = vpop.permute.xlu0 %552
    %556 = vset.pattern.permute.xlu0 3
    %557 = vperm.xlu0 %556, %v519
    %v558 = vpop.permute.xlu0 %557
    %561 = vset.pattern.permute.xlu0 3
    %562 = vperm.xlu0 %561, %v520
    %v563 = vpop.permute.xlu0 %562
    %566 = vset.pattern.permute.xlu0 3
    %567 = vperm.xlu0 %566, %v521
    %v568 = vpop.permute.xlu0 %567
    %571 = vset.pattern.permute.xlu0 3
    %572 = vperm.xlu0 %571, %v522
    %v573 = vpop.permute.xlu0 %572
    %576 = vset.pattern.permute.xlu0 3
    %577 = vperm.xlu0 %576, %v523
    %v578 = vpop.permute.xlu0 %577
    %581 = vset.pattern.permute.xlu0 3
    %582 = vperm.xlu0 %581, %v524
    %v583 = vpop.permute.xlu0 %582
    %586 = vset.pattern.permute.xlu0 3
    %587 = vperm.xlu0 %586, %v525
    %v588 = vpop.permute.xlu0 %587
    %591 = vset.pattern.permute.xlu0 3
    %592 = vperm.xlu0 %591, %v526
    %v593 = vpop.permute.xlu0 %592
    %596 = vset.pattern.permute.xlu0 3
    %597 = vperm.xlu0 %596, %v527
    %v598 = vpop.permute.xlu0 %597
    %601 = vset.pattern.permute.xlu0 3
    %602 = vperm.xlu0 %601, %v528
    %v603 = vpop.permute.xlu0 %602
    %606 = vset.pattern.permute.xlu0 3
    %607 = vperm.xlu0 %606, %v529
    %v608 = vpop.permute.xlu0 %607
    %v610 = vld [vmem:[%s54] sm:$0xff]
    %v611 = vld [vmem:[%s54 + $0x8] sm:$0xff]
    %v612 = vld [vmem:[%s54 + $0x10] sm:$0xff]
    %v613 = vld [vmem:[%s54 + $0x18] sm:$0xff]
    %v614 = vld [vmem:[%s54 + $0x20] sm:$0xff]
    %v615 = vld [vmem:[%s54 + $0x28] sm:$0xff]
    %v616 = vld [vmem:[%s54 + $0x30] sm:$0xff]
    %v617 = vld [vmem:[%s54 + $0x38] sm:$0xff]
    %v618 = vld [vmem:[%s54 + $0x40] sm:$0xff]
    %v619 = vld [vmem:[%s54 + $0x48] sm:$0xff]
    %v620 = vld [vmem:[%s54 + $0x50] sm:$0xff]
    %v621 = vld [vmem:[%s54 + $0x58] sm:$0xff]
    %v622 = vld [vmem:[%s54 + $0x60] sm:$0xff]
    %v623 = vld [vmem:[%s54 + $0x68] sm:$0xff]
    %v624 = vld [vmem:[%s54 + $0x70] sm:$0xff]
    %v625 = vld [vmem:[%s54 + $0x78] sm:$0xff]
    %v626 = vmul.f32 %v610, %v533
    %v627 = vmul.f32 %v611, %v538
    %v628 = vmul.f32 %v612, %v543
    %v629 = vmul.f32 %v613, %v548
    %v630 = vmul.f32 %v614, %v553
    %v631 = vmul.f32 %v615, %v558
    %v632 = vmul.f32 %v616, %v563
    %v633 = vmul.f32 %v617, %v568
    %v634 = vmul.f32 %v618, %v573
    %v635 = vmul.f32 %v619, %v578
    %v636 = vmul.f32 %v620, %v583
    %v637 = vmul.f32 %v621, %v588
    %v638 = vmul.f32 %v622, %v593
    %v639 = vmul.f32 %v623, %v598
    %v640 = vmul.f32 %v624, %v603
    %v641 = vmul.f32 %v625, %v608
    %v642 = vmax.f32 %v626, %v630
    %v643 = vmax.f32 %v627, %v631
    %v644 = vmax.f32 %v628, %v632
    %v645 = vmax.f32 %v629, %v633
    %v646 = vmax.f32 %v642, %v634
    %v647 = vmax.f32 %v643, %v635
    %v648 = vmax.f32 %v644, %v636
    %v649 = vmax.f32 %v645, %v637
    %v650 = vmax.f32 %v646, %v638
    %v651 = vmax.f32 %v647, %v639
    %v652 = vmax.f32 %v648, %v640
    %v653 = vmax.f32 %v649, %v641
    %v654 = vmax.f32 %v650, %v651
    %v655 = vmax.f32 %v652, %v653
    %v656 = vmax.f32 %v654, %v655
    %v657 = vrot.slane %v656, 4
    %v658 = vmax.f32 %v656, %v657
    %v659 = vrot.slane %v658, 2
    %v660 = vmax.f32 %v658, %v659
    %v661 = vrot.slane %v660, 1
    %v662 = vmax.f32 %v660, %v661
    %663 = vst [vmem:[#allocation2 + $0x3] sm:$0x1] %v662
    %v664 = vld [vmem:[%s2] sm:$0xff]
    %v665 = vld [vmem:[%s2 + $0x8] sm:$0xff]
    %v666 = vld [vmem:[%s2 + $0x10] sm:$0xff]
    %v667 = vld [vmem:[%s2 + $0x18] sm:$0xff]
    %v668 = vld [vmem:[%s2 + $0x20] sm:$0xff]
    %v669 = vld [vmem:[%s2 + $0x28] sm:$0xff]
    %v670 = vld [vmem:[%s2 + $0x30] sm:$0xff]
    %v671 = vld [vmem:[%s2 + $0x38] sm:$0xff]
    %v672 = vld [vmem:[%s2 + $0x40] sm:$0xff]
    %v673 = vld [vmem:[%s2 + $0x48] sm:$0xff]
    %v674 = vld [vmem:[%s2 + $0x50] sm:$0xff]
    %v675 = vld [vmem:[%s2 + $0x58] sm:$0xff]
    %v676 = vld [vmem:[%s2 + $0x60] sm:$0xff]
    %v677 = vld [vmem:[%s2 + $0x68] sm:$0xff]
    %v678 = vld [vmem:[%s2 + $0x70] sm:$0xff]
    %v679 = vld [vmem:[%s2 + $0x78] sm:$0xff]
    %681 = vset.pattern.permute.xlu0 4
    %682 = vperm.xlu0 %681, %v664
    %v683 = vpop.permute.xlu0 %682
    %686 = vset.pattern.permute.xlu0 4
    %687 = vperm.xlu0 %686, %v665
    %v688 = vpop.permute.xlu0 %687
    %691 = vset.pattern.permute.xlu0 4
    %692 = vperm.xlu0 %691, %v666
    %v693 = vpop.permute.xlu0 %692
    %696 = vset.pattern.permute.xlu0 4
    %697 = vperm.xlu0 %696, %v667
    %v698 = vpop.permute.xlu0 %697
    %701 = vset.pattern.permute.xlu0 4
    %702 = vperm.xlu0 %701, %v668
    %v703 = vpop.permute.xlu0 %702
    %706 = vset.pattern.permute.xlu0 4
    %707 = vperm.xlu0 %706, %v669
    %v708 = vpop.permute.xlu0 %707
    %711 = vset.pattern.permute.xlu0 4
    %712 = vperm.xlu0 %711, %v670
    %v713 = vpop.permute.xlu0 %712
    %716 = vset.pattern.permute.xlu0 4
    %717 = vperm.xlu0 %716, %v671
    %v718 = vpop.permute.xlu0 %717
    %721 = vset.pattern.permute.xlu0 4
    %722 = vperm.xlu0 %721, %v672
    %v723 = vpop.permute.xlu0 %722
    %726 = vset.pattern.permute.xlu0 4
    %727 = vperm.xlu0 %726, %v673
    %v728 = vpop.permute.xlu0 %727
    %731 = vset.pattern.permute.xlu0 4
    %732 = vperm.xlu0 %731, %v674
    %v733 = vpop.permute.xlu0 %732
    %736 = vset.pattern.permute.xlu0 4
    %737 = vperm.xlu0 %736, %v675
    %v738 = vpop.permute.xlu0 %737
    %741 = vset.pattern.permute.xlu0 4
    %742 = vperm.xlu0 %741, %v676
    %v743 = vpop.permute.xlu0 %742
    %746 = vset.pattern.permute.xlu0 4
    %747 = vperm.xlu0 %746, %v677
    %v748 = vpop.permute.xlu0 %747
    %751 = vset.pattern.permute.xlu0 4
    %752 = vperm.xlu0 %751, %v678
    %v753 = vpop.permute.xlu0 %752
    %756 = vset.pattern.permute.xlu0 4
    %757 = vperm.xlu0 %756, %v679
    %v758 = vpop.permute.xlu0 %757
    %v760 = vld [vmem:[%s54] sm:$0xff]
    %v761 = vld [vmem:[%s54 + $0x8] sm:$0xff]
    %v762 = vld [vmem:[%s54 + $0x10] sm:$0xff]
    %v763 = vld [vmem:[%s54 + $0x18] sm:$0xff]
    %v764 = vld [vmem:[%s54 + $0x20] sm:$0xff]
    %v765 = vld [vmem:[%s54 + $0x28] sm:$0xff]
    %v766 = vld [vmem:[%s54 + $0x30] sm:$0xff]
    %v767 = vld [vmem:[%s54 + $0x38] sm:$0xff]
    %v768 = vld [vmem:[%s54 + $0x40] sm:$0xff]
    %v769 = vld [vmem:[%s54 + $0x48] sm:$0xff]
    %v770 = vld [vmem:[%s54 + $0x50] sm:$0xff]
    %v771 = vld [vmem:[%s54 + $0x58] sm:$0xff]
    %v772 = vld [vmem:[%s54 + $0x60] sm:$0xff]
    %v773 = vld [vmem:[%s54 + $0x68] sm:$0xff]
    %v774 = vld [vmem:[%s54 + $0x70] sm:$0xff]
    %v775 = vld [vmem:[%s54 + $0x78] sm:$0xff]
    %v776 = vmul.f32 %v760, %v683
    %v777 = vmul.f32 %v761, %v688
    %v778 = vmul.f32 %v762, %v693
    %v779 = vmul.f32 %v763, %v698
    %v780 = vmul.f32 %v764, %v703
    %v781 = vmul.f32 %v765, %v708
    %v782 = vmul.f32 %v766, %v713
    %v783 = vmul.f32 %v767, %v718
    %v784 = vmul.f32 %v768, %v723
    %v785 = vmul.f32 %v769, %v728
    %v786 = vmul.f32 %v770, %v733
    %v787 = vmul.f32 %v771, %v738
    %v788 = vmul.f32 %v772, %v743
    %v789 = vmul.f32 %v773, %v748
    %v790 = vmul.f32 %v774, %v753
    %v791 = vmul.f32 %v775, %v758
    %v792 = vmax.f32 %v776, %v780
    %v793 = vmax.f32 %v777, %v781
    %v794 = vmax.f32 %v778, %v782
    %v795 = vmax.f32 %v779, %v783
    %v796 = vmax.f32 %v792, %v784
    %v797 = vmax.f32 %v793, %v785
    %v798 = vmax.f32 %v794, %v786
    %v799 = vmax.f32 %v795, %v787
    %v800 = vmax.f32 %v796, %v788
    %v801 = vmax.f32 %v797, %v789
    %v802 = vmax.f32 %v798, %v790
    %v803 = vmax.f32 %v799, %v791
    %v804 = vmax.f32 %v800, %v801
    %v805 = vmax.f32 %v802, %v803
    %v806 = vmax.f32 %v804, %v805
    %v807 = vrot.slane %v806, 4
    %v808 = vmax.f32 %v806, %v807
    %v809 = vrot.slane %v808, 2
    %v810 = vmax.f32 %v808, %v809
    %v811 = vrot.slane %v810, 1
    %v812 = vmax.f32 %v810, %v811
    %813 = vst [vmem:[#allocation2 + $0x4] sm:$0x1] %v812
    %v814 = vld [vmem:[%s2] sm:$0xff]
    %v815 = vld [vmem:[%s2 + $0x8] sm:$0xff]
    %v816 = vld [vmem:[%s2 + $0x10] sm:$0xff]
    %v817 = vld [vmem:[%s2 + $0x18] sm:$0xff]
    %v818 = vld [vmem:[%s2 + $0x20] sm:$0xff]
    %v819 = vld [vmem:[%s2 + $0x28] sm:$0xff]
    %v820 = vld [vmem:[%s2 + $0x30] sm:$0xff]
    %v821 = vld [vmem:[%s2 + $0x38] sm:$0xff]
    %v822 = vld [vmem:[%s2 + $0x40] sm:$0xff]
    %v823 = vld [vmem:[%s2 + $0x48] sm:$0xff]
    %v824 = vld [vmem:[%s2 + $0x50] sm:$0xff]
    %v825 = vld [vmem:[%s2 + $0x58] sm:$0xff]
    %v826 = vld [vmem:[%s2 + $0x60] sm:$0xff]
    %v827 = vld [vmem:[%s2 + $0x68] sm:$0xff]
    %v828 = vld [vmem:[%s2 + $0x70] sm:$0xff]
    %v829 = vld [vmem:[%s2 + $0x78] sm:$0xff]
    %831 = vset.pattern.permute.xlu0 5
    %832 = vperm.xlu0 %831, %v814
    %v833 = vpop.permute.xlu0 %832
    %836 = vset.pattern.permute.xlu0 5
    %837 = vperm.xlu0 %836, %v815
    %v838 = vpop.permute.xlu0 %837
    %841 = vset.pattern.permute.xlu0 5
    %842 = vperm.xlu0 %841, %v816
    %v843 = vpop.permute.xlu0 %842
    %846 = vset.pattern.permute.xlu0 5
    %847 = vperm.xlu0 %846, %v817
    %v848 = vpop.permute.xlu0 %847
    %851 = vset.pattern.permute.xlu0 5
    %852 = vperm.xlu0 %851, %v818
    %v853 = vpop.permute.xlu0 %852
    %856 = vset.pattern.permute.xlu0 5
    %857 = vperm.xlu0 %856, %v819
    %v858 = vpop.permute.xlu0 %857
    %861 = vset.pattern.permute.xlu0 5
    %862 = vperm.xlu0 %861, %v820
    %v863 = vpop.permute.xlu0 %862
    %866 = vset.pattern.permute.xlu0 5
    %867 = vperm.xlu0 %866, %v821
    %v868 = vpop.permute.xlu0 %867
    %871 = vset.pattern.permute.xlu0 5
    %872 = vperm.xlu0 %871, %v822
    %v873 = vpop.permute.xlu0 %872
    %876 = vset.pattern.permute.xlu0 5
    %877 = vperm.xlu0 %876, %v823
    %v878 = vpop.permute.xlu0 %877
    %881 = vset.pattern.permute.xlu0 5
    %882 = vperm.xlu0 %881, %v824
    %v883 = vpop.permute.xlu0 %882
    %886 = vset.pattern.permute.xlu0 5
    %887 = vperm.xlu0 %886, %v825
    %v888 = vpop.permute.xlu0 %887
    %891 = vset.pattern.permute.xlu0 5
    %892 = vperm.xlu0 %891, %v826
    %v893 = vpop.permute.xlu0 %892
    %896 = vset.pattern.permute.xlu0 5
    %897 = vperm.xlu0 %896, %v827
    %v898 = vpop.permute.xlu0 %897
    %901 = vset.pattern.permute.xlu0 5
    %902 = vperm.xlu0 %901, %v828
    %v903 = vpop.permute.xlu0 %902
    %906 = vset.pattern.permute.xlu0 5
    %907 = vperm.xlu0 %906, %v829
    %v908 = vpop.permute.xlu0 %907
    %v910 = vld [vmem:[%s54] sm:$0xff]
    %v911 = vld [vmem:[%s54 + $0x8] sm:$0xff]
    %v912 = vld [vmem:[%s54 + $0x10] sm:$0xff]
    %v913 = vld [vmem:[%s54 + $0x18] sm:$0xff]
    %v914 = vld [vmem:[%s54 + $0x20] sm:$0xff]
    %v915 = vld [vmem:[%s54 + $0x28] sm:$0xff]
    %v916 = vld [vmem:[%s54 + $0x30] sm:$0xff]
    %v917 = vld [vmem:[%s54 + $0x38] sm:$0xff]
    %v918 = vld [vmem:[%s54 + $0x40] sm:$0xff]
    %v919 = vld [vmem:[%s54 + $0x48] sm:$0xff]
    %v920 = vld [vmem:[%s54 + $0x50] sm:$0xff]
    %v921 = vld [vmem:[%s54 + $0x58] sm:$0xff]
    %v922 = vld [vmem:[%s54 + $0x60] sm:$0xff]
    %v923 = vld [vmem:[%s54 + $0x68] sm:$0xff]
    %v924 = vld [vmem:[%s54 + $0x70] sm:$0xff]
    %v925 = vld [vmem:[%s54 + $0x78] sm:$0xff]
    %v926 = vmul.f32 %v910, %v833
    %v927 = vmul.f32 %v911, %v838
    %v928 = vmul.f32 %v912, %v843
    %v929 = vmul.f32 %v913, %v848
    %v930 = vmul.f32 %v914, %v853
    %v931 = vmul.f32 %v915, %v858
    %v932 = vmul.f32 %v916, %v863
    %v933 = vmul.f32 %v917, %v868
    %v934 = vmul.f32 %v918, %v873
    %v935 = vmul.f32 %v919, %v878
    %v936 = vmul.f32 %v920, %v883
    %v937 = vmul.f32 %v921, %v888
    %v938 = vmul.f32 %v922, %v893
    %v939 = vmul.f32 %v923, %v898
    %v940 = vmul.f32 %v924, %v903
    %v941 = vmul.f32 %v925, %v908
    %v942 = vmax.f32 %v926, %v930
    %v943 = vmax.f32 %v927, %v931
    %v944 = vmax.f32 %v928, %v932
    %v945 = vmax.f32 %v929, %v933
    %v946 = vmax.f32 %v942, %v934
    %v947 = vmax.f32 %v943, %v935
    %v948 = vmax.f32 %v944, %v936
    %v949 = vmax.f32 %v945, %v937
    %v950 = vmax.f32 %v946, %v938
    %v951 = vmax.f32 %v947, %v939
    %v952 = vmax.f32 %v948, %v940
    %v953 = vmax.f32 %v949, %v941
    %v954 = vmax.f32 %v950, %v951
    %v955 = vmax.f32 %v952, %v953
    %v956 = vmax.f32 %v954, %v955
    %v957 = vrot.slane %v956, 4
    %v958 = vmax.f32 %v956, %v957
    %v959 = vrot.slane %v958, 2
    %v960 = vmax.f32 %v958, %v959
    %v961 = vrot.slane %v960, 1
    %v962 = vmax.f32 %v960, %v961
    %963 = vst [vmem:[#allocation2 + $0x5] sm:$0x1] %v962
    %v964 = vld [vmem:[%s2] sm:$0xff]
    %v965 = vld [vmem:[%s2 + $0x8] sm:$0xff]
    %v966 = vld [vmem:[%s2 + $0x10] sm:$0xff]
    %v967 = vld [vmem:[%s2 + $0x18] sm:$0xff]
    %v968 = vld [vmem:[%s2 + $0x20] sm:$0xff]
    %v969 = vld [vmem:[%s2 + $0x28] sm:$0xff]
    %v970 = vld [vmem:[%s2 + $0x30] sm:$0xff]
    %v971 = vld [vmem:[%s2 + $0x38] sm:$0xff]
    %v972 = vld [vmem:[%s2 + $0x40] sm:$0xff]
    %v973 = vld [vmem:[%s2 + $0x48] sm:$0xff]
    %v974 = vld [vmem:[%s2 + $0x50] sm:$0xff]
    %v975 = vld [vmem:[%s2 + $0x58] sm:$0xff]
    %v976 = vld [vmem:[%s2 + $0x60] sm:$0xff]
    %v977 = vld [vmem:[%s2 + $0x68] sm:$0xff]
    %v978 = vld [vmem:[%s2 + $0x70] sm:$0xff]
    %v979 = vld [vmem:[%s2 + $0x78] sm:$0xff]
    %981 = vset.pattern.permute.xlu0 6
    %982 = vperm.xlu0 %981, %v964
    %v983 = vpop.permute.xlu0 %982
    %986 = vset.pattern.permute.xlu0 6
    %987 = vperm.xlu0 %986, %v965
    %v988 = vpop.permute.xlu0 %987
    %991 = vset.pattern.permute.xlu0 6
    %992 = vperm.xlu0 %991, %v966
    %v993 = vpop.permute.xlu0 %992
    %996 = vset.pattern.permute.xlu0 6
    %997 = vperm.xlu0 %996, %v967
    %v998 = vpop.permute.xlu0 %997
    %1001 = vset.pattern.permute.xlu0 6
    %1002 = vperm.xlu0 %1001, %v968
    %v1003 = vpop.permute.xlu0 %1002
    %1006 = vset.pattern.permute.xlu0 6
    %1007 = vperm.xlu0 %1006, %v969
    %v1008 = vpop.permute.xlu0 %1007
    %1011 = vset.pattern.permute.xlu0 6
    %1012 = vperm.xlu0 %1011, %v970
    %v1013 = vpop.permute.xlu0 %1012
    %1016 = vset.pattern.permute.xlu0 6
    %1017 = vperm.xlu0 %1016, %v971
    %v1018 = vpop.permute.xlu0 %1017
    %1021 = vset.pattern.permute.xlu0 6
    %1022 = vperm.xlu0 %1021, %v972
    %v1023 = vpop.permute.xlu0 %1022
    %1026 = vset.pattern.permute.xlu0 6
    %1027 = vperm.xlu0 %1026, %v973
    %v1028 = vpop.permute.xlu0 %1027
    %1031 = vset.pattern.permute.xlu0 6
    %1032 = vperm.xlu0 %1031, %v974
    %v1033 = vpop.permute.xlu0 %1032
    %1036 = vset.pattern.permute.xlu0 6
    %1037 = vperm.xlu0 %1036, %v975
    %v1038 = vpop.permute.xlu0 %1037
    %1041 = vset.pattern.permute.xlu0 6
    %1042 = vperm.xlu0 %1041, %v976
    %v1043 = vpop.permute.xlu0 %1042
    %1046 = vset.pattern.permute.xlu0 6
    %1047 = vperm.xlu0 %1046, %v977
    %v1048 = vpop.permute.xlu0 %1047
    %1051 = vset.pattern.permute.xlu0 6
    %1052 = vperm.xlu0 %1051, %v978
    %v1053 = vpop.permute.xlu0 %1052
    %1056 = vset.pattern.permute.xlu0 6
    %1057 = vperm.xlu0 %1056, %v979
    %v1058 = vpop.permute.xlu0 %1057
    %v1060 = vld [vmem:[%s54] sm:$0xff]
    %v1061 = vld [vmem:[%s54 + $0x8] sm:$0xff]
    %v1062 = vld [vmem:[%s54 + $0x10] sm:$0xff]
    %v1063 = vld [vmem:[%s54 + $0x18] sm:$0xff]
    %v1064 = vld [vmem:[%s54 + $0x20] sm:$0xff]
    %v1065 = vld [vmem:[%s54 + $0x28] sm:$0xff]
    %v1066 = vld [vmem:[%s54 + $0x30] sm:$0xff]
    %v1067 = vld [vmem:[%s54 + $0x38] sm:$0xff]
    %v1068 = vld [vmem:[%s54 + $0x40] sm:$0xff]
    %v1069 = vld [vmem:[%s54 + $0x48] sm:$0xff]
    %v1070 = vld [vmem:[%s54 + $0x50] sm:$0xff]
    %v1071 = vld [vmem:[%s54 + $0x58] sm:$0xff]
    %v1072 = vld [vmem:[%s54 + $0x60] sm:$0xff]
    %v1073 = vld [vmem:[%s54 + $0x68] sm:$0xff]
    %v1074 = vld [vmem:[%s54 + $0x70] sm:$0xff]
    %v1075 = vld [vmem:[%s54 + $0x78] sm:$0xff]
    %v1076 = vmul.f32 %v1060, %v983
    %v1077 = vmul.f32 %v1061, %v988
    %v1078 = vmul.f32 %v1062, %v993
    %v1079 = vmul.f32 %v1063, %v998
    %v1080 = vmul.f32 %v1064, %v1003
    %v1081 = vmul.f32 %v1065, %v1008
    %v1082 = vmul.f32 %v1066, %v1013
    %v1083 = vmul.f32 %v1067, %v1018
    %v1084 = vmul.f32 %v1068, %v1023
    %v1085 = vmul.f32 %v1069, %v1028
    %v1086 = vmul.f32 %v1070, %v1033
    %v1087 = vmul.f32 %v1071, %v1038
    %v1088 = vmul.f32 %v1072, %v1043
    %v1089 = vmul.f32 %v1073, %v1048
    %v1090 = vmul.f32 %v1074, %v1053
    %v1091 = vmul.f32 %v1075, %v1058
    %v1092 = vmax.f32 %v1076, %v1080
    %v1093 = vmax.f32 %v1077, %v1081
    %v1094 = vmax.f32 %v1078, %v1082
    %v1095 = vmax.f32 %v1079, %v1083
    %v1096 = vmax.f32 %v1092, %v1084
    %v1097 = vmax.f32 %v1093, %v1085
    %v1098 = vmax.f32 %v1094, %v1086
    %v1099 = vmax.f32 %v1095, %v1087
    %v1100 = vmax.f32 %v1096, %v1088
    %v1101 = vmax.f32 %v1097, %v1089
    %v1102 = vmax.f32 %v1098, %v1090
    %v1103 = vmax.f32 %v1099, %v1091
    %v1104 = vmax.f32 %v1100, %v1101
    %v1105 = vmax.f32 %v1102, %v1103
    %v1106 = vmax.f32 %v1104, %v1105
    %v1107 = vrot.slane %v1106, 4
    %v1108 = vmax.f32 %v1106, %v1107
    %v1109 = vrot.slane %v1108, 2
    %v1110 = vmax.f32 %v1108, %v1109
    %v1111 = vrot.slane %v1110, 1
    %v1112 = vmax.f32 %v1110, %v1111
    %1113 = vst [vmem:[#allocation2 + $0x6] sm:$0x1] %v1112
    %v1114 = vld [vmem:[%s2] sm:$0xff]
    %v1115 = vld [vmem:[%s2 + $0x8] sm:$0xff]
    %v1116 = vld [vmem:[%s2 + $0x10] sm:$0xff]
    %v1117 = vld [vmem:[%s2 + $0x18] sm:$0xff]
    %v1118 = vld [vmem:[%s2 + $0x20] sm:$0xff]
    %v1119 = vld [vmem:[%s2 + $0x28] sm:$0xff]
    %v1120 = vld [vmem:[%s2 + $0x30] sm:$0xff]
    %v1121 = vld [vmem:[%s2 + $0x38] sm:$0xff]
    %v1122 = vld [vmem:[%s2 + $0x40] sm:$0xff]
    %v1123 = vld [vmem:[%s2 + $0x48] sm:$0xff]
    %v1124 = vld [vmem:[%s2 + $0x50] sm:$0xff]
    %v1125 = vld [vmem:[%s2 + $0x58] sm:$0xff]
    %v1126 = vld [vmem:[%s2 + $0x60] sm:$0xff]
    %v1127 = vld [vmem:[%s2 + $0x68] sm:$0xff]
    %v1128 = vld [vmem:[%s2 + $0x70] sm:$0xff]
    %v1129 = vld [vmem:[%s2 + $0x78] sm:$0xff]
    %1131 = vset.pattern.permute.xlu0 7
    %1132 = vperm.xlu0 %1131, %v1114
    %v1133 = vpop.permute.xlu0 %1132
    %1136 = vset.pattern.permute.xlu0 7
    %1137 = vperm.xlu0 %1136, %v1115
    %v1138 = vpop.permute.xlu0 %1137
    %1141 = vset.pattern.permute.xlu0 7
    %1142 = vperm.xlu0 %1141, %v1116
    %v1143 = vpop.permute.xlu0 %1142
    %1146 = vset.pattern.permute.xlu0 7
    %1147 = vperm.xlu0 %1146, %v1117
    %v1148 = vpop.permute.xlu0 %1147
    %1151 = vset.pattern.permute.xlu0 7
    %1152 = vperm.xlu0 %1151, %v1118
    %v1153 = vpop.permute.xlu0 %1152
    %1156 = vset.pattern.permute.xlu0 7
    %1157 = vperm.xlu0 %1156, %v1119
    %v1158 = vpop.permute.xlu0 %1157
    %1161 = vset.pattern.permute.xlu0 7
    %1162 = vperm.xlu0 %1161, %v1120
    %v1163 = vpop.permute.xlu0 %1162
    %1166 = vset.pattern.permute.xlu0 7
    %1167 = vperm.xlu0 %1166, %v1121
    %v1168 = vpop.permute.xlu0 %1167
    %1171 = vset.pattern.permute.xlu0 7
    %1172 = vperm.xlu0 %1171, %v1122
    %v1173 = vpop.permute.xlu0 %1172
    %1176 = vset.pattern.permute.xlu0 7
    %1177 = vperm.xlu0 %1176, %v1123
    %v1178 = vpop.permute.xlu0 %1177
    %1181 = vset.pattern.permute.xlu0 7
    %1182 = vperm.xlu0 %1181, %v1124
    %v1183 = vpop.permute.xlu0 %1182
    %1186 = vset.pattern.permute.xlu0 7
    %1187 = vperm.xlu0 %1186, %v1125
    %v1188 = vpop.permute.xlu0 %1187
    %1191 = vset.pattern.permute.xlu0 7
    %1192 = vperm.xlu0 %1191, %v1126
    %v1193 = vpop.permute.xlu0 %1192
    %1196 = vset.pattern.permute.xlu0 7
    %1197 = vperm.xlu0 %1196, %v1127
    %v1198 = vpop.permute.xlu0 %1197
    %1201 = vset.pattern.permute.xlu0 7
    %1202 = vperm.xlu0 %1201, %v1128
    %v1203 = vpop.permute.xlu0 %1202
    %1206 = vset.pattern.permute.xlu0 7
    %1207 = vperm.xlu0 %1206, %v1129
    %v1208 = vpop.permute.xlu0 %1207
    %v1210 = vld [vmem:[%s54] sm:$0xff]
    %v1211 = vld [vmem:[%s54 + $0x8] sm:$0xff]
    %v1212 = vld [vmem:[%s54 + $0x10] sm:$0xff]
    %v1213 = vld [vmem:[%s54 + $0x18] sm:$0xff]
    %v1214 = vld [vmem:[%s54 + $0x20] sm:$0xff]
    %v1215 = vld [vmem:[%s54 + $0x28] sm:$0xff]
    %v1216 = vld [vmem:[%s54 + $0x30] sm:$0xff]
    %v1217 = vld [vmem:[%s54 + $0x38] sm:$0xff]
    %v1218 = vld [vmem:[%s54 + $0x40] sm:$0xff]
    %v1219 = vld [vmem:[%s54 + $0x48] sm:$0xff]
    %v1220 = vld [vmem:[%s54 + $0x50] sm:$0xff]
    %v1221 = vld [vmem:[%s54 + $0x58] sm:$0xff]
    %v1222 = vld [vmem:[%s54 + $0x60] sm:$0xff]
    %v1223 = vld [vmem:[%s54 + $0x68] sm:$0xff]
    %v1224 = vld [vmem:[%s54 + $0x70] sm:$0xff]
    %v1225 = vld [vmem:[%s54 + $0x78] sm:$0xff]
    %v1226 = vmul.f32 %v1210, %v1133
    %v1227 = vmul.f32 %v1211, %v1138
    %v1228 = vmul.f32 %v1212, %v1143
    %v1229 = vmul.f32 %v1213, %v1148
    %v1230 = vmul.f32 %v1214, %v1153
    %v1231 = vmul.f32 %v1215, %v1158
    %v1232 = vmul.f32 %v1216, %v1163
    %v1233 = vmul.f32 %v1217, %v1168
    %v1234 = vmul.f32 %v1218, %v1173
    %v1235 = vmul.f32 %v1219, %v1178
    %v1236 = vmul.f32 %v1220, %v1183
    %v1237 = vmul.f32 %v1221, %v1188
    %v1238 = vmul.f32 %v1222, %v1193
    %v1239 = vmul.f32 %v1223, %v1198
    %v1240 = vmul.f32 %v1224, %v1203
    %v1241 = vmul.f32 %v1225, %v1208
    %v1242 = vmax.f32 %v1226, %v1230
    %v1243 = vmax.f32 %v1227, %v1231
    %v1244 = vmax.f32 %v1228, %v1232
    %v1245 = vmax.f32 %v1229, %v1233
    %v1246 = vmax.f32 %v1242, %v1234
    %v1247 = vmax.f32 %v1243, %v1235
    %v1248 = vmax.f32 %v1244, %v1236
    %v1249 = vmax.f32 %v1245, %v1237
    %v1250 = vmax.f32 %v1246, %v1238
    %v1251 = vmax.f32 %v1247, %v1239
    %v1252 = vmax.f32 %v1248, %v1240
    %v1253 = vmax.f32 %v1249, %v1241
    %v1254 = vmax.f32 %v1250, %v1251
    %v1255 = vmax.f32 %v1252, %v1253
    %v1256 = vmax.f32 %v1254, %v1255
    %v1257 = vrot.slane %v1256, 4
    %v1258 = vmax.f32 %v1256, %v1257
    %v1259 = vrot.slane %v1258, 2
    %v1260 = vmax.f32 %v1258, %v1259
    %v1261 = vrot.slane %v1260, 1
    %v1262 = vmax.f32 %v1260, %v1261
    %1263 = vst [vmem:[#allocation2 + $0x7] sm:$0x1] %v1262
    %v1264 = vld [vmem:[%s2] sm:$0xff]
    %v1265 = vld [vmem:[%s2 + $0x8] sm:$0xff]
    %v1266 = vld [vmem:[%s2 + $0x10] sm:$0xff]
    %v1267 = vld [vmem:[%s2 + $0x18] sm:$0xff]
    %v1268 = vld [vmem:[%s2 + $0x20] sm:$0xff]
    %v1269 = vld [vmem:[%s2 + $0x28] sm:$0xff]
    %v1270 = vld [vmem:[%s2 + $0x30] sm:$0xff]
    %v1271 = vld [vmem:[%s2 + $0x38] sm:$0xff]
    %v1272 = vld [vmem:[%s2 + $0x40] sm:$0xff]
    %v1273 = vld [vmem:[%s2 + $0x48] sm:$0xff]
    %v1274 = vld [vmem:[%s2 + $0x50] sm:$0xff]
    %v1275 = vld [vmem:[%s2 + $0x58] sm:$0xff]
    %v1276 = vld [vmem:[%s2 + $0x60] sm:$0xff]
    %v1277 = vld [vmem:[%s2 + $0x68] sm:$0xff]
    %v1278 = vld [vmem:[%s2 + $0x70] sm:$0xff]
    %v1279 = vld [vmem:[%s2 + $0x78] sm:$0xff]
    %1281 = vset.pattern.permute.xlu0 8
    %1282 = vperm.xlu0 %1281, %v1264
    %v1283 = vpop.permute.xlu0 %1282
    %1286 = vset.pattern.permute.xlu0 8
    %1287 = vperm.xlu0 %1286, %v1265
    %v1288 = vpop.permute.xlu0 %1287
    %1291 = vset.pattern.permute.xlu0 8
    %1292 = vperm.xlu0 %1291, %v1266
    %v1293 = vpop.permute.xlu0 %1292
    %1296 = vset.pattern.permute.xlu0 8
    %1297 = vperm.xlu0 %1296, %v1267
    %v1298 = vpop.permute.xlu0 %1297
    %1301 = vset.pattern.permute.xlu0 8
    %1302 = vperm.xlu0 %1301, %v1268
    %v1303 = vpop.permute.xlu0 %1302
    %1306 = vset.pattern.permute.xlu0 8
    %1307 = vperm.xlu0 %1306, %v1269
    %v1308 = vpop.permute.xlu0 %1307
    %1311 = vset.pattern.permute.xlu0 8
    %1312 = vperm.xlu0 %1311, %v1270
    %v1313 = vpop.permute.xlu0 %1312
    %1316 = vset.pattern.permute.xlu0 8
    %1317 = vperm.xlu0 %1316, %v1271
    %v1318 = vpop.permute.xlu0 %1317
    %1321 = vset.pattern.permute.xlu0 8
    %1322 = vperm.xlu0 %1321, %v1272
    %v1323 = vpop.permute.xlu0 %1322
    %1326 = vset.pattern.permute.xlu0 8
    %1327 = vperm.xlu0 %1326, %v1273
    %v1328 = vpop.permute.xlu0 %1327
    %1331 = vset.pattern.permute.xlu0 8
    %1332 = vperm.xlu0 %1331, %v1274
    %v1333 = vpop.permute.xlu0 %1332
    %1336 = vset.pattern.permute.xlu0 8
    %1337 = vperm.xlu0 %1336, %v1275
    %v1338 = vpop.permute.xlu0 %1337
    %1341 = vset.pattern.permute.xlu0 8
    %1342 = vperm.xlu0 %1341, %v1276
    %v1343 = vpop.permute.xlu0 %1342
    %1346 = vset.pattern.permute.xlu0 8
    %1347 = vperm.xlu0 %1346, %v1277
    %v1348 = vpop.permute.xlu0 %1347
    %1351 = vset.pattern.permute.xlu0 8
    %1352 = vperm.xlu0 %1351, %v1278
    %v1353 = vpop.permute.xlu0 %1352
    %1356 = vset.pattern.permute.xlu0 8
    %1357 = vperm.xlu0 %1356, %v1279
    %v1358 = vpop.permute.xlu0 %1357
    %v1360 = vld [vmem:[%s54] sm:$0xff]
    %v1361 = vld [vmem:[%s54 + $0x8] sm:$0xff]
    %v1362 = vld [vmem:[%s54 + $0x10] sm:$0xff]
    %v1363 = vld [vmem:[%s54 + $0x18] sm:$0xff]
    %v1364 = vld [vmem:[%s54 + $0x20] sm:$0xff]
    %v1365 = vld [vmem:[%s54 + $0x28] sm:$0xff]
    %v1366 = vld [vmem:[%s54 + $0x30] sm:$0xff]
    %v1367 = vld [vmem:[%s54 + $0x38] sm:$0xff]
    %v1368 = vld [vmem:[%s54 + $0x40] sm:$0xff]
    %v1369 = vld [vmem:[%s54 + $0x48] sm:$0xff]
    %v1370 = vld [vmem:[%s54 + $0x50] sm:$0xff]
    %v1371 = vld [vmem:[%s54 + $0x58] sm:$0xff]
    %v1372 = vld [vmem:[%s54 + $0x60] sm:$0xff]
    %v1373 = vld [vmem:[%s54 + $0x68] sm:$0xff]
    %v1374 = vld [vmem:[%s54 + $0x70] sm:$0xff]
    %v1375 = vld [vmem:[%s54 + $0x78] sm:$0xff]
    %v1376 = vmul.f32 %v1360, %v1283
    %v1377 = vmul.f32 %v1361, %v1288
    %v1378 = vmul.f32 %v1362, %v1293
    %v1379 = vmul.f32 %v1363, %v1298
    %v1380 = vmul.f32 %v1364, %v1303
    %v1381 = vmul.f32 %v1365, %v1308
    %v1382 = vmul.f32 %v1366, %v1313
    %v1383 = vmul.f32 %v1367, %v1318
    %v1384 = vmul.f32 %v1368, %v1323
    %v1385 = vmul.f32 %v1369, %v1328
    %v1386 = vmul.f32 %v1370, %v1333
    %v1387 = vmul.f32 %v1371, %v1338
    %v1388 = vmul.f32 %v1372, %v1343
    %v1389 = vmul.f32 %v1373, %v1348
    %v1390 = vmul.f32 %v1374, %v1353
    %v1391 = vmul.f32 %v1375, %v1358
    %v1392 = vmax.f32 %v1376, %v1380
    %v1393 = vmax.f32 %v1377, %v1381
    %v1394 = vmax.f32 %v1378, %v1382
    %v1395 = vmax.f32 %v1379, %v1383
    %v1396 = vmax.f32 %v1392, %v1384
    %v1397 = vmax.f32 %v1393, %v1385
    %v1398 = vmax.f32 %v1394, %v1386
    %v1399 = vmax.f32 %v1395, %v1387
    %v1400 = vmax.f32 %v1396, %v1388
    %v1401 = vmax.f32 %v1397, %v1389
    %v1402 = vmax.f32 %v1398, %v1390
    %v1403 = vmax.f32 %v1399, %v1391
    %v1404 = vmax.f32 %v1400, %v1401
    %v1405 = vmax.f32 %v1402, %v1403
    %v1406 = vmax.f32 %v1404, %v1405
    %v1407 = vrot.slane %v1406, 4
    %v1408 = vmax.f32 %v1406, %v1407
    %v1409 = vrot.slane %v1408, 2
    %v1410 = vmax.f32 %v1408, %v1409
    %v1411 = vrot.slane %v1410, 1
    %v1412 = vmax.f32 %v1410, %v1411
    %1413 = vst [vmem:[#allocation2 + $0x8] sm:$0x1] %v1412
    %v1414 = vld [vmem:[%s2] sm:$0xff]
    %v1415 = vld [vmem:[%s2 + $0x8] sm:$0xff]
    %v1416 = vld [vmem:[%s2 + $0x10] sm:$0xff]
    %v1417 = vld [vmem:[%s2 + $0x18] sm:$0xff]
    %v1418 = vld [vmem:[%s2 + $0x20] sm:$0xff]
    %v1419 = vld [vmem:[%s2 + $0x28] sm:$0xff]
    %v1420 = vld [vmem:[%s2 + $0x30] sm:$0xff]
    %v1421 = vld [vmem:[%s2 + $0x38] sm:$0xff]
    %v1422 = vld [vmem:[%s2 + $0x40] sm:$0xff]
    %v1423 = vld [vmem:[%s2 + $0x48] sm:$0xff]
    %v1424 = vld [vmem:[%s2 + $0x50] sm:$0xff]
    %v1425 = vld [vmem:[%s2 + $0x58] sm:$0xff]
    %v1426 = vld [vmem:[%s2 + $0x60] sm:$0xff]
    %v1427 = vld [vmem:[%s2 + $0x68] sm:$0xff]
    %v1428 = vld [vmem:[%s2 + $0x70] sm:$0xff]
    %v1429 = vld [vmem:[%s2 + $0x78] sm:$0xff]
    %1431 = vset.pattern.permute.xlu0 9
    %1432 = vperm.xlu0 %1431, %v1414
    %v1433 = vpop.permute.xlu0 %1432
    %1436 = vset.pattern.permute.xlu0 9
    %1437 = vperm.xlu0 %1436, %v1415
    %v1438 = vpop.permute.xlu0 %1437
    %1441 = vset.pattern.permute.xlu0 9
    %1442 = vperm.xlu0 %1441, %v1416
    %v1443 = vpop.permute.xlu0 %1442
    %1446 = vset.pattern.permute.xlu0 9
    %1447 = vperm.xlu0 %1446, %v1417
    %v1448 = vpop.permute.xlu0 %1447
    %1451 = vset.pattern.permute.xlu0 9
    %1452 = vperm.xlu0 %1451, %v1418
    %v1453 = vpop.permute.xlu0 %1452
    %1456 = vset.pattern.permute.xlu0 9
    %1457 = vperm.xlu0 %1456, %v1419
    %v1458 = vpop.permute.xlu0 %1457
    %1461 = vset.pattern.permute.xlu0 9
    %1462 = vperm.xlu0 %1461, %v1420
    %v1463 = vpop.permute.xlu0 %1462
    %1466 = vset.pattern.permute.xlu0 9
    %1467 = vperm.xlu0 %1466, %v1421
    %v1468 = vpop.permute.xlu0 %1467
    %1471 = vset.pattern.permute.xlu0 9
    %1472 = vperm.xlu0 %1471, %v1422
    %v1473 = vpop.permute.xlu0 %1472
    %1476 = vset.pattern.permute.xlu0 9
    %1477 = vperm.xlu0 %1476, %v1423
    %v1478 = vpop.permute.xlu0 %1477
    %1481 = vset.pattern.permute.xlu0 9
    %1482 = vperm.xlu0 %1481, %v1424
    %v1483 = vpop.permute.xlu0 %1482
    %1486 = vset.pattern.permute.xlu0 9
    %1487 = vperm.xlu0 %1486, %v1425
    %v1488 = vpop.permute.xlu0 %1487
    %1491 = vset.pattern.permute.xlu0 9
    %1492 = vperm.xlu0 %1491, %v1426
    %v1493 = vpop.permute.xlu0 %1492
    %1496 = vset.pattern.permute.xlu0 9
    %1497 = vperm.xlu0 %1496, %v1427
    %v1498 = vpop.permute.xlu0 %1497
    %1501 = vset.pattern.permute.xlu0 9
    %1502 = vperm.xlu0 %1501, %v1428
    %v1503 = vpop.permute.xlu0 %1502
    %1506 = vset.pattern.permute.xlu0 9
    %1507 = vperm.xlu0 %1506, %v1429
    %v1508 = vpop.permute.xlu0 %1507
    %v1510 = vld [vmem:[%s54] sm:$0xff]
    %v1511 = vld [vmem:[%s54 + $0x8] sm:$0xff]
    %v1512 = vld [vmem:[%s54 + $0x10] sm:$0xff]
    %v1513 = vld [vmem:[%s54 + $0x18] sm:$0xff]
    %v1514 = vld [vmem:[%s54 + $0x20] sm:$0xff]
    %v1515 = vld [vmem:[%s54 + $0x28] sm:$0xff]
    %v1516 = vld [vmem:[%s54 + $0x30] sm:$0xff]
    %v1517 = vld [vmem:[%s54 + $0x38] sm:$0xff]
    %v1518 = vld [vmem:[%s54 + $0x40] sm:$0xff]
    %v1519 = vld [vmem:[%s54 + $0x48] sm:$0xff]
    %v1520 = vld [vmem:[%s54 + $0x50] sm:$0xff]
    %v1521 = vld [vmem:[%s54 + $0x58] sm:$0xff]
    %v1522 = vld [vmem:[%s54 + $0x60] sm:$0xff]
    %v1523 = vld [vmem:[%s54 + $0x68] sm:$0xff]
    %v1524 = vld [vmem:[%s54 + $0x70] sm:$0xff]
    %v1525 = vld [vmem:[%s54 + $0x78] sm:$0xff]
    %v1526 = vmul.f32 %v1510, %v1433
    %v1527 = vmul.f32 %v1511, %v1438
    %v1528 = vmul.f32 %v1512, %v1443
    %v1529 = vmul.f32 %v1513, %v1448
    %v1530 = vmul.f32 %v1514, %v1453
    %v1531 = vmul.f32 %v1515, %v1458
    %v1532 = vmul.f32 %v1516, %v1463
    %v1533 = vmul.f32 %v1517, %v1468
    %v1534 = vmul.f32 %v1518, %v1473
    %v1535 = vmul.f32 %v1519, %v1478
    %v1536 = vmul.f32 %v1520, %v1483
    %v1537 = vmul.f32 %v1521, %v1488
    %v1538 = vmul.f32 %v1522, %v1493
    %v1539 = vmul.f32 %v1523, %v1498
    %v1540 = vmul.f32 %v1524, %v1503
    %v1541 = vmul.f32 %v1525, %v1508
    %v1542 = vmax.f32 %v1526, %v1530
    %v1543 = vmax.f32 %v1527, %v1531
    %v1544 = vmax.f32 %v1528, %v1532
    %v1545 = vmax.f32 %v1529, %v1533
    %v1546 = vmax.f32 %v1542, %v1534
    %v1547 = vmax.f32 %v1543, %v1535
    %v1548 = vmax.f32 %v1544, %v1536
    %v1549 = vmax.f32 %v1545, %v1537
    %v1550 = vmax.f32 %v1546, %v1538
    %v1551 = vmax.f32 %v1547, %v1539
    %v1552 = vmax.f32 %v1548, %v1540
    %v1553 = vmax.f32 %v1549, %v1541
    %v1554 = vmax.f32 %v1550, %v1551
    %v1555 = vmax.f32 %v1552, %v1553
    %v1556 = vmax.f32 %v1554, %v1555
    %v1557 = vrot.slane %v1556, 4
    %v1558 = vmax.f32 %v1556, %v1557
    %v1559 = vrot.slane %v1558, 2
    %v1560 = vmax.f32 %v1558, %v1559
    %v1561 = vrot.slane %v1560, 1
    %v1562 = vmax.f32 %v1560, %v1561
    %1563 = vst [vmem:[#allocation2 + $0x9] sm:$0x1] %v1562
    %v1564 = vld [vmem:[%s2] sm:$0xff]
    %v1565 = vld [vmem:[%s2 + $0x8] sm:$0xff]
    %v1566 = vld [vmem:[%s2 + $0x10] sm:$0xff]
    %v1567 = vld [vmem:[%s2 + $0x18] sm:$0xff]
    %v1568 = vld [vmem:[%s2 + $0x20] sm:$0xff]
    %v1569 = vld [vmem:[%s2 + $0x28] sm:$0xff]
    %v1570 = vld [vmem:[%s2 + $0x30] sm:$0xff]
    %v1571 = vld [vmem:[%s2 + $0x38] sm:$0xff]
    %v1572 = vld [vmem:[%s2 + $0x40] sm:$0xff]
    %v1573 = vld [vmem:[%s2 + $0x48] sm:$0xff]
    %v1574 = vld [vmem:[%s2 + $0x50] sm:$0xff]
    %v1575 = vld [vmem:[%s2 + $0x58] sm:$0xff]
    %v1576 = vld [vmem:[%s2 + $0x60] sm:$0xff]
    %v1577 = vld [vmem:[%s2 + $0x68] sm:$0xff]
    %v1578 = vld [vmem:[%s2 + $0x70] sm:$0xff]
    %v1579 = vld [vmem:[%s2 + $0x78] sm:$0xff]
    %1581 = vset.pattern.permute.xlu0 10
    %1582 = vperm.xlu0 %1581, %v1564
    %v1583 = vpop.permute.xlu0 %1582
    %1586 = vset.pattern.permute.xlu0 10
    %1587 = vperm.xlu0 %1586, %v1565
    %v1588 = vpop.permute.xlu0 %1587
    %1591 = vset.pattern.permute.xlu0 10
    %1592 = vperm.xlu0 %1591, %v1566
    %v1593 = vpop.permute.xlu0 %1592
    %1596 = vset.pattern.permute.xlu0 10
    %1597 = vperm.xlu0 %1596, %v1567
    %v1598 = vpop.permute.xlu0 %1597
    %1601 = vset.pattern.permute.xlu0 10
    %1602 = vperm.xlu0 %1601, %v1568
    %v1603 = vpop.permute.xlu0 %1602
    %1606 = vset.pattern.permute.xlu0 10
    %1607 = vperm.xlu0 %1606, %v1569
    %v1608 = vpop.permute.xlu0 %1607
    %1611 = vset.pattern.permute.xlu0 10
    %1612 = vperm.xlu0 %1611, %v1570
    %v1613 = vpop.permute.xlu0 %1612
    %1616 = vset.pattern.permute.xlu0 10
    %1617 = vperm.xlu0 %1616, %v1571
    %v1618 = vpop.permute.xlu0 %1617
    %1621 = vset.pattern.permute.xlu0 10
    %1622 = vperm.xlu0 %1621, %v1572
    %v1623 = vpop.permute.xlu0 %1622
    %1626 = vset.pattern.permute.xlu0 10
    %1627 = vperm.xlu0 %1626, %v1573
    %v1628 = vpop.permute.xlu0 %1627
    %1631 = vset.pattern.permute.xlu0 10
    %1632 = vperm.xlu0 %1631, %v1574
    %v1633 = vpop.permute.xlu0 %1632
    %1636 = vset.pattern.permute.xlu0 10
    %1637 = vperm.xlu0 %1636, %v1575
    %v1638 = vpop.permute.xlu0 %1637
    %1641 = vset.pattern.permute.xlu0 10
    %1642 = vperm.xlu0 %1641, %v1576
    %v1643 = vpop.permute.xlu0 %1642
    %1646 = vset.pattern.permute.xlu0 10
    %1647 = vperm.xlu0 %1646, %v1577
    %v1648 = vpop.permute.xlu0 %1647
    %1651 = vset.pattern.permute.xlu0 10
    %1652 = vperm.xlu0 %1651, %v1578
    %v1653 = vpop.permute.xlu0 %1652
    %1656 = vset.pattern.permute.xlu0 10
    %1657 = vperm.xlu0 %1656, %v1579
    %v1658 = vpop.permute.xlu0 %1657
    %v1660 = vld [vmem:[%s54] sm:$0xff]
    %v1661 = vld [vmem:[%s54 + $0x8] sm:$0xff]
    %v1662 = vld [vmem:[%s54 + $0x10] sm:$0xff]
    %v1663 = vld [vmem:[%s54 + $0x18] sm:$0xff]
    %v1664 = vld [vmem:[%s54 + $0x20] sm:$0xff]
    %v1665 = vld [vmem:[%s54 + $0x28] sm:$0xff]
    %v1666 = vld [vmem:[%s54 + $0x30] sm:$0xff]
    %v1667 = vld [vmem:[%s54 + $0x38] sm:$0xff]
    %v1668 = vld [vmem:[%s54 + $0x40] sm:$0xff]
    %v1669 = vld [vmem:[%s54 + $0x48] sm:$0xff]
    %v1670 = vld [vmem:[%s54 + $0x50] sm:$0xff]
    %v1671 = vld [vmem:[%s54 + $0x58] sm:$0xff]
    %v1672 = vld [vmem:[%s54 + $0x60] sm:$0xff]
    %v1673 = vld [vmem:[%s54 + $0x68] sm:$0xff]
    %v1674 = vld [vmem:[%s54 + $0x70] sm:$0xff]
    %v1675 = vld [vmem:[%s54 + $0x78] sm:$0xff]
    %v1676 = vmul.f32 %v1660, %v1583
    %v1677 = vmul.f32 %v1661, %v1588
    %v1678 = vmul.f32 %v1662, %v1593
    %v1679 = vmul.f32 %v1663, %v1598
    %v1680 = vmul.f32 %v1664, %v1603
    %v1681 = vmul.f32 %v1665, %v1608
    %v1682 = vmul.f32 %v1666, %v1613
    %v1683 = vmul.f32 %v1667, %v1618
    %v1684 = vmul.f32 %v1668, %v1623
    %v1685 = vmul.f32 %v1669, %v1628
    %v1686 = vmul.f32 %v1670, %v1633
    %v1687 = vmul.f32 %v1671, %v1638
    %v1688 = vmul.f32 %v1672, %v1643
    %v1689 = vmul.f32 %v1673, %v1648
    %v1690 = vmul.f32 %v1674, %v1653
    %v1691 = vmul.f32 %v1675, %v1658
    %v1692 = vmax.f32 %v1676, %v1680
    %v1693 = vmax.f32 %v1677, %v1681
    %v1694 = vmax.f32 %v1678, %v1682
    %v1695 = vmax.f32 %v1679, %v1683
    %v1696 = vmax.f32 %v1692, %v1684
    %v1697 = vmax.f32 %v1693, %v1685
    %v1698 = vmax.f32 %v1694, %v1686
    %v1699 = vmax.f32 %v1695, %v1687
    %v1700 = vmax.f32 %v1696, %v1688
    %v1701 = vmax.f32 %v1697, %v1689
    %v1702 = vmax.f32 %v1698, %v1690
    %v1703 = vmax.f32 %v1699, %v1691
    %v1704 = vmax.f32 %v1700, %v1701
    %v1705 = vmax.f32 %v1702, %v1703
    %v1706 = vmax.f32 %v1704, %v1705
    %v1707 = vrot.slane %v1706, 4
    %v1708 = vmax.f32 %v1706, %v1707
    %v1709 = vrot.slane %v1708, 2
    %v1710 = vmax.f32 %v1708, %v1709
    %v1711 = vrot.slane %v1710, 1
    %v1712 = vmax.f32 %v1710, %v1711
    %1713 = vst [vmem:[#allocation2 + $0xa] sm:$0x1] %v1712
    %v1714 = vld [vmem:[%s2] sm:$0xff]
    %v1715 = vld [vmem:[%s2 + $0x8] sm:$0xff]
    %v1716 = vld [vmem:[%s2 + $0x10] sm:$0xff]
    %v1717 = vld [vmem:[%s2 + $0x18] sm:$0xff]
    %v1718 = vld [vmem:[%s2 + $0x20] sm:$0xff]
    %v1719 = vld [vmem:[%s2 + $0x28] sm:$0xff]
    %v1720 = vld [vmem:[%s2 + $0x30] sm:$0xff]
    %v1721 = vld [vmem:[%s2 + $0x38] sm:$0xff]
    %v1722 = vld [vmem:[%s2 + $0x40] sm:$0xff]
    %v1723 = vld [vmem:[%s2 + $0x48] sm:$0xff]
    %v1724 = vld [vmem:[%s2 + $0x50] sm:$0xff]
    %v1725 = vld [vmem:[%s2 + $0x58] sm:$0xff]
    %v1726 = vld [vmem:[%s2 + $0x60] sm:$0xff]
    %v1727 = vld [vmem:[%s2 + $0x68] sm:$0xff]
    %v1728 = vld [vmem:[%s2 + $0x70] sm:$0xff]
    %v1729 = vld [vmem:[%s2 + $0x78] sm:$0xff]
    %1731 = vset.pattern.permute.xlu0 11
    %1732 = vperm.xlu0 %1731, %v1714
    %v1733 = vpop.permute.xlu0 %1732
    %1736 = vset.pattern.permute.xlu0 11
    %1737 = vperm.xlu0 %1736, %v1715
    %v1738 = vpop.permute.xlu0 %1737
    %1741 = vset.pattern.permute.xlu0 11
    %1742 = vperm.xlu0 %1741, %v1716
    %v1743 = vpop.permute.xlu0 %1742
    %1746 = vset.pattern.permute.xlu0 11
    %1747 = vperm.xlu0 %1746, %v1717
    %v1748 = vpop.permute.xlu0 %1747
    %1751 = vset.pattern.permute.xlu0 11
    %1752 = vperm.xlu0 %1751, %v1718
    %v1753 = vpop.permute.xlu0 %1752
    %1756 = vset.pattern.permute.xlu0 11
    %1757 = vperm.xlu0 %1756, %v1719
    %v1758 = vpop.permute.xlu0 %1757
    %1761 = vset.pattern.permute.xlu0 11
    %1762 = vperm.xlu0 %1761, %v1720
    %v1763 = vpop.permute.xlu0 %1762
    %1766 = vset.pattern.permute.xlu0 11
    %1767 = vperm.xlu0 %1766, %v1721
    %v1768 = vpop.permute.xlu0 %1767
    %1771 = vset.pattern.permute.xlu0 11
    %1772 = vperm.xlu0 %1771, %v1722
    %v1773 = vpop.permute.xlu0 %1772
    %1776 = vset.pattern.permute.xlu0 11
    %1777 = vperm.xlu0 %1776, %v1723
    %v1778 = vpop.permute.xlu0 %1777
    %1781 = vset.pattern.permute.xlu0 11
    %1782 = vperm.xlu0 %1781, %v1724
    %v1783 = vpop.permute.xlu0 %1782
    %1786 = vset.pattern.permute.xlu0 11
    %1787 = vperm.xlu0 %1786, %v1725
    %v1788 = vpop.permute.xlu0 %1787
    %1791 = vset.pattern.permute.xlu0 11
    %1792 = vperm.xlu0 %1791, %v1726
    %v1793 = vpop.permute.xlu0 %1792
    %1796 = vset.pattern.permute.xlu0 11
    %1797 = vperm.xlu0 %1796, %v1727
    %v1798 = vpop.permute.xlu0 %1797
    %1801 = vset.pattern.permute.xlu0 11
    %1802 = vperm.xlu0 %1801, %v1728
    %v1803 = vpop.permute.xlu0 %1802
    %1806 = vset.pattern.permute.xlu0 11
    %1807 = vperm.xlu0 %1806, %v1729
    %v1808 = vpop.permute.xlu0 %1807
    %v1810 = vld [vmem:[%s54] sm:$0xff]
    %v1811 = vld [vmem:[%s54 + $0x8] sm:$0xff]
    %v1812 = vld [vmem:[%s54 + $0x10] sm:$0xff]
    %v1813 = vld [vmem:[%s54 + $0x18] sm:$0xff]
    %v1814 = vld [vmem:[%s54 + $0x20] sm:$0xff]
    %v1815 = vld [vmem:[%s54 + $0x28] sm:$0xff]
    %v1816 = vld [vmem:[%s54 + $0x30] sm:$0xff]
    %v1817 = vld [vmem:[%s54 + $0x38] sm:$0xff]
    %v1818 = vld [vmem:[%s54 + $0x40] sm:$0xff]
    %v1819 = vld [vmem:[%s54 + $0x48] sm:$0xff]
    %v1820 = vld [vmem:[%s54 + $0x50] sm:$0xff]
    %v1821 = vld [vmem:[%s54 + $0x58] sm:$0xff]
    %v1822 = vld [vmem:[%s54 + $0x60] sm:$0xff]
    %v1823 = vld [vmem:[%s54 + $0x68] sm:$0xff]
    %v1824 = vld [vmem:[%s54 + $0x70] sm:$0xff]
    %v1825 = vld [vmem:[%s54 + $0x78] sm:$0xff]
    %v1826 = vmul.f32 %v1810, %v1733
    %v1827 = vmul.f32 %v1811, %v1738
    %v1828 = vmul.f32 %v1812, %v1743
    %v1829 = vmul.f32 %v1813, %v1748
    %v1830 = vmul.f32 %v1814, %v1753
    %v1831 = vmul.f32 %v1815, %v1758
    %v1832 = vmul.f32 %v1816, %v1763
    %v1833 = vmul.f32 %v1817, %v1768
    %v1834 = vmul.f32 %v1818, %v1773
    %v1835 = vmul.f32 %v1819, %v1778
    %v1836 = vmul.f32 %v1820, %v1783
    %v1837 = vmul.f32 %v1821, %v1788
    %v1838 = vmul.f32 %v1822, %v1793
    %v1839 = vmul.f32 %v1823, %v1798
    %v1840 = vmul.f32 %v1824, %v1803
    %v1841 = vmul.f32 %v1825, %v1808
    %v1842 = vmax.f32 %v1826, %v1830
    %v1843 = vmax.f32 %v1827, %v1831
    %v1844 = vmax.f32 %v1828, %v1832
    %v1845 = vmax.f32 %v1829, %v1833
    %v1846 = vmax.f32 %v1842, %v1834
    %v1847 = vmax.f32 %v1843, %v1835
    %v1848 = vmax.f32 %v1844, %v1836
    %v1849 = vmax.f32 %v1845, %v1837
    %v1850 = vmax.f32 %v1846, %v1838
    %v1851 = vmax.f32 %v1847, %v1839
    %v1852 = vmax.f32 %v1848, %v1840
    %v1853 = vmax.f32 %v1849, %v1841
    %v1854 = vmax.f32 %v1850, %v1851
    %v1855 = vmax.f32 %v1852, %v1853
    %v1856 = vmax.f32 %v1854, %v1855
    %v1857 = vrot.slane %v1856, 4
    %v1858 = vmax.f32 %v1856, %v1857
    %v1859 = vrot.slane %v1858, 2
    %v1860 = vmax.f32 %v1858, %v1859
    %v1861 = vrot.slane %v1860, 1
    %v1862 = vmax.f32 %v1860, %v1861
    %1863 = vst [vmem:[#allocation2 + $0xb] sm:$0x1] %v1862
    %v1864 = vld [vmem:[%s2] sm:$0xff]
    %v1865 = vld [vmem:[%s2 + $0x8] sm:$0xff]
    %v1866 = vld [vmem:[%s2 + $0x10] sm:$0xff]
    %v1867 = vld [vmem:[%s2 + $0x18] sm:$0xff]
    %v1868 = vld [vmem:[%s2 + $0x20] sm:$0xff]
    %v1869 = vld [vmem:[%s2 + $0x28] sm:$0xff]
    %v1870 = vld [vmem:[%s2 + $0x30] sm:$0xff]
    %v1871 = vld [vmem:[%s2 + $0x38] sm:$0xff]
    %v1872 = vld [vmem:[%s2 + $0x40] sm:$0xff]
    %v1873 = vld [vmem:[%s2 + $0x48] sm:$0xff]
    %v1874 = vld [vmem:[%s2 + $0x50] sm:$0xff]
    %v1875 = vld [vmem:[%s2 + $0x58] sm:$0xff]
    %v1876 = vld [vmem:[%s2 + $0x60] sm:$0xff]
    %v1877 = vld [vmem:[%s2 + $0x68] sm:$0xff]
    %v1878 = vld [vmem:[%s2 + $0x70] sm:$0xff]
    %v1879 = vld [vmem:[%s2 + $0x78] sm:$0xff]
    %1881 = vset.pattern.permute.xlu0 12
    %1882 = vperm.xlu0 %1881, %v1864
    %v1883 = vpop.permute.xlu0 %1882
    %1886 = vset.pattern.permute.xlu0 12
    %1887 = vperm.xlu0 %1886, %v1865
    %v1888 = vpop.permute.xlu0 %1887
    %1891 = vset.pattern.permute.xlu0 12
    %1892 = vperm.xlu0 %1891, %v1866
    %v1893 = vpop.permute.xlu0 %1892
    %1896 = vset.pattern.permute.xlu0 12
    %1897 = vperm.xlu0 %1896, %v1867
    %v1898 = vpop.permute.xlu0 %1897
    %1901 = vset.pattern.permute.xlu0 12
    %1902 = vperm.xlu0 %1901, %v1868
    %v1903 = vpop.permute.xlu0 %1902
    %1906 = vset.pattern.permute.xlu0 12
    %1907 = vperm.xlu0 %1906, %v1869
    %v1908 = vpop.permute.xlu0 %1907
    %1911 = vset.pattern.permute.xlu0 12
    %1912 = vperm.xlu0 %1911, %v1870
    %v1913 = vpop.permute.xlu0 %1912
    %1916 = vset.pattern.permute.xlu0 12
    %1917 = vperm.xlu0 %1916, %v1871
    %v1918 = vpop.permute.xlu0 %1917
    %1921 = vset.pattern.permute.xlu0 12
    %1922 = vperm.xlu0 %1921, %v1872
    %v1923 = vpop.permute.xlu0 %1922
    %1926 = vset.pattern.permute.xlu0 12
    %1927 = vperm.xlu0 %1926, %v1873
    %v1928 = vpop.permute.xlu0 %1927
    %1931 = vset.pattern.permute.xlu0 12
    %1932 = vperm.xlu0 %1931, %v1874
    %v1933 = vpop.permute.xlu0 %1932
    %1936 = vset.pattern.permute.xlu0 12
    %1937 = vperm.xlu0 %1936, %v1875
    %v1938 = vpop.permute.xlu0 %1937
    %1941 = vset.pattern.permute.xlu0 12
    %1942 = vperm.xlu0 %1941, %v1876
    %v1943 = vpop.permute.xlu0 %1942
    %1946 = vset.pattern.permute.xlu0 12
    %1947 = vperm.xlu0 %1946, %v1877
    %v1948 = vpop.permute.xlu0 %1947
    %1951 = vset.pattern.permute.xlu0 12
    %1952 = vperm.xlu0 %1951, %v1878
    %v1953 = vpop.permute.xlu0 %1952
    %1956 = vset.pattern.permute.xlu0 12
    %1957 = vperm.xlu0 %1956, %v1879
    %v1958 = vpop.permute.xlu0 %1957
    %v1960 = vld [vmem:[%s54] sm:$0xff]
    %v1961 = vld [vmem:[%s54 + $0x8] sm:$0xff]
    %v1962 = vld [vmem:[%s54 + $0x10] sm:$0xff]
    %v1963 = vld [vmem:[%s54 + $0x18] sm:$0xff]
    %v1964 = vld [vmem:[%s54 + $0x20] sm:$0xff]
    %v1965 = vld [vmem:[%s54 + $0x28] sm:$0xff]
    %v1966 = vld [vmem:[%s54 + $0x30] sm:$0xff]
    %v1967 = vld [vmem:[%s54 + $0x38] sm:$0xff]
    %v1968 = vld [vmem:[%s54 + $0x40] sm:$0xff]
    %v1969 = vld [vmem:[%s54 + $0x48] sm:$0xff]
    %v1970 = vld [vmem:[%s54 + $0x50] sm:$0xff]
    %v1971 = vld [vmem:[%s54 + $0x58] sm:$0xff]
    %v1972 = vld [vmem:[%s54 + $0x60] sm:$0xff]
    %v1973 = vld [vmem:[%s54 + $0x68] sm:$0xff]
    %v1974 = vld [vmem:[%s54 + $0x70] sm:$0xff]
    %v1975 = vld [vmem:[%s54 + $0x78] sm:$0xff]
    %v1976 = vmul.f32 %v1960, %v1883
    %v1977 = vmul.f32 %v1961, %v1888
    %v1978 = vmul.f32 %v1962, %v1893
    %v1979 = vmul.f32 %v1963, %v1898
    %v1980 = vmul.f32 %v1964, %v1903
    %v1981 = vmul.f32 %v1965, %v1908
    %v1982 = vmul.f32 %v1966, %v1913
    %v1983 = vmul.f32 %v1967, %v1918
    %v1984 = vmul.f32 %v1968, %v1923
    %v1985 = vmul.f32 %v1969, %v1928
    %v1986 = vmul.f32 %v1970, %v1933
    %v1987 = vmul.f32 %v1971, %v1938
    %v1988 = vmul.f32 %v1972, %v1943
    %v1989 = vmul.f32 %v1973, %v1948
    %v1990 = vmul.f32 %v1974, %v1953
    %v1991 = vmul.f32 %v1975, %v1958
    %v1992 = vmax.f32 %v1976, %v1980
    %v1993 = vmax.f32 %v1977, %v1981
    %v1994 = vmax.f32 %v1978, %v1982
    %v1995 = vmax.f32 %v1979, %v1983
    %v1996 = vmax.f32 %v1992, %v1984
    %v1997 = vmax.f32 %v1993, %v1985
    %v1998 = vmax.f32 %v1994, %v1986
    %v1999 = vmax.f32 %v1995, %v1987
    %v2000 = vmax.f32 %v1996, %v1988
    %v2001 = vmax.f32 %v1997, %v1989
    %v2002 = vmax.f32 %v1998, %v1990
    %v2003 = vmax.f32 %v1999, %v1991
    %v2004 = vmax.f32 %v2000, %v2001
    %v2005 = vmax.f32 %v2002, %v2003
    %v2006 = vmax.f32 %v2004, %v2005
    %v2007 = vrot.slane %v2006, 4
    %v2008 = vmax.f32 %v2006, %v2007
    %v2009 = vrot.slane %v2008, 2
    %v2010 = vmax.f32 %v2008, %v2009
    %v2011 = vrot.slane %v2010, 1
    %v2012 = vmax.f32 %v2010, %v2011
    %2013 = vst [vmem:[#allocation2 + $0xc] sm:$0x1] %v2012
    %v2014 = vld [vmem:[%s2] sm:$0xff]
    %v2015 = vld [vmem:[%s2 + $0x8] sm:$0xff]
    %v2016 = vld [vmem:[%s2 + $0x10] sm:$0xff]
    %v2017 = vld [vmem:[%s2 + $0x18] sm:$0xff]
    %v2018 = vld [vmem:[%s2 + $0x20] sm:$0xff]
    %v2019 = vld [vmem:[%s2 + $0x28] sm:$0xff]
    %v2020 = vld [vmem:[%s2 + $0x30] sm:$0xff]
    %v2021 = vld [vmem:[%s2 + $0x38] sm:$0xff]
    %v2022 = vld [vmem:[%s2 + $0x40] sm:$0xff]
    %v2023 = vld [vmem:[%s2 + $0x48] sm:$0xff]
    %v2024 = vld [vmem:[%s2 + $0x50] sm:$0xff]
    %v2025 = vld [vmem:[%s2 + $0x58] sm:$0xff]
    %v2026 = vld [vmem:[%s2 + $0x60] sm:$0xff]
    %v2027 = vld [vmem:[%s2 + $0x68] sm:$0xff]
    %v2028 = vld [vmem:[%s2 + $0x70] sm:$0xff]
    %v2029 = vld [vmem:[%s2 + $0x78] sm:$0xff]
    %2031 = vset.pattern.permute.xlu0 13
    %2032 = vperm.xlu0 %2031, %v2014
    %v2033 = vpop.permute.xlu0 %2032
    %2036 = vset.pattern.permute.xlu0 13
    %2037 = vperm.xlu0 %2036, %v2015
    %v2038 = vpop.permute.xlu0 %2037
    %2041 = vset.pattern.permute.xlu0 13
    %2042 = vperm.xlu0 %2041, %v2016
    %v2043 = vpop.permute.xlu0 %2042
    %2046 = vset.pattern.permute.xlu0 13
    %2047 = vperm.xlu0 %2046, %v2017
    %v2048 = vpop.permute.xlu0 %2047
    %2051 = vset.pattern.permute.xlu0 13
    %2052 = vperm.xlu0 %2051, %v2018
    %v2053 = vpop.permute.xlu0 %2052
    %2056 = vset.pattern.permute.xlu0 13
    %2057 = vperm.xlu0 %2056, %v2019
    %v2058 = vpop.permute.xlu0 %2057
    %2061 = vset.pattern.permute.xlu0 13
    %2062 = vperm.xlu0 %2061, %v2020
    %v2063 = vpop.permute.xlu0 %2062
    %2066 = vset.pattern.permute.xlu0 13
    %2067 = vperm.xlu0 %2066, %v2021
    %v2068 = vpop.permute.xlu0 %2067
    %2071 = vset.pattern.permute.xlu0 13
    %2072 = vperm.xlu0 %2071, %v2022
    %v2073 = vpop.permute.xlu0 %2072
    %2076 = vset.pattern.permute.xlu0 13
    %2077 = vperm.xlu0 %2076, %v2023
    %v2078 = vpop.permute.xlu0 %2077
    %2081 = vset.pattern.permute.xlu0 13
    %2082 = vperm.xlu0 %2081, %v2024
    %v2083 = vpop.permute.xlu0 %2082
    %2086 = vset.pattern.permute.xlu0 13
    %2087 = vperm.xlu0 %2086, %v2025
    %v2088 = vpop.permute.xlu0 %2087
    %2091 = vset.pattern.permute.xlu0 13
    %2092 = vperm.xlu0 %2091, %v2026
    %v2093 = vpop.permute.xlu0 %2092
    %2096 = vset.pattern.permute.xlu0 13
    %2097 = vperm.xlu0 %2096, %v2027
    %v2098 = vpop.permute.xlu0 %2097
    %2101 = vset.pattern.permute.xlu0 13
    %2102 = vperm.xlu0 %2101, %v2028
    %v2103 = vpop.permute.xlu0 %2102
    %2106 = vset.pattern.permute.xlu0 13
    %2107 = vperm.xlu0 %2106, %v2029
    %v2108 = vpop.permute.xlu0 %2107
    %v2110 = vld [vmem:[%s54] sm:$0xff]
    %v2111 = vld [vmem:[%s54 + $0x8] sm:$0xff]
    %v2112 = vld [vmem:[%s54 + $0x10] sm:$0xff]
    %v2113 = vld [vmem:[%s54 + $0x18] sm:$0xff]
    %v2114 = vld [vmem:[%s54 + $0x20] sm:$0xff]
    %v2115 = vld [vmem:[%s54 + $0x28] sm:$0xff]
    %v2116 = vld [vmem:[%s54 + $0x30] sm:$0xff]
    %v2117 = vld [vmem:[%s54 + $0x38] sm:$0xff]
    %v2118 = vld [vmem:[%s54 + $0x40] sm:$0xff]
    %v2119 = vld [vmem:[%s54 + $0x48] sm:$0xff]
    %v2120 = vld [vmem:[%s54 + $0x50] sm:$0xff]
    %v2121 = vld [vmem:[%s54 + $0x58] sm:$0xff]
    %v2122 = vld [vmem:[%s54 + $0x60] sm:$0xff]
    %v2123 = vld [vmem:[%s54 + $0x68] sm:$0xff]
    %v2124 = vld [vmem:[%s54 + $0x70] sm:$0xff]
    %v2125 = vld [vmem:[%s54 + $0x78] sm:$0xff]
    %v2126 = vmul.f32 %v2110, %v2033
    %v2127 = vmul.f32 %v2111, %v2038
    %v2128 = vmul.f32 %v2112, %v2043
    %v2129 = vmul.f32 %v2113, %v2048
    %v2130 = vmul.f32 %v2114, %v2053
    %v2131 = vmul.f32 %v2115, %v2058
    %v2132 = vmul.f32 %v2116, %v2063
    %v2133 = vmul.f32 %v2117, %v2068
    %v2134 = vmul.f32 %v2118, %v2073
    %v2135 = vmul.f32 %v2119, %v2078
    %v2136 = vmul.f32 %v2120, %v2083
    %v2137 = vmul.f32 %v2121, %v2088
    %v2138 = vmul.f32 %v2122, %v2093
    %v2139 = vmul.f32 %v2123, %v2098
    %v2140 = vmul.f32 %v2124, %v2103
    %v2141 = vmul.f32 %v2125, %v2108
    %v2142 = vmax.f32 %v2126, %v2130
    %v2143 = vmax.f32 %v2127, %v2131
    %v2144 = vmax.f32 %v2128, %v2132
    %v2145 = vmax.f32 %v2129, %v2133
    %v2146 = vmax.f32 %v2142, %v2134
    %v2147 = vmax.f32 %v2143, %v2135
    %v2148 = vmax.f32 %v2144, %v2136
    %v2149 = vmax.f32 %v2145, %v2137
    %v2150 = vmax.f32 %v2146, %v2138
    %v2151 = vmax.f32 %v2147, %v2139
    %v2152 = vmax.f32 %v2148, %v2140
    %v2153 = vmax.f32 %v2149, %v2141
    %v2154 = vmax.f32 %v2150, %v2151
    %v2155 = vmax.f32 %v2152, %v2153
    %v2156 = vmax.f32 %v2154, %v2155
    %v2157 = vrot.slane %v2156, 4
    %v2158 = vmax.f32 %v2156, %v2157
    %v2159 = vrot.slane %v2158, 2
    %v2160 = vmax.f32 %v2158, %v2159
    %v2161 = vrot.slane %v2160, 1
    %v2162 = vmax.f32 %v2160, %v2161
    %2163 = vst [vmem:[#allocation2 + $0xd] sm:$0x1] %v2162
    %v2164 = vld [vmem:[%s2] sm:$0xff]
    %v2165 = vld [vmem:[%s2 + $0x8] sm:$0xff]
    %v2166 = vld [vmem:[%s2 + $0x10] sm:$0xff]
    %v2167 = vld [vmem:[%s2 + $0x18] sm:$0xff]
    %v2168 = vld [vmem:[%s2 + $0x20] sm:$0xff]
    %v2169 = vld [vmem:[%s2 + $0x28] sm:$0xff]
    %v2170 = vld [vmem:[%s2 + $0x30] sm:$0xff]
    %v2171 = vld [vmem:[%s2 + $0x38] sm:$0xff]
    %v2172 = vld [vmem:[%s2 + $0x40] sm:$0xff]
    %v2173 = vld [vmem:[%s2 + $0x48] sm:$0xff]
    %v2174 = vld [vmem:[%s2 + $0x50] sm:$0xff]
    %v2175 = vld [vmem:[%s2 + $0x58] sm:$0xff]
    %v2176 = vld [vmem:[%s2 + $0x60] sm:$0xff]
    %v2177 = vld [vmem:[%s2 + $0x68] sm:$0xff]
    %v2178 = vld [vmem:[%s2 + $0x70] sm:$0xff]
    %v2179 = vld [vmem:[%s2 + $0x78] sm:$0xff]
    %2181 = vset.pattern.permute.xlu0 14
    %2182 = vperm.xlu0 %2181, %v2164
    %v2183 = vpop.permute.xlu0 %2182
    %2186 = vset.pattern.permute.xlu0 14
    %2187 = vperm.xlu0 %2186, %v2165
    %v2188 = vpop.permute.xlu0 %2187
    %2191 = vset.pattern.permute.xlu0 14
    %2192 = vperm.xlu0 %2191, %v2166
    %v2193 = vpop.permute.xlu0 %2192
    %2196 = vset.pattern.permute.xlu0 14
    %2197 = vperm.xlu0 %2196, %v2167
    %v2198 = vpop.permute.xlu0 %2197
    %2201 = vset.pattern.permute.xlu0 14
    %2202 = vperm.xlu0 %2201, %v2168
    %v2203 = vpop.permute.xlu0 %2202
    %2206 = vset.pattern.permute.xlu0 14
    %2207 = vperm.xlu0 %2206, %v2169
    %v2208 = vpop.permute.xlu0 %2207
    %2211 = vset.pattern.permute.xlu0 14
    %2212 = vperm.xlu0 %2211, %v2170
    %v2213 = vpop.permute.xlu0 %2212
    %2216 = vset.pattern.permute.xlu0 14
    %2217 = vperm.xlu0 %2216, %v2171
    %v2218 = vpop.permute.xlu0 %2217
    %2221 = vset.pattern.permute.xlu0 14
    %2222 = vperm.xlu0 %2221, %v2172
    %v2223 = vpop.permute.xlu0 %2222
    %2226 = vset.pattern.permute.xlu0 14
    %2227 = vperm.xlu0 %2226, %v2173
    %v2228 = vpop.permute.xlu0 %2227
    %2231 = vset.pattern.permute.xlu0 14
    %2232 = vperm.xlu0 %2231, %v2174
    %v2233 = vpop.permute.xlu0 %2232
    %2236 = vset.pattern.permute.xlu0 14
    %2237 = vperm.xlu0 %2236, %v2175
    %v2238 = vpop.permute.xlu0 %2237
    %2241 = vset.pattern.permute.xlu0 14
    %2242 = vperm.xlu0 %2241, %v2176
    %v2243 = vpop.permute.xlu0 %2242
    %2246 = vset.pattern.permute.xlu0 14
    %2247 = vperm.xlu0 %2246, %v2177
    %v2248 = vpop.permute.xlu0 %2247
    %2251 = vset.pattern.permute.xlu0 14
    %2252 = vperm.xlu0 %2251, %v2178
    %v2253 = vpop.permute.xlu0 %2252
    %2256 = vset.pattern.permute.xlu0 14
    %2257 = vperm.xlu0 %2256, %v2179
    %v2258 = vpop.permute.xlu0 %2257
    %v2260 = vld [vmem:[%s54] sm:$0xff]
    %v2261 = vld [vmem:[%s54 + $0x8] sm:$0xff]
    %v2262 = vld [vmem:[%s54 + $0x10] sm:$0xff]
    %v2263 = vld [vmem:[%s54 + $0x18] sm:$0xff]
    %v2264 = vld [vmem:[%s54 + $0x20] sm:$0xff]
    %v2265 = vld [vmem:[%s54 + $0x28] sm:$0xff]
    %v2266 = vld [vmem:[%s54 + $0x30] sm:$0xff]
    %v2267 = vld [vmem:[%s54 + $0x38] sm:$0xff]
    %v2268 = vld [vmem:[%s54 + $0x40] sm:$0xff]
    %v2269 = vld [vmem:[%s54 + $0x48] sm:$0xff]
    %v2270 = vld [vmem:[%s54 + $0x50] sm:$0xff]
    %v2271 = vld [vmem:[%s54 + $0x58] sm:$0xff]
    %v2272 = vld [vmem:[%s54 + $0x60] sm:$0xff]
    %v2273 = vld [vmem:[%s54 + $0x68] sm:$0xff]
    %v2274 = vld [vmem:[%s54 + $0x70] sm:$0xff]
    %v2275 = vld [vmem:[%s54 + $0x78] sm:$0xff]
    %v2276 = vmul.f32 %v2260, %v2183
    %v2277 = vmul.f32 %v2261, %v2188
    %v2278 = vmul.f32 %v2262, %v2193
    %v2279 = vmul.f32 %v2263, %v2198
    %v2280 = vmul.f32 %v2264, %v2203
    %v2281 = vmul.f32 %v2265, %v2208
    %v2282 = vmul.f32 %v2266, %v2213
    %v2283 = vmul.f32 %v2267, %v2218
    %v2284 = vmul.f32 %v2268, %v2223
    %v2285 = vmul.f32 %v2269, %v2228
    %v2286 = vmul.f32 %v2270, %v2233
    %v2287 = vmul.f32 %v2271, %v2238
    %v2288 = vmul.f32 %v2272, %v2243
    %v2289 = vmul.f32 %v2273, %v2248
    %v2290 = vmul.f32 %v2274, %v2253
    %v2291 = vmul.f32 %v2275, %v2258
    %v2292 = vmax.f32 %v2276, %v2280
    %v2293 = vmax.f32 %v2277, %v2281
    %v2294 = vmax.f32 %v2278, %v2282
    %v2295 = vmax.f32 %v2279, %v2283
    %v2296 = vmax.f32 %v2292, %v2284
    %v2297 = vmax.f32 %v2293, %v2285
    %v2298 = vmax.f32 %v2294, %v2286
    %v2299 = vmax.f32 %v2295, %v2287
    %v2300 = vmax.f32 %v2296, %v2288
    %v2301 = vmax.f32 %v2297, %v2289
    %v2302 = vmax.f32 %v2298, %v2290
    %v2303 = vmax.f32 %v2299, %v2291
    %v2304 = vmax.f32 %v2300, %v2301
    %v2305 = vmax.f32 %v2302, %v2303
    %v2306 = vmax.f32 %v2304, %v2305
    %v2307 = vrot.slane %v2306, 4
    %v2308 = vmax.f32 %v2306, %v2307
    %v2309 = vrot.slane %v2308, 2
    %v2310 = vmax.f32 %v2308, %v2309
    %v2311 = vrot.slane %v2310, 1
    %v2312 = vmax.f32 %v2310, %v2311
    %2313 = vst [vmem:[#allocation2 + $0xe] sm:$0x1] %v2312
    %v2314 = vld [vmem:[%s2] sm:$0xff]
    %v2315 = vld [vmem:[%s2 + $0x8] sm:$0xff]
    %v2316 = vld [vmem:[%s2 + $0x10] sm:$0xff]
    %v2317 = vld [vmem:[%s2 + $0x18] sm:$0xff]
    %v2318 = vld [vmem:[%s2 + $0x20] sm:$0xff]
    %v2319 = vld [vmem:[%s2 + $0x28] sm:$0xff]
    %v2320 = vld [vmem:[%s2 + $0x30] sm:$0xff]
    %v2321 = vld [vmem:[%s2 + $0x38] sm:$0xff]
    %v2322 = vld [vmem:[%s2 + $0x40] sm:$0xff]
    %v2323 = vld [vmem:[%s2 + $0x48] sm:$0xff]
    %v2324 = vld [vmem:[%s2 + $0x50] sm:$0xff]
    %v2325 = vld [vmem:[%s2 + $0x58] sm:$0xff]
    %v2326 = vld [vmem:[%s2 + $0x60] sm:$0xff]
    %v2327 = vld [vmem:[%s2 + $0x68] sm:$0xff]
    %v2328 = vld [vmem:[%s2 + $0x70] sm:$0xff]
    %v2329 = vld [vmem:[%s2 + $0x78] sm:$0xff]
    %2331 = vset.pattern.permute.xlu0 15
    %2332 = vperm.xlu0 %2331, %v2314
    %v2333 = vpop.permute.xlu0 %2332
    %2336 = vset.pattern.permute.xlu0 15
    %2337 = vperm.xlu0 %2336, %v2315
    %v2338 = vpop.permute.xlu0 %2337
    %2341 = vset.pattern.permute.xlu0 15
    %2342 = vperm.xlu0 %2341, %v2316
    %v2343 = vpop.permute.xlu0 %2342
    %2346 = vset.pattern.permute.xlu0 15
    %2347 = vperm.xlu0 %2346, %v2317
    %v2348 = vpop.permute.xlu0 %2347
    %2351 = vset.pattern.permute.xlu0 15
    %2352 = vperm.xlu0 %2351, %v2318
    %v2353 = vpop.permute.xlu0 %2352
    %2356 = vset.pattern.permute.xlu0 15
    %2357 = vperm.xlu0 %2356, %v2319
    %v2358 = vpop.permute.xlu0 %2357
    %2361 = vset.pattern.permute.xlu0 15
    %2362 = vperm.xlu0 %2361, %v2320
    %v2363 = vpop.permute.xlu0 %2362
    %2366 = vset.pattern.permute.xlu0 15
    %2367 = vperm.xlu0 %2366, %v2321
    %v2368 = vpop.permute.xlu0 %2367
    %2371 = vset.pattern.permute.xlu0 15
    %2372 = vperm.xlu0 %2371, %v2322
    %v2373 = vpop.permute.xlu0 %2372
    %2376 = vset.pattern.permute.xlu0 15
    %2377 = vperm.xlu0 %2376, %v2323
    %v2378 = vpop.permute.xlu0 %2377
    %2381 = vset.pattern.permute.xlu0 15
    %2382 = vperm.xlu0 %2381, %v2324
    %v2383 = vpop.permute.xlu0 %2382
    %2386 = vset.pattern.permute.xlu0 15
    %2387 = vperm.xlu0 %2386, %v2325
    %v2388 = vpop.permute.xlu0 %2387
    %2391 = vset.pattern.permute.xlu0 15
    %2392 = vperm.xlu0 %2391, %v2326
    %v2393 = vpop.permute.xlu0 %2392
    %2396 = vset.pattern.permute.xlu0 15
    %2397 = vperm.xlu0 %2396, %v2327
    %v2398 = vpop.permute.xlu0 %2397
    %2401 = vset.pattern.permute.xlu0 15
    %2402 = vperm.xlu0 %2401, %v2328
    %v2403 = vpop.permute.xlu0 %2402
    %2406 = vset.pattern.permute.xlu0 15
    %2407 = vperm.xlu0 %2406, %v2329
    %v2408 = vpop.permute.xlu0 %2407
    %v2410 = vld [vmem:[%s54] sm:$0xff]
    %v2411 = vld [vmem:[%s54 + $0x8] sm:$0xff]
    %v2412 = vld [vmem:[%s54 + $0x10] sm:$0xff]
    %v2413 = vld [vmem:[%s54 + $0x18] sm:$0xff]
    %v2414 = vld [vmem:[%s54 + $0x20] sm:$0xff]
    %v2415 = vld [vmem:[%s54 + $0x28] sm:$0xff]
    %v2416 = vld [vmem:[%s54 + $0x30] sm:$0xff]
    %v2417 = vld [vmem:[%s54 + $0x38] sm:$0xff]
    %v2418 = vld [vmem:[%s54 + $0x40] sm:$0xff]
    %v2419 = vld [vmem:[%s54 + $0x48] sm:$0xff]
    %v2420 = vld [vmem:[%s54 + $0x50] sm:$0xff]
    %v2421 = vld [vmem:[%s54 + $0x58] sm:$0xff]
    %v2422 = vld [vmem:[%s54 + $0x60] sm:$0xff]
    %v2423 = vld [vmem:[%s54 + $0x68] sm:$0xff]
    %v2424 = vld [vmem:[%s54 + $0x70] sm:$0xff]
    %v2425 = vld [vmem:[%s54 + $0x78] sm:$0xff]
    %v2426 = vmul.f32 %v2410, %v2333
    %v2427 = vmul.f32 %v2411, %v2338
    %v2428 = vmul.f32 %v2412, %v2343
    %v2429 = vmul.f32 %v2413, %v2348
    %v2430 = vmul.f32 %v2414, %v2353
    %v2431 = vmul.f32 %v2415, %v2358
    %v2432 = vmul.f32 %v2416, %v2363
    %v2433 = vmul.f32 %v2417, %v2368
    %v2434 = vmul.f32 %v2418, %v2373
    %v2435 = vmul.f32 %v2419, %v2378
    %v2436 = vmul.f32 %v2420, %v2383
    %v2437 = vmul.f32 %v2421, %v2388
    %v2438 = vmul.f32 %v2422, %v2393
    %v2439 = vmul.f32 %v2423, %v2398
    %v2440 = vmul.f32 %v2424, %v2403
    %v2441 = vmul.f32 %v2425, %v2408
    %v2442 = vmax.f32 %v2426, %v2430
    %v2443 = vmax.f32 %v2427, %v2431
    %v2444 = vmax.f32 %v2428, %v2432
    %v2445 = vmax.f32 %v2429, %v2433
    %v2446 = vmax.f32 %v2442, %v2434
    %v2447 = vmax.f32 %v2443, %v2435
    %v2448 = vmax.f32 %v2444, %v2436
    %v2449 = vmax.f32 %v2445, %v2437
    %v2450 = vmax.f32 %v2446, %v2438
    %v2451 = vmax.f32 %v2447, %v2439
    %v2452 = vmax.f32 %v2448, %v2440
    %v2453 = vmax.f32 %v2449, %v2441
    %v2454 = vmax.f32 %v2450, %v2451
    %v2455 = vmax.f32 %v2452, %v2453
    %v2456 = vmax.f32 %v2454, %v2455
    %v2457 = vrot.slane %v2456, 4
    %v2458 = vmax.f32 %v2456, %v2457
    %v2459 = vrot.slane %v2458, 2
    %v2460 = vmax.f32 %v2458, %v2459
    %v2461 = vrot.slane %v2460, 1
    %v2462 = vmax.f32 %v2460, %v2461
    %2463 = vst [vmem:[#allocation2 + $0xf] sm:$0x1] %v2462
    %v2464 = vld [vmem:[%s2] sm:$0xff]
    %v2465 = vld [vmem:[%s2 + $0x8] sm:$0xff]
    %v2466 = vld [vmem:[%s2 + $0x10] sm:$0xff]
    %v2467 = vld [vmem:[%s2 + $0x18] sm:$0xff]
    %v2468 = vld [vmem:[%s2 + $0x20] sm:$0xff]
    %v2469 = vld [vmem:[%s2 + $0x28] sm:$0xff]
    %v2470 = vld [vmem:[%s2 + $0x30] sm:$0xff]
    %v2471 = vld [vmem:[%s2 + $0x38] sm:$0xff]
    %v2472 = vld [vmem:[%s2 + $0x40] sm:$0xff]
    %v2473 = vld [vmem:[%s2 + $0x48] sm:$0xff]
    %v2474 = vld [vmem:[%s2 + $0x50] sm:$0xff]
    %v2475 = vld [vmem:[%s2 + $0x58] sm:$0xff]
    %v2476 = vld [vmem:[%s2 + $0x60] sm:$0xff]
    %v2477 = vld [vmem:[%s2 + $0x68] sm:$0xff]
    %v2478 = vld [vmem:[%s2 + $0x70] sm:$0xff]
    %v2479 = vld [vmem:[%s2 + $0x78] sm:$0xff]
    %2481 = vset.pattern.permute.xlu0 16
    %2482 = vperm.xlu0 %2481, %v2464
    %v2483 = vpop.permute.xlu0 %2482
    %2486 = vset.pattern.permute.xlu0 16
    %2487 = vperm.xlu0 %2486, %v2465
    %v2488 = vpop.permute.xlu0 %2487
    %2491 = vset.pattern.permute.xlu0 16
    %2492 = vperm.xlu0 %2491, %v2466
    %v2493 = vpop.permute.xlu0 %2492
    %2496 = vset.pattern.permute.xlu0 16
    %2497 = vperm.xlu0 %2496, %v2467
    %v2498 = vpop.permute.xlu0 %2497
    %2501 = vset.pattern.permute.xlu0 16
    %2502 = vperm.xlu0 %2501, %v2468
    %v2503 = vpop.permute.xlu0 %2502
    %2506 = vset.pattern.permute.xlu0 16
    %2507 = vperm.xlu0 %2506, %v2469
    %v2508 = vpop.permute.xlu0 %2507
    %2511 = vset.pattern.permute.xlu0 16
    %2512 = vperm.xlu0 %2511, %v2470
    %v2513 = vpop.permute.xlu0 %2512
    %2516 = vset.pattern.permute.xlu0 16
    %2517 = vperm.xlu0 %2516, %v2471
    %v2518 = vpop.permute.xlu0 %2517
    %2521 = vset.pattern.permute.xlu0 16
    %2522 = vperm.xlu0 %2521, %v2472
    %v2523 = vpop.permute.xlu0 %2522
    %2526 = vset.pattern.permute.xlu0 16
    %2527 = vperm.xlu0 %2526, %v2473
    %v2528 = vpop.permute.xlu0 %2527
    %2531 = vset.pattern.permute.xlu0 16
    %2532 = vperm.xlu0 %2531, %v2474
    %v2533 = vpop.permute.xlu0 %2532
    %2536 = vset.pattern.permute.xlu0 16
    %2537 = vperm.xlu0 %2536, %v2475
    %v2538 = vpop.permute.xlu0 %2537
    %2541 = vset.pattern.permute.xlu0 16
    %2542 = vperm.xlu0 %2541, %v2476
    %v2543 = vpop.permute.xlu0 %2542
    %2546 = vset.pattern.permute.xlu0 16
    %2547 = vperm.xlu0 %2546, %v2477
    %v2548 = vpop.permute.xlu0 %2547
    %2551 = vset.pattern.permute.xlu0 16
    %2552 = vperm.xlu0 %2551, %v2478
    %v2553 = vpop.permute.xlu0 %2552
    %2556 = vset.pattern.permute.xlu0 16
    %2557 = vperm.xlu0 %2556, %v2479
    %v2558 = vpop.permute.xlu0 %2557
    %v2560 = vld [vmem:[%s54] sm:$0xff]
    %v2561 = vld [vmem:[%s54 + $0x8] sm:$0xff]
    %v2562 = vld [vmem:[%s54 + $0x10] sm:$0xff]
    %v2563 = vld [vmem:[%s54 + $0x18] sm:$0xff]
    %v2564 = vld [vmem:[%s54 + $0x20] sm:$0xff]
    %v2565 = vld [vmem:[%s54 + $0x28] sm:$0xff]
    %v2566 = vld [vmem:[%s54 + $0x30] sm:$0xff]
    %v2567 = vld [vmem:[%s54 + $0x38] sm:$0xff]
    %v2568 = vld [vmem:[%s54 + $0x40] sm:$0xff]
    %v2569 = vld [vmem:[%s54 + $0x48] sm:$0xff]
    %v2570 = vld [vmem:[%s54 + $0x50] sm:$0xff]
    %v2571 = vld [vmem:[%s54 + $0x58] sm:$0xff]
    %v2572 = vld [vmem:[%s54 + $0x60] sm:$0xff]
    %v2573 = vld [vmem:[%s54 + $0x68] sm:$0xff]
    %v2574 = vld [vmem:[%s54 + $0x70] sm:$0xff]
    %v2575 = vld [vmem:[%s54 + $0x78] sm:$0xff]
    %v2576 = vmul.f32 %v2560, %v2483
    %v2577 = vmul.f32 %v2561, %v2488
    %v2578 = vmul.f32 %v2562, %v2493
    %v2579 = vmul.f32 %v2563, %v2498
    %v2580 = vmul.f32 %v2564, %v2503
    %v2581 = vmul.f32 %v2565, %v2508
    %v2582 = vmul.f32 %v2566, %v2513
    %v2583 = vmul.f32 %v2567, %v2518
    %v2584 = vmul.f32 %v2568, %v2523
    %v2585 = vmul.f32 %v2569, %v2528
    %v2586 = vmul.f32 %v2570, %v2533
    %v2587 = vmul.f32 %v2571, %v2538
    %v2588 = vmul.f32 %v2572, %v2543
    %v2589 = vmul.f32 %v2573, %v2548
    %v2590 = vmul.f32 %v2574, %v2553
    %v2591 = vmul.f32 %v2575, %v2558
    %v2592 = vmax.f32 %v2576, %v2580
    %v2593 = vmax.f32 %v2577, %v2581
    %v2594 = vmax.f32 %v2578, %v2582
    %v2595 = vmax.f32 %v2579, %v2583
    %v2596 = vmax.f32 %v2592, %v2584
    %v2597 = vmax.f32 %v2593, %v2585
    %v2598 = vmax.f32 %v2594, %v2586
    %v2599 = vmax.f32 %v2595, %v2587
    %v2600 = vmax.f32 %v2596, %v2588
    %v2601 = vmax.f32 %v2597, %v2589
    %v2602 = vmax.f32 %v2598, %v2590
    %v2603 = vmax.f32 %v2599, %v2591
    %v2604 = vmax.f32 %v2600, %v2601
    %v2605 = vmax.f32 %v2602, %v2603
    %v2606 = vmax.f32 %v2604, %v2605
    %v2607 = vrot.slane %v2606, 4
    %v2608 = vmax.f32 %v2606, %v2607
    %v2609 = vrot.slane %v2608, 2
    %v2610 = vmax.f32 %v2608, %v2609
    %v2611 = vrot.slane %v2610, 1
    %v2612 = vmax.f32 %v2610, %v2611
    %2613 = vst [vmem:[#allocation2 + $0x10] sm:$0x1] %v2612
    %v2614 = vld [vmem:[%s2] sm:$0xff]
    %v2615 = vld [vmem:[%s2 + $0x8] sm:$0xff]
    %v2616 = vld [vmem:[%s2 + $0x10] sm:$0xff]
    %v2617 = vld [vmem:[%s2 + $0x18] sm:$0xff]
    %v2618 = vld [vmem:[%s2 + $0x20] sm:$0xff]
    %v2619 = vld [vmem:[%s2 + $0x28] sm:$0xff]
    %v2620 = vld [vmem:[%s2 + $0x30] sm:$0xff]
    %v2621 = vld [vmem:[%s2 + $0x38] sm:$0xff]
    %v2622 = vld [vmem:[%s2 + $0x40] sm:$0xff]
    %v2623 = vld [vmem:[%s2 + $0x48] sm:$0xff]
    %v2624 = vld [vmem:[%s2 + $0x50] sm:$0xff]
    %v2625 = vld [vmem:[%s2 + $0x58] sm:$0xff]
    %v2626 = vld [vmem:[%s2 + $0x60] sm:$0xff]
    %v2627 = vld [vmem:[%s2 + $0x68] sm:$0xff]
    %v2628 = vld [vmem:[%s2 + $0x70] sm:$0xff]
    %v2629 = vld [vmem:[%s2 + $0x78] sm:$0xff]
    %2631 = vset.pattern.permute.xlu0 17
    %2632 = vperm.xlu0 %2631, %v2614
    %v2633 = vpop.permute.xlu0 %2632
    %2636 = vset.pattern.permute.xlu0 17
    %2637 = vperm.xlu0 %2636, %v2615
    %v2638 = vpop.permute.xlu0 %2637
    %2641 = vset.pattern.permute.xlu0 17
    %2642 = vperm.xlu0 %2641, %v2616
    %v2643 = vpop.permute.xlu0 %2642
    %2646 = vset.pattern.permute.xlu0 17
    %2647 = vperm.xlu0 %2646, %v2617
    %v2648 = vpop.permute.xlu0 %2647
    %2651 = vset.pattern.permute.xlu0 17
    %2652 = vperm.xlu0 %2651, %v2618
    %v2653 = vpop.permute.xlu0 %2652
    %2656 = vset.pattern.permute.xlu0 17
    %2657 = vperm.xlu0 %2656, %v2619
    %v2658 = vpop.permute.xlu0 %2657
    %2661 = vset.pattern.permute.xlu0 17
    %2662 = vperm.xlu0 %2661, %v2620
    %v2663 = vpop.permute.xlu0 %2662
    %2666 = vset.pattern.permute.xlu0 17
    %2667 = vperm.xlu0 %2666, %v2621
    %v2668 = vpop.permute.xlu0 %2667
    %2671 = vset.pattern.permute.xlu0 17
    %2672 = vperm.xlu0 %2671, %v2622
    %v2673 = vpop.permute.xlu0 %2672
    %2676 = vset.pattern.permute.xlu0 17
    %2677 = vperm.xlu0 %2676, %v2623
    %v2678 = vpop.permute.xlu0 %2677
    %2681 = vset.pattern.permute.xlu0 17
    %2682 = vperm.xlu0 %2681, %v2624
    %v2683 = vpop.permute.xlu0 %2682
    %2686 = vset.pattern.permute.xlu0 17
    %2687 = vperm.xlu0 %2686, %v2625
    %v2688 = vpop.permute.xlu0 %2687
    %2691 = vset.pattern.permute.xlu0 17
    %2692 = vperm.xlu0 %2691, %v2626
    %v2693 = vpop.permute.xlu0 %2692
    %2696 = vset.pattern.permute.xlu0 17
    %2697 = vperm.xlu0 %2696, %v2627
    %v2698 = vpop.permute.xlu0 %2697
    %2701 = vset.pattern.permute.xlu0 17
    %2702 = vperm.xlu0 %2701, %v2628
    %v2703 = vpop.permute.xlu0 %2702
    %2706 = vset.pattern.permute.xlu0 17
    %2707 = vperm.xlu0 %2706, %v2629
    %v2708 = vpop.permute.xlu0 %2707
    %v2710 = vld [vmem:[%s54] sm:$0xff]
    %v2711 = vld [vmem:[%s54 + $0x8] sm:$0xff]
    %v2712 = vld [vmem:[%s54 + $0x10] sm:$0xff]
    %v2713 = vld [vmem:[%s54 + $0x18] sm:$0xff]
    %v2714 = vld [vmem:[%s54 + $0x20] sm:$0xff]
    %v2715 = vld [vmem:[%s54 + $0x28] sm:$0xff]
    %v2716 = vld [vmem:[%s54 + $0x30] sm:$0xff]
    %v2717 = vld [vmem:[%s54 + $0x38] sm:$0xff]
    %v2718 = vld [vmem:[%s54 + $0x40] sm:$0xff]
    %v2719 = vld [vmem:[%s54 + $0x48] sm:$0xff]
    %v2720 = vld [vmem:[%s54 + $0x50] sm:$0xff]
    %v2721 = vld [vmem:[%s54 + $0x58] sm:$0xff]
    %v2722 = vld [vmem:[%s54 + $0x60] sm:$0xff]
    %v2723 = vld [vmem:[%s54 + $0x68] sm:$0xff]
    %v2724 = vld [vmem:[%s54 + $0x70] sm:$0xff]
    %v2725 = vld [vmem:[%s54 + $0x78] sm:$0xff]
    %v2726 = vmul.f32 %v2710, %v2633
    %v2727 = vmul.f32 %v2711, %v2638
    %v2728 = vmul.f32 %v2712, %v2643
    %v2729 = vmul.f32 %v2713, %v2648
    %v2730 = vmul.f32 %v2714, %v2653
    %v2731 = vmul.f32 %v2715, %v2658
    %v2732 = vmul.f32 %v2716, %v2663
    %v2733 = vmul.f32 %v2717, %v2668
    %v2734 = vmul.f32 %v2718, %v2673
    %v2735 = vmul.f32 %v2719, %v2678
    %v2736 = vmul.f32 %v2720, %v2683
    %v2737 = vmul.f32 %v2721, %v2688
    %v2738 = vmul.f32 %v2722, %v2693
    %v2739 = vmul.f32 %v2723, %v2698
    %v2740 = vmul.f32 %v2724, %v2703
    %v2741 = vmul.f32 %v2725, %v2708
    %v2742 = vmax.f32 %v2726, %v2730
    %v2743 = vmax.f32 %v2727, %v2731
    %v2744 = vmax.f32 %v2728, %v2732
    %v2745 = vmax.f32 %v2729, %v2733
    %v2746 = vmax.f32 %v2742, %v2734
    %v2747 = vmax.f32 %v2743, %v2735
    %v2748 = vmax.f32 %v2744, %v2736
    %v2749 = vmax.f32 %v2745, %v2737
    %v2750 = vmax.f32 %v2746, %v2738
    %v2751 = vmax.f32 %v2747, %v2739
    %v2752 = vmax.f32 %v2748, %v2740
    %v2753 = vmax.f32 %v2749, %v2741
    %v2754 = vmax.f32 %v2750, %v2751
    %v2755 = vmax.f32 %v2752, %v2753
    %v2756 = vmax.f32 %v2754, %v2755
    %v2757 = vrot.slane %v2756, 4
    %v2758 = vmax.f32 %v2756, %v2757
    %v2759 = vrot.slane %v2758, 2
    %v2760 = vmax.f32 %v2758, %v2759
    %v2761 = vrot.slane %v2760, 1
    %v2762 = vmax.f32 %v2760, %v2761
    %2763 = vst [vmem:[#allocation2 + $0x11] sm:$0x1] %v2762
    %v2764 = vld [vmem:[%s2] sm:$0xff]
    %v2765 = vld [vmem:[%s2 + $0x8] sm:$0xff]
    %v2766 = vld [vmem:[%s2 + $0x10] sm:$0xff]
    %v2767 = vld [vmem:[%s2 + $0x18] sm:$0xff]
    %v2768 = vld [vmem:[%s2 + $0x20] sm:$0xff]
    %v2769 = vld [vmem:[%s2 + $0x28] sm:$0xff]
    %v2770 = vld [vmem:[%s2 + $0x30] sm:$0xff]
    %v2771 = vld [vmem:[%s2 + $0x38] sm:$0xff]
    %v2772 = vld [vmem:[%s2 + $0x40] sm:$0xff]
    %v2773 = vld [vmem:[%s2 + $0x48] sm:$0xff]
    %v2774 = vld [vmem:[%s2 + $0x50] sm:$0xff]
    %v2775 = vld [vmem:[%s2 + $0x58] sm:$0xff]
    %v2776 = vld [vmem:[%s2 + $0x60] sm:$0xff]
    %v2777 = vld [vmem:[%s2 + $0x68] sm:$0xff]
    %v2778 = vld [vmem:[%s2 + $0x70] sm:$0xff]
    %v2779 = vld [vmem:[%s2 + $0x78] sm:$0xff]
    %2781 = vset.pattern.permute.xlu0 18
    %2782 = vperm.xlu0 %2781, %v2764
    %v2783 = vpop.permute.xlu0 %2782
    %2786 = vset.pattern.permute.xlu0 18
    %2787 = vperm.xlu0 %2786, %v2765
    %v2788 = vpop.permute.xlu0 %2787
    %2791 = vset.pattern.permute.xlu0 18
    %2792 = vperm.xlu0 %2791, %v2766
    %v2793 = vpop.permute.xlu0 %2792
    %2796 = vset.pattern.permute.xlu0 18
    %2797 = vperm.xlu0 %2796, %v2767
    %v2798 = vpop.permute.xlu0 %2797
    %2801 = vset.pattern.permute.xlu0 18
    %2802 = vperm.xlu0 %2801, %v2768
    %v2803 = vpop.permute.xlu0 %2802
    %2806 = vset.pattern.permute.xlu0 18
    %2807 = vperm.xlu0 %2806, %v2769
    %v2808 = vpop.permute.xlu0 %2807
    %2811 = vset.pattern.permute.xlu0 18
    %2812 = vperm.xlu0 %2811, %v2770
    %v2813 = vpop.permute.xlu0 %2812
    %2816 = vset.pattern.permute.xlu0 18
    %2817 = vperm.xlu0 %2816, %v2771
    %v2818 = vpop.permute.xlu0 %2817
    %2821 = vset.pattern.permute.xlu0 18
    %2822 = vperm.xlu0 %2821, %v2772
    %v2823 = vpop.permute.xlu0 %2822
    %2826 = vset.pattern.permute.xlu0 18
    %2827 = vperm.xlu0 %2826, %v2773
    %v2828 = vpop.permute.xlu0 %2827
    %2831 = vset.pattern.permute.xlu0 18
    %2832 = vperm.xlu0 %2831, %v2774
    %v2833 = vpop.permute.xlu0 %2832
    %2836 = vset.pattern.permute.xlu0 18
    %2837 = vperm.xlu0 %2836, %v2775
    %v2838 = vpop.permute.xlu0 %2837
    %2841 = vset.pattern.permute.xlu0 18
    %2842 = vperm.xlu0 %2841, %v2776
    %v2843 = vpop.permute.xlu0 %2842
    %2846 = vset.pattern.permute.xlu0 18
    %2847 = vperm.xlu0 %2846, %v2777
    %v2848 = vpop.permute.xlu0 %2847
    %2851 = vset.pattern.permute.xlu0 18
    %2852 = vperm.xlu0 %2851, %v2778
    %v2853 = vpop.permute.xlu0 %2852
    %2856 = vset.pattern.permute.xlu0 18
    %2857 = vperm.xlu0 %2856, %v2779
    %v2858 = vpop.permute.xlu0 %2857
    %v2860 = vld [vmem:[%s54] sm:$0xff]
    %v2861 = vld [vmem:[%s54 + $0x8] sm:$0xff]
    %v2862 = vld [vmem:[%s54 + $0x10] sm:$0xff]
    %v2863 = vld [vmem:[%s54 + $0x18] sm:$0xff]
    %v2864 = vld [vmem:[%s54 + $0x20] sm:$0xff]
    %v2865 = vld [vmem:[%s54 + $0x28] sm:$0xff]
    %v2866 = vld [vmem:[%s54 + $0x30] sm:$0xff]
    %v2867 = vld [vmem:[%s54 + $0x38] sm:$0xff]
    %v2868 = vld [vmem:[%s54 + $0x40] sm:$0xff]
    %v2869 = vld [vmem:[%s54 + $0x48] sm:$0xff]
    %v2870 = vld [vmem:[%s54 + $0x50] sm:$0xff]
    %v2871 = vld [vmem:[%s54 + $0x58] sm:$0xff]
    %v2872 = vld [vmem:[%s54 + $0x60] sm:$0xff]
    %v2873 = vld [vmem:[%s54 + $0x68] sm:$0xff]
    %v2874 = vld [vmem:[%s54 + $0x70] sm:$0xff]
    %v2875 = vld [vmem:[%s54 + $0x78] sm:$0xff]
    %v2876 = vmul.f32 %v2860, %v2783
    %v2877 = vmul.f32 %v2861, %v2788
    %v2878 = vmul.f32 %v2862, %v2793
    %v2879 = vmul.f32 %v2863, %v2798
    %v2880 = vmul.f32 %v2864, %v2803
    %v2881 = vmul.f32 %v2865, %v2808
    %v2882 = vmul.f32 %v2866, %v2813
    %v2883 = vmul.f32 %v2867, %v2818
    %v2884 = vmul.f32 %v2868, %v2823
    %v2885 = vmul.f32 %v2869, %v2828
    %v2886 = vmul.f32 %v2870, %v2833
    %v2887 = vmul.f32 %v2871, %v2838
    %v2888 = vmul.f32 %v2872, %v2843
    %v2889 = vmul.f32 %v2873, %v2848
    %v2890 = vmul.f32 %v2874, %v2853
    %v2891 = vmul.f32 %v2875, %v2858
    %v2892 = vmax.f32 %v2876, %v2880
    %v2893 = vmax.f32 %v2877, %v2881
    %v2894 = vmax.f32 %v2878, %v2882
    %v2895 = vmax.f32 %v2879, %v2883
    %v2896 = vmax.f32 %v2892, %v2884
    %v2897 = vmax.f32 %v2893, %v2885
    %v2898 = vmax.f32 %v2894, %v2886
    %v2899 = vmax.f32 %v2895, %v2887
    %v2900 = vmax.f32 %v2896, %v2888
    %v2901 = vmax.f32 %v2897, %v2889
    %v2902 = vmax.f32 %v2898, %v2890
    %v2903 = vmax.f32 %v2899, %v2891
    %v2904 = vmax.f32 %v2900, %v2901
    %v2905 = vmax.f32 %v2902, %v2903
    %v2906 = vmax.f32 %v2904, %v2905
    %v2907 = vrot.slane %v2906, 4
    %v2908 = vmax.f32 %v2906, %v2907
    %v2909 = vrot.slane %v2908, 2
    %v2910 = vmax.f32 %v2908, %v2909
    %v2911 = vrot.slane %v2910, 1
    %v2912 = vmax.f32 %v2910, %v2911
    %2913 = vst [vmem:[#allocation2 + $0x12] sm:$0x1] %v2912
    %v2914 = vld [vmem:[%s2] sm:$0xff]
    %v2915 = vld [vmem:[%s2 + $0x8] sm:$0xff]
    %v2916 = vld [vmem:[%s2 + $0x10] sm:$0xff]
    %v2917 = vld [vmem:[%s2 + $0x18] sm:$0xff]
    %v2918 = vld [vmem:[%s2 + $0x20] sm:$0xff]
    %v2919 = vld [vmem:[%s2 + $0x28] sm:$0xff]
    %v2920 = vld [vmem:[%s2 + $0x30] sm:$0xff]
    %v2921 = vld [vmem:[%s2 + $0x38] sm:$0xff]
    %v2922 = vld [vmem:[%s2 + $0x40] sm:$0xff]
    %v2923 = vld [vmem:[%s2 + $0x48] sm:$0xff]
    %v2924 = vld [vmem:[%s2 + $0x50] sm:$0xff]
    %v2925 = vld [vmem:[%s2 + $0x58] sm:$0xff]
    %v2926 = vld [vmem:[%s2 + $0x60] sm:$0xff]
    %v2927 = vld [vmem:[%s2 + $0x68] sm:$0xff]
    %v2928 = vld [vmem:[%s2 + $0x70] sm:$0xff]
    %v2929 = vld [vmem:[%s2 + $0x78] sm:$0xff]
    %2931 = vset.pattern.permute.xlu0 19
    %2932 = vperm.xlu0 %2931, %v2914
    %v2933 = vpop.permute.xlu0 %2932
    %2936 = vset.pattern.permute.xlu0 19
    %2937 = vperm.xlu0 %2936, %v2915
    %v2938 = vpop.permute.xlu0 %2937
    %2941 = vset.pattern.permute.xlu0 19
    %2942 = vperm.xlu0 %2941, %v2916
    %v2943 = vpop.permute.xlu0 %2942
    %2946 = vset.pattern.permute.xlu0 19
    %2947 = vperm.xlu0 %2946, %v2917
    %v2948 = vpop.permute.xlu0 %2947
    %2951 = vset.pattern.permute.xlu0 19
    %2952 = vperm.xlu0 %2951, %v2918
    %v2953 = vpop.permute.xlu0 %2952
    %2956 = vset.pattern.permute.xlu0 19
    %2957 = vperm.xlu0 %2956, %v2919
    %v2958 = vpop.permute.xlu0 %2957
    %2961 = vset.pattern.permute.xlu0 19
    %2962 = vperm.xlu0 %2961, %v2920
    %v2963 = vpop.permute.xlu0 %2962
    %2966 = vset.pattern.permute.xlu0 19
    %2967 = vperm.xlu0 %2966, %v2921
    %v2968 = vpop.permute.xlu0 %2967
    %2971 = vset.pattern.permute.xlu0 19
    %2972 = vperm.xlu0 %2971, %v2922
    %v2973 = vpop.permute.xlu0 %2972
    %2976 = vset.pattern.permute.xlu0 19
    %2977 = vperm.xlu0 %2976, %v2923
    %v2978 = vpop.permute.xlu0 %2977
    %2981 = vset.pattern.permute.xlu0 19
    %2982 = vperm.xlu0 %2981, %v2924
    %v2983 = vpop.permute.xlu0 %2982
    %2986 = vset.pattern.permute.xlu0 19
    %2987 = vperm.xlu0 %2986, %v2925
    %v2988 = vpop.permute.xlu0 %2987
    %2991 = vset.pattern.permute.xlu0 19
    %2992 = vperm.xlu0 %2991, %v2926
    %v2993 = vpop.permute.xlu0 %2992
    %2996 = vset.pattern.permute.xlu0 19
    %2997 = vperm.xlu0 %2996, %v2927
    %v2998 = vpop.permute.xlu0 %2997
    %3001 = vset.pattern.permute.xlu0 19
    %3002 = vperm.xlu0 %3001, %v2928
    %v3003 = vpop.permute.xlu0 %3002
    %3006 = vset.pattern.permute.xlu0 19
    %3007 = vperm.xlu0 %3006, %v2929
    %v3008 = vpop.permute.xlu0 %3007
    %v3010 = vld [vmem:[%s54] sm:$0xff]
    %v3011 = vld [vmem:[%s54 + $0x8] sm:$0xff]
    %v3012 = vld [vmem:[%s54 + $0x10] sm:$0xff]
    %v3013 = vld [vmem:[%s54 + $0x18] sm:$0xff]
    %v3014 = vld [vmem:[%s54 + $0x20] sm:$0xff]
    %v3015 = vld [vmem:[%s54 + $0x28] sm:$0xff]
    %v3016 = vld [vmem:[%s54 + $0x30] sm:$0xff]
    %v3017 = vld [vmem:[%s54 + $0x38] sm:$0xff]
    %v3018 = vld [vmem:[%s54 + $0x40] sm:$0xff]
    %v3019 = vld [vmem:[%s54 + $0x48] sm:$0xff]
    %v3020 = vld [vmem:[%s54 + $0x50] sm:$0xff]
    %v3021 = vld [vmem:[%s54 + $0x58] sm:$0xff]
    %v3022 = vld [vmem:[%s54 + $0x60] sm:$0xff]
    %v3023 = vld [vmem:[%s54 + $0x68] sm:$0xff]
    %v3024 = vld [vmem:[%s54 + $0x70] sm:$0xff]
    %v3025 = vld [vmem:[%s54 + $0x78] sm:$0xff]
    %v3026 = vmul.f32 %v3010, %v2933
    %v3027 = vmul.f32 %v3011, %v2938
    %v3028 = vmul.f32 %v3012, %v2943
    %v3029 = vmul.f32 %v3013, %v2948
    %v3030 = vmul.f32 %v3014, %v2953
    %v3031 = vmul.f32 %v3015, %v2958
    %v3032 = vmul.f32 %v3016, %v2963
    %v3033 = vmul.f32 %v3017, %v2968
    %v3034 = vmul.f32 %v3018, %v2973
    %v3035 = vmul.f32 %v3019, %v2978
    %v3036 = vmul.f32 %v3020, %v2983
    %v3037 = vmul.f32 %v3021, %v2988
    %v3038 = vmul.f32 %v3022, %v2993
    %v3039 = vmul.f32 %v3023, %v2998
    %v3040 = vmul.f32 %v3024, %v3003
    %v3041 = vmul.f32 %v3025, %v3008
    %v3042 = vmax.f32 %v3026, %v3030
    %v3043 = vmax.f32 %v3027, %v3031
    %v3044 = vmax.f32 %v3028, %v3032
    %v3045 = vmax.f32 %v3029, %v3033
    %v3046 = vmax.f32 %v3042, %v3034
    %v3047 = vmax.f32 %v3043, %v3035
    %v3048 = vmax.f32 %v3044, %v3036
    %v3049 = vmax.f32 %v3045, %v3037
    %v3050 = vmax.f32 %v3046, %v3038
    %v3051 = vmax.f32 %v3047, %v3039
    %v3052 = vmax.f32 %v3048, %v3040
    %v3053 = vmax.f32 %v3049, %v3041
    %v3054 = vmax.f32 %v3050, %v3051
    %v3055 = vmax.f32 %v3052, %v3053
    %v3056 = vmax.f32 %v3054, %v3055
    %v3057 = vrot.slane %v3056, 4
    %v3058 = vmax.f32 %v3056, %v3057
    %v3059 = vrot.slane %v3058, 2
    %v3060 = vmax.f32 %v3058, %v3059
    %v3061 = vrot.slane %v3060, 1
    %v3062 = vmax.f32 %v3060, %v3061
    %3063 = vst [vmem:[#allocation2 + $0x13] sm:$0x1] %v3062
    %v3064 = vld [vmem:[%s2] sm:$0xff]
    %v3065 = vld [vmem:[%s2 + $0x8] sm:$0xff]
    %v3066 = vld [vmem:[%s2 + $0x10] sm:$0xff]
    %v3067 = vld [vmem:[%s2 + $0x18] sm:$0xff]
    %v3068 = vld [vmem:[%s2 + $0x20] sm:$0xff]
    %v3069 = vld [vmem:[%s2 + $0x28] sm:$0xff]
    %v3070 = vld [vmem:[%s2 + $0x30] sm:$0xff]
    %v3071 = vld [vmem:[%s2 + $0x38] sm:$0xff]
    %v3072 = vld [vmem:[%s2 + $0x40] sm:$0xff]
    %v3073 = vld [vmem:[%s2 + $0x48] sm:$0xff]
    %v3074 = vld [vmem:[%s2 + $0x50] sm:$0xff]
    %v3075 = vld [vmem:[%s2 + $0x58] sm:$0xff]
    %v3076 = vld [vmem:[%s2 + $0x60] sm:$0xff]
    %v3077 = vld [vmem:[%s2 + $0x68] sm:$0xff]
    %v3078 = vld [vmem:[%s2 + $0x70] sm:$0xff]
    %v3079 = vld [vmem:[%s2 + $0x78] sm:$0xff]
    %3081 = vset.pattern.permute.xlu0 20
    %3082 = vperm.xlu0 %3081, %v3064
    %v3083 = vpop.permute.xlu0 %3082
    %3086 = vset.pattern.permute.xlu0 20
    %3087 = vperm.xlu0 %3086, %v3065
    %v3088 = vpop.permute.xlu0 %3087
    %3091 = vset.pattern.permute.xlu0 20
    %3092 = vperm.xlu0 %3091, %v3066
    %v3093 = vpop.permute.xlu0 %3092
    %3096 = vset.pattern.permute.xlu0 20
    %3097 = vperm.xlu0 %3096, %v3067
    %v3098 = vpop.permute.xlu0 %3097
    %3101 = vset.pattern.permute.xlu0 20
    %3102 = vperm.xlu0 %3101, %v3068
    %v3103 = vpop.permute.xlu0 %3102
    %3106 = vset.pattern.permute.xlu0 20
    %3107 = vperm.xlu0 %3106, %v3069
    %v3108 = vpop.permute.xlu0 %3107
    %3111 = vset.pattern.permute.xlu0 20
    %3112 = vperm.xlu0 %3111, %v3070
    %v3113 = vpop.permute.xlu0 %3112
    %3116 = vset.pattern.permute.xlu0 20
    %3117 = vperm.xlu0 %3116, %v3071
    %v3118 = vpop.permute.xlu0 %3117
    %3121 = vset.pattern.permute.xlu0 20
    %3122 = vperm.xlu0 %3121, %v3072
    %v3123 = vpop.permute.xlu0 %3122
    %3126 = vset.pattern.permute.xlu0 20
    %3127 = vperm.xlu0 %3126, %v3073
    %v3128 = vpop.permute.xlu0 %3127
    %3131 = vset.pattern.permute.xlu0 20
    %3132 = vperm.xlu0 %3131, %v3074
    %v3133 = vpop.permute.xlu0 %3132
    %3136 = vset.pattern.permute.xlu0 20
    %3137 = vperm.xlu0 %3136, %v3075
    %v3138 = vpop.permute.xlu0 %3137
    %3141 = vset.pattern.permute.xlu0 20
    %3142 = vperm.xlu0 %3141, %v3076
    %v3143 = vpop.permute.xlu0 %3142
    %3146 = vset.pattern.permute.xlu0 20
    %3147 = vperm.xlu0 %3146, %v3077
    %v3148 = vpop.permute.xlu0 %3147
    %3151 = vset.pattern.permute.xlu0 20
    %3152 = vperm.xlu0 %3151, %v3078
    %v3153 = vpop.permute.xlu0 %3152
    %3156 = vset.pattern.permute.xlu0 20
    %3157 = vperm.xlu0 %3156, %v3079
    %v3158 = vpop.permute.xlu0 %3157
    %v3160 = vld [vmem:[%s54] sm:$0xff]
    %v3161 = vld [vmem:[%s54 + $0x8] sm:$0xff]
    %v3162 = vld [vmem:[%s54 + $0x10] sm:$0xff]
    %v3163 = vld [vmem:[%s54 + $0x18] sm:$0xff]
    %v3164 = vld [vmem:[%s54 + $0x20] sm:$0xff]
    %v3165 = vld [vmem:[%s54 + $0x28] sm:$0xff]
    %v3166 = vld [vmem:[%s54 + $0x30] sm:$0xff]
    %v3167 = vld [vmem:[%s54 + $0x38] sm:$0xff]
    %v3168 = vld [vmem:[%s54 + $0x40] sm:$0xff]
    %v3169 = vld [vmem:[%s54 + $0x48] sm:$0xff]
    %v3170 = vld [vmem:[%s54 + $0x50] sm:$0xff]
    %v3171 = vld [vmem:[%s54 + $0x58] sm:$0xff]
    %v3172 = vld [vmem:[%s54 + $0x60] sm:$0xff]
    %v3173 = vld [vmem:[%s54 + $0x68] sm:$0xff]
    %v3174 = vld [vmem:[%s54 + $0x70] sm:$0xff]
    %v3175 = vld [vmem:[%s54 + $0x78] sm:$0xff]
    %v3176 = vmul.f32 %v3160, %v3083
    %v3177 = vmul.f32 %v3161, %v3088
    %v3178 = vmul.f32 %v3162, %v3093
    %v3179 = vmul.f32 %v3163, %v3098
    %v3180 = vmul.f32 %v3164, %v3103
    %v3181 = vmul.f32 %v3165, %v3108
    %v3182 = vmul.f32 %v3166, %v3113
    %v3183 = vmul.f32 %v3167, %v3118
    %v3184 = vmul.f32 %v3168, %v3123
    %v3185 = vmul.f32 %v3169, %v3128
    %v3186 = vmul.f32 %v3170, %v3133
    %v3187 = vmul.f32 %v3171, %v3138
    %v3188 = vmul.f32 %v3172, %v3143
    %v3189 = vmul.f32 %v3173, %v3148
    %v3190 = vmul.f32 %v3174, %v3153
    %v3191 = vmul.f32 %v3175, %v3158
    %v3192 = vmax.f32 %v3176, %v3180
    %v3193 = vmax.f32 %v3177, %v3181
    %v3194 = vmax.f32 %v3178, %v3182
    %v3195 = vmax.f32 %v3179, %v3183
    %v3196 = vmax.f32 %v3192, %v3184
    %v3197 = vmax.f32 %v3193, %v3185
    %v3198 = vmax.f32 %v3194, %v3186
    %v3199 = vmax.f32 %v3195, %v3187
    %v3200 = vmax.f32 %v3196, %v3188
    %v3201 = vmax.f32 %v3197, %v3189
    %v3202 = vmax.f32 %v3198, %v3190
    %v3203 = vmax.f32 %v3199, %v3191
    %v3204 = vmax.f32 %v3200, %v3201
    %v3205 = vmax.f32 %v3202, %v3203
    %v3206 = vmax.f32 %v3204, %v3205
    %v3207 = vrot.slane %v3206, 4
    %v3208 = vmax.f32 %v3206, %v3207
    %v3209 = vrot.slane %v3208, 2
    %v3210 = vmax.f32 %v3208, %v3209
    %v3211 = vrot.slane %v3210, 1
    %v3212 = vmax.f32 %v3210, %v3211
    %3213 = vst [vmem:[#allocation2 + $0x14] sm:$0x1] %v3212
    %v3214 = vld [vmem:[%s2] sm:$0xff]
    %v3215 = vld [vmem:[%s2 + $0x8] sm:$0xff]
    %v3216 = vld [vmem:[%s2 + $0x10] sm:$0xff]
    %v3217 = vld [vmem:[%s2 + $0x18] sm:$0xff]
    %v3218 = vld [vmem:[%s2 + $0x20] sm:$0xff]
    %v3219 = vld [vmem:[%s2 + $0x28] sm:$0xff]
    %v3220 = vld [vmem:[%s2 + $0x30] sm:$0xff]
    %v3221 = vld [vmem:[%s2 + $0x38] sm:$0xff]
    %v3222 = vld [vmem:[%s2 + $0x40] sm:$0xff]
    %v3223 = vld [vmem:[%s2 + $0x48] sm:$0xff]
    %v3224 = vld [vmem:[%s2 + $0x50] sm:$0xff]
    %v3225 = vld [vmem:[%s2 + $0x58] sm:$0xff]
    %v3226 = vld [vmem:[%s2 + $0x60] sm:$0xff]
    %v3227 = vld [vmem:[%s2 + $0x68] sm:$0xff]
    %v3228 = vld [vmem:[%s2 + $0x70] sm:$0xff]
    %v3229 = vld [vmem:[%s2 + $0x78] sm:$0xff]
    %3231 = vset.pattern.permute.xlu0 21
    %3232 = vperm.xlu0 %3231, %v3214
    %v3233 = vpop.permute.xlu0 %3232
    %3236 = vset.pattern.permute.xlu0 21
    %3237 = vperm.xlu0 %3236, %v3215
    %v3238 = vpop.permute.xlu0 %3237
    %3241 = vset.pattern.permute.xlu0 21
    %3242 = vperm.xlu0 %3241, %v3216
    %v3243 = vpop.permute.xlu0 %3242
    %3246 = vset.pattern.permute.xlu0 21
    %3247 = vperm.xlu0 %3246, %v3217
    %v3248 = vpop.permute.xlu0 %3247
    %3251 = vset.pattern.permute.xlu0 21
    %3252 = vperm.xlu0 %3251, %v3218
    %v3253 = vpop.permute.xlu0 %3252
    %3256 = vset.pattern.permute.xlu0 21
    %3257 = vperm.xlu0 %3256, %v3219
    %v3258 = vpop.permute.xlu0 %3257
    %3261 = vset.pattern.permute.xlu0 21
    %3262 = vperm.xlu0 %3261, %v3220
    %v3263 = vpop.permute.xlu0 %3262
    %3266 = vset.pattern.permute.xlu0 21
    %3267 = vperm.xlu0 %3266, %v3221
    %v3268 = vpop.permute.xlu0 %3267
    %3271 = vset.pattern.permute.xlu0 21
    %3272 = vperm.xlu0 %3271, %v3222
    %v3273 = vpop.permute.xlu0 %3272
    %3276 = vset.pattern.permute.xlu0 21
    %3277 = vperm.xlu0 %3276, %v3223
    %v3278 = vpop.permute.xlu0 %3277
    %3281 = vset.pattern.permute.xlu0 21
    %3282 = vperm.xlu0 %3281, %v3224
    %v3283 = vpop.permute.xlu0 %3282
    %3286 = vset.pattern.permute.xlu0 21
    %3287 = vperm.xlu0 %3286, %v3225
    %v3288 = vpop.permute.xlu0 %3287
    %3291 = vset.pattern.permute.xlu0 21
    %3292 = vperm.xlu0 %3291, %v3226
    %v3293 = vpop.permute.xlu0 %3292
    %3296 = vset.pattern.permute.xlu0 21
    %3297 = vperm.xlu0 %3296, %v3227
    %v3298 = vpop.permute.xlu0 %3297
    %3301 = vset.pattern.permute.xlu0 21
    %3302 = vperm.xlu0 %3301, %v3228
    %v3303 = vpop.permute.xlu0 %3302
    %3306 = vset.pattern.permute.xlu0 21
    %3307 = vperm.xlu0 %3306, %v3229
    %v3308 = vpop.permute.xlu0 %3307
    %v3310 = vld [vmem:[%s54] sm:$0xff]
    %v3311 = vld [vmem:[%s54 + $0x8] sm:$0xff]
    %v3312 = vld [vmem:[%s54 + $0x10] sm:$0xff]
    %v3313 = vld [vmem:[%s54 + $0x18] sm:$0xff]
    %v3314 = vld [vmem:[%s54 + $0x20] sm:$0xff]
    %v3315 = vld [vmem:[%s54 + $0x28] sm:$0xff]
    %v3316 = vld [vmem:[%s54 + $0x30] sm:$0xff]
    %v3317 = vld [vmem:[%s54 + $0x38] sm:$0xff]
    %v3318 = vld [vmem:[%s54 + $0x40] sm:$0xff]
    %v3319 = vld [vmem:[%s54 + $0x48] sm:$0xff]
    %v3320 = vld [vmem:[%s54 + $0x50] sm:$0xff]
    %v3321 = vld [vmem:[%s54 + $0x58] sm:$0xff]
    %v3322 = vld [vmem:[%s54 + $0x60] sm:$0xff]
    %v3323 = vld [vmem:[%s54 + $0x68] sm:$0xff]
    %v3324 = vld [vmem:[%s54 + $0x70] sm:$0xff]
    %v3325 = vld [vmem:[%s54 + $0x78] sm:$0xff]
    %v3326 = vmul.f32 %v3310, %v3233
    %v3327 = vmul.f32 %v3311, %v3238
    %v3328 = vmul.f32 %v3312, %v3243
    %v3329 = vmul.f32 %v3313, %v3248
    %v3330 = vmul.f32 %v3314, %v3253
    %v3331 = vmul.f32 %v3315, %v3258
    %v3332 = vmul.f32 %v3316, %v3263
    %v3333 = vmul.f32 %v3317, %v3268
    %v3334 = vmul.f32 %v3318, %v3273
    %v3335 = vmul.f32 %v3319, %v3278
    %v3336 = vmul.f32 %v3320, %v3283
    %v3337 = vmul.f32 %v3321, %v3288
    %v3338 = vmul.f32 %v3322, %v3293
    %v3339 = vmul.f32 %v3323, %v3298
    %v3340 = vmul.f32 %v3324, %v3303
    %v3341 = vmul.f32 %v3325, %v3308
    %v3342 = vmax.f32 %v3326, %v3330
    %v3343 = vmax.f32 %v3327, %v3331
    %v3344 = vmax.f32 %v3328, %v3332
    %v3345 = vmax.f32 %v3329, %v3333
    %v3346 = vmax.f32 %v3342, %v3334
    %v3347 = vmax.f32 %v3343, %v3335
    %v3348 = vmax.f32 %v3344, %v3336
    %v3349 = vmax.f32 %v3345, %v3337
    %v3350 = vmax.f32 %v3346, %v3338
    %v3351 = vmax.f32 %v3347, %v3339
    %v3352 = vmax.f32 %v3348, %v3340
    %v3353 = vmax.f32 %v3349, %v3341
    %v3354 = vmax.f32 %v3350, %v3351
    %v3355 = vmax.f32 %v3352, %v3353
    %v3356 = vmax.f32 %v3354, %v3355
    %v3357 = vrot.slane %v3356, 4
    %v3358 = vmax.f32 %v3356, %v3357
    %v3359 = vrot.slane %v3358, 2
    %v3360 = vmax.f32 %v3358, %v3359
    %v3361 = vrot.slane %v3360, 1
    %v3362 = vmax.f32 %v3360, %v3361
    %3363 = vst [vmem:[#allocation2 + $0x15] sm:$0x1] %v3362
    %v3364 = vld [vmem:[%s2] sm:$0xff]
    %v3365 = vld [vmem:[%s2 + $0x8] sm:$0xff]
    %v3366 = vld [vmem:[%s2 + $0x10] sm:$0xff]
    %v3367 = vld [vmem:[%s2 + $0x18] sm:$0xff]
    %v3368 = vld [vmem:[%s2 + $0x20] sm:$0xff]
    %v3369 = vld [vmem:[%s2 + $0x28] sm:$0xff]
    %v3370 = vld [vmem:[%s2 + $0x30] sm:$0xff]
    %v3371 = vld [vmem:[%s2 + $0x38] sm:$0xff]
    %v3372 = vld [vmem:[%s2 + $0x40] sm:$0xff]
    %v3373 = vld [vmem:[%s2 + $0x48] sm:$0xff]
    %v3374 = vld [vmem:[%s2 + $0x50] sm:$0xff]
    %v3375 = vld [vmem:[%s2 + $0x58] sm:$0xff]
    %v3376 = vld [vmem:[%s2 + $0x60] sm:$0xff]
    %v3377 = vld [vmem:[%s2 + $0x68] sm:$0xff]
    %v3378 = vld [vmem:[%s2 + $0x70] sm:$0xff]
    %v3379 = vld [vmem:[%s2 + $0x78] sm:$0xff]
    %3381 = vset.pattern.permute.xlu0 22
    %3382 = vperm.xlu0 %3381, %v3364
    %v3383 = vpop.permute.xlu0 %3382
    %3386 = vset.pattern.permute.xlu0 22
    %3387 = vperm.xlu0 %3386, %v3365
    %v3388 = vpop.permute.xlu0 %3387
    %3391 = vset.pattern.permute.xlu0 22
    %3392 = vperm.xlu0 %3391, %v3366
    %v3393 = vpop.permute.xlu0 %3392
    %3396 = vset.pattern.permute.xlu0 22
    %3397 = vperm.xlu0 %3396, %v3367
    %v3398 = vpop.permute.xlu0 %3397
    %3401 = vset.pattern.permute.xlu0 22
    %3402 = vperm.xlu0 %3401, %v3368
    %v3403 = vpop.permute.xlu0 %3402
    %3406 = vset.pattern.permute.xlu0 22
    %3407 = vperm.xlu0 %3406, %v3369
    %v3408 = vpop.permute.xlu0 %3407
    %3411 = vset.pattern.permute.xlu0 22
    %3412 = vperm.xlu0 %3411, %v3370
    %v3413 = vpop.permute.xlu0 %3412
    %3416 = vset.pattern.permute.xlu0 22
    %3417 = vperm.xlu0 %3416, %v3371
    %v3418 = vpop.permute.xlu0 %3417
    %3421 = vset.pattern.permute.xlu0 22
    %3422 = vperm.xlu0 %3421, %v3372
    %v3423 = vpop.permute.xlu0 %3422
    %3426 = vset.pattern.permute.xlu0 22
    %3427 = vperm.xlu0 %3426, %v3373
    %v3428 = vpop.permute.xlu0 %3427
    %3431 = vset.pattern.permute.xlu0 22
    %3432 = vperm.xlu0 %3431, %v3374
    %v3433 = vpop.permute.xlu0 %3432
    %3436 = vset.pattern.permute.xlu0 22
    %3437 = vperm.xlu0 %3436, %v3375
    %v3438 = vpop.permute.xlu0 %3437
    %3441 = vset.pattern.permute.xlu0 22
    %3442 = vperm.xlu0 %3441, %v3376
    %v3443 = vpop.permute.xlu0 %3442
    %3446 = vset.pattern.permute.xlu0 22
    %3447 = vperm.xlu0 %3446, %v3377
    %v3448 = vpop.permute.xlu0 %3447
    %3451 = vset.pattern.permute.xlu0 22
    %3452 = vperm.xlu0 %3451, %v3378
    %v3453 = vpop.permute.xlu0 %3452
    %3456 = vset.pattern.permute.xlu0 22
    %3457 = vperm.xlu0 %3456, %v3379
    %v3458 = vpop.permute.xlu0 %3457
    %v3460 = vld [vmem:[%s54] sm:$0xff]
    %v3461 = vld [vmem:[%s54 + $0x8] sm:$0xff]
    %v3462 = vld [vmem:[%s54 + $0x10] sm:$0xff]
    %v3463 = vld [vmem:[%s54 + $0x18] sm:$0xff]
    %v3464 = vld [vmem:[%s54 + $0x20] sm:$0xff]
    %v3465 = vld [vmem:[%s54 + $0x28] sm:$0xff]
    %v3466 = vld [vmem:[%s54 + $0x30] sm:$0xff]
    %v3467 = vld [vmem:[%s54 + $0x38] sm:$0xff]
    %v3468 = vld [vmem:[%s54 + $0x40] sm:$0xff]
    %v3469 = vld [vmem:[%s54 + $0x48] sm:$0xff]
    %v3470 = vld [vmem:[%s54 + $0x50] sm:$0xff]
    %v3471 = vld [vmem:[%s54 + $0x58] sm:$0xff]
    %v3472 = vld [vmem:[%s54 + $0x60] sm:$0xff]
    %v3473 = vld [vmem:[%s54 + $0x68] sm:$0xff]
    %v3474 = vld [vmem:[%s54 + $0x70] sm:$0xff]
    %v3475 = vld [vmem:[%s54 + $0x78] sm:$0xff]
    %v3476 = vmul.f32 %v3460, %v3383
    %v3477 = vmul.f32 %v3461, %v3388
    %v3478 = vmul.f32 %v3462, %v3393
    %v3479 = vmul.f32 %v3463, %v3398
    %v3480 = vmul.f32 %v3464, %v3403
    %v3481 = vmul.f32 %v3465, %v3408
    %v3482 = vmul.f32 %v3466, %v3413
    %v3483 = vmul.f32 %v3467, %v3418
    %v3484 = vmul.f32 %v3468, %v3423
    %v3485 = vmul.f32 %v3469, %v3428
    %v3486 = vmul.f32 %v3470, %v3433
    %v3487 = vmul.f32 %v3471, %v3438
    %v3488 = vmul.f32 %v3472, %v3443
    %v3489 = vmul.f32 %v3473, %v3448
    %v3490 = vmul.f32 %v3474, %v3453
    %v3491 = vmul.f32 %v3475, %v3458
    %v3492 = vmax.f32 %v3476, %v3480
    %v3493 = vmax.f32 %v3477, %v3481
    %v3494 = vmax.f32 %v3478, %v3482
    %v3495 = vmax.f32 %v3479, %v3483
    %v3496 = vmax.f32 %v3492, %v3484
    %v3497 = vmax.f32 %v3493, %v3485
    %v3498 = vmax.f32 %v3494, %v3486
    %v3499 = vmax.f32 %v3495, %v3487
    %v3500 = vmax.f32 %v3496, %v3488
    %v3501 = vmax.f32 %v3497, %v3489
    %v3502 = vmax.f32 %v3498, %v3490
    %v3503 = vmax.f32 %v3499, %v3491
    %v3504 = vmax.f32 %v3500, %v3501
    %v3505 = vmax.f32 %v3502, %v3503
    %v3506 = vmax.f32 %v3504, %v3505
    %v3507 = vrot.slane %v3506, 4
    %v3508 = vmax.f32 %v3506, %v3507
    %v3509 = vrot.slane %v3508, 2
    %v3510 = vmax.f32 %v3508, %v3509
    %v3511 = vrot.slane %v3510, 1
    %v3512 = vmax.f32 %v3510, %v3511
    %3513 = vst [vmem:[#allocation2 + $0x16] sm:$0x1] %v3512
    %v3514 = vld [vmem:[%s2] sm:$0xff]
    %v3515 = vld [vmem:[%s2 + $0x8] sm:$0xff]
    %v3516 = vld [vmem:[%s2 + $0x10] sm:$0xff]
    %v3517 = vld [vmem:[%s2 + $0x18] sm:$0xff]
    %v3518 = vld [vmem:[%s2 + $0x20] sm:$0xff]
    %v3519 = vld [vmem:[%s2 + $0x28] sm:$0xff]
    %v3520 = vld [vmem:[%s2 + $0x30] sm:$0xff]
    %v3521 = vld [vmem:[%s2 + $0x38] sm:$0xff]
    %v3522 = vld [vmem:[%s2 + $0x40] sm:$0xff]
    %v3523 = vld [vmem:[%s2 + $0x48] sm:$0xff]
    %v3524 = vld [vmem:[%s2 + $0x50] sm:$0xff]
    %v3525 = vld [vmem:[%s2 + $0x58] sm:$0xff]
    %v3526 = vld [vmem:[%s2 + $0x60] sm:$0xff]
    %v3527 = vld [vmem:[%s2 + $0x68] sm:$0xff]
    %v3528 = vld [vmem:[%s2 + $0x70] sm:$0xff]
    %v3529 = vld [vmem:[%s2 + $0x78] sm:$0xff]
    %3531 = vset.pattern.permute.xlu0 23
    %3532 = vperm.xlu0 %3531, %v3514
    %v3533 = vpop.permute.xlu0 %3532
    %3536 = vset.pattern.permute.xlu0 23
    %3537 = vperm.xlu0 %3536, %v3515
    %v3538 = vpop.permute.xlu0 %3537
    %3541 = vset.pattern.permute.xlu0 23
    %3542 = vperm.xlu0 %3541, %v3516
    %v3543 = vpop.permute.xlu0 %3542
    %3546 = vset.pattern.permute.xlu0 23
    %3547 = vperm.xlu0 %3546, %v3517
    %v3548 = vpop.permute.xlu0 %3547
    %3551 = vset.pattern.permute.xlu0 23
    %3552 = vperm.xlu0 %3551, %v3518
    %v3553 = vpop.permute.xlu0 %3552
    %3556 = vset.pattern.permute.xlu0 23
    %3557 = vperm.xlu0 %3556, %v3519
    %v3558 = vpop.permute.xlu0 %3557
    %3561 = vset.pattern.permute.xlu0 23
    %3562 = vperm.xlu0 %3561, %v3520
    %v3563 = vpop.permute.xlu0 %3562
    %3566 = vset.pattern.permute.xlu0 23
    %3567 = vperm.xlu0 %3566, %v3521
    %v3568 = vpop.permute.xlu0 %3567
    %3571 = vset.pattern.permute.xlu0 23
    %3572 = vperm.xlu0 %3571, %v3522
    %v3573 = vpop.permute.xlu0 %3572
    %3576 = vset.pattern.permute.xlu0 23
    %3577 = vperm.xlu0 %3576, %v3523
    %v3578 = vpop.permute.xlu0 %3577
    %3581 = vset.pattern.permute.xlu0 23
    %3582 = vperm.xlu0 %3581, %v3524
    %v3583 = vpop.permute.xlu0 %3582
    %3586 = vset.pattern.permute.xlu0 23
    %3587 = vperm.xlu0 %3586, %v3525
    %v3588 = vpop.permute.xlu0 %3587
    %3591 = vset.pattern.permute.xlu0 23
    %3592 = vperm.xlu0 %3591, %v3526
    %v3593 = vpop.permute.xlu0 %3592
    %3596 = vset.pattern.permute.xlu0 23
    %3597 = vperm.xlu0 %3596, %v3527
    %v3598 = vpop.permute.xlu0 %3597
    %3601 = vset.pattern.permute.xlu0 23
    %3602 = vperm.xlu0 %3601, %v3528
    %v3603 = vpop.permute.xlu0 %3602
    %3606 = vset.pattern.permute.xlu0 23
    %3607 = vperm.xlu0 %3606, %v3529
    %v3608 = vpop.permute.xlu0 %3607
    %v3610 = vld [vmem:[%s54] sm:$0xff]
    %v3611 = vld [vmem:[%s54 + $0x8] sm:$0xff]
    %v3612 = vld [vmem:[%s54 + $0x10] sm:$0xff]
    %v3613 = vld [vmem:[%s54 + $0x18] sm:$0xff]
    %v3614 = vld [vmem:[%s54 + $0x20] sm:$0xff]
    %v3615 = vld [vmem:[%s54 + $0x28] sm:$0xff]
    %v3616 = vld [vmem:[%s54 + $0x30] sm:$0xff]
    %v3617 = vld [vmem:[%s54 + $0x38] sm:$0xff]
    %v3618 = vld [vmem:[%s54 + $0x40] sm:$0xff]
    %v3619 = vld [vmem:[%s54 + $0x48] sm:$0xff]
    %v3620 = vld [vmem:[%s54 + $0x50] sm:$0xff]
    %v3621 = vld [vmem:[%s54 + $0x58] sm:$0xff]
    %v3622 = vld [vmem:[%s54 + $0x60] sm:$0xff]
    %v3623 = vld [vmem:[%s54 + $0x68] sm:$0xff]
    %v3624 = vld [vmem:[%s54 + $0x70] sm:$0xff]
    %v3625 = vld [vmem:[%s54 + $0x78] sm:$0xff]
    %v3626 = vmul.f32 %v3610, %v3533
    %v3627 = vmul.f32 %v3611, %v3538
    %v3628 = vmul.f32 %v3612, %v3543
    %v3629 = vmul.f32 %v3613, %v3548
    %v3630 = vmul.f32 %v3614, %v3553
    %v3631 = vmul.f32 %v3615, %v3558
    %v3632 = vmul.f32 %v3616, %v3563
    %v3633 = vmul.f32 %v3617, %v3568
    %v3634 = vmul.f32 %v3618, %v3573
    %v3635 = vmul.f32 %v3619, %v3578
    %v3636 = vmul.f32 %v3620, %v3583
    %v3637 = vmul.f32 %v3621, %v3588
    %v3638 = vmul.f32 %v3622, %v3593
    %v3639 = vmul.f32 %v3623, %v3598
    %v3640 = vmul.f32 %v3624, %v3603
    %v3641 = vmul.f32 %v3625, %v3608
    %v3642 = vmax.f32 %v3626, %v3630
    %v3643 = vmax.f32 %v3627, %v3631
    %v3644 = vmax.f32 %v3628, %v3632
    %v3645 = vmax.f32 %v3629, %v3633
    %v3646 = vmax.f32 %v3642, %v3634
    %v3647 = vmax.f32 %v3643, %v3635
    %v3648 = vmax.f32 %v3644, %v3636
    %v3649 = vmax.f32 %v3645, %v3637
    %v3650 = vmax.f32 %v3646, %v3638
    %v3651 = vmax.f32 %v3647, %v3639
    %v3652 = vmax.f32 %v3648, %v3640
    %v3653 = vmax.f32 %v3649, %v3641
    %v3654 = vmax.f32 %v3650, %v3651
    %v3655 = vmax.f32 %v3652, %v3653
    %v3656 = vmax.f32 %v3654, %v3655
    %v3657 = vrot.slane %v3656, 4
    %v3658 = vmax.f32 %v3656, %v3657
    %v3659 = vrot.slane %v3658, 2
    %v3660 = vmax.f32 %v3658, %v3659
    %v3661 = vrot.slane %v3660, 1
    %v3662 = vmax.f32 %v3660, %v3661
    %3663 = vst [vmem:[#allocation2 + $0x17] sm:$0x1] %v3662
    %v3664 = vld [vmem:[%s2] sm:$0xff]
    %v3665 = vld [vmem:[%s2 + $0x8] sm:$0xff]
    %v3666 = vld [vmem:[%s2 + $0x10] sm:$0xff]
    %v3667 = vld [vmem:[%s2 + $0x18] sm:$0xff]
    %v3668 = vld [vmem:[%s2 + $0x20] sm:$0xff]
    %v3669 = vld [vmem:[%s2 + $0x28] sm:$0xff]
    %v3670 = vld [vmem:[%s2 + $0x30] sm:$0xff]
    %v3671 = vld [vmem:[%s2 + $0x38] sm:$0xff]
    %v3672 = vld [vmem:[%s2 + $0x40] sm:$0xff]
    %v3673 = vld [vmem:[%s2 + $0x48] sm:$0xff]
    %v3674 = vld [vmem:[%s2 + $0x50] sm:$0xff]
    %v3675 = vld [vmem:[%s2 + $0x58] sm:$0xff]
    %v3676 = vld [vmem:[%s2 + $0x60] sm:$0xff]
    %v3677 = vld [vmem:[%s2 + $0x68] sm:$0xff]
    %v3678 = vld [vmem:[%s2 + $0x70] sm:$0xff]
    %v3679 = vld [vmem:[%s2 + $0x78] sm:$0xff]
    %3681 = vset.pattern.permute.xlu0 24
    %3682 = vperm.xlu0 %3681, %v3664
    %v3683 = vpop.permute.xlu0 %3682
    %3686 = vset.pattern.permute.xlu0 24
    %3687 = vperm.xlu0 %3686, %v3665
    %v3688 = vpop.permute.xlu0 %3687
    %3691 = vset.pattern.permute.xlu0 24
    %3692 = vperm.xlu0 %3691, %v3666
    %v3693 = vpop.permute.xlu0 %3692
    %3696 = vset.pattern.permute.xlu0 24
    %3697 = vperm.xlu0 %3696, %v3667
    %v3698 = vpop.permute.xlu0 %3697
    %3701 = vset.pattern.permute.xlu0 24
    %3702 = vperm.xlu0 %3701, %v3668
    %v3703 = vpop.permute.xlu0 %3702
    %3706 = vset.pattern.permute.xlu0 24
    %3707 = vperm.xlu0 %3706, %v3669
    %v3708 = vpop.permute.xlu0 %3707
    %3711 = vset.pattern.permute.xlu0 24
    %3712 = vperm.xlu0 %3711, %v3670
    %v3713 = vpop.permute.xlu0 %3712
    %3716 = vset.pattern.permute.xlu0 24
    %3717 = vperm.xlu0 %3716, %v3671
    %v3718 = vpop.permute.xlu0 %3717
    %3721 = vset.pattern.permute.xlu0 24
    %3722 = vperm.xlu0 %3721, %v3672
    %v3723 = vpop.permute.xlu0 %3722
    %3726 = vset.pattern.permute.xlu0 24
    %3727 = vperm.xlu0 %3726, %v3673
    %v3728 = vpop.permute.xlu0 %3727
    %3731 = vset.pattern.permute.xlu0 24
    %3732 = vperm.xlu0 %3731, %v3674
    %v3733 = vpop.permute.xlu0 %3732
    %3736 = vset.pattern.permute.xlu0 24
    %3737 = vperm.xlu0 %3736, %v3675
    %v3738 = vpop.permute.xlu0 %3737
    %3741 = vset.pattern.permute.xlu0 24
    %3742 = vperm.xlu0 %3741, %v3676
    %v3743 = vpop.permute.xlu0 %3742
    %3746 = vset.pattern.permute.xlu0 24
    %3747 = vperm.xlu0 %3746, %v3677
    %v3748 = vpop.permute.xlu0 %3747
    %3751 = vset.pattern.permute.xlu0 24
    %3752 = vperm.xlu0 %3751, %v3678
    %v3753 = vpop.permute.xlu0 %3752
    %3756 = vset.pattern.permute.xlu0 24
    %3757 = vperm.xlu0 %3756, %v3679
    %v3758 = vpop.permute.xlu0 %3757
    %v3760 = vld [vmem:[%s54] sm:$0xff]
    %v3761 = vld [vmem:[%s54 + $0x8] sm:$0xff]
    %v3762 = vld [vmem:[%s54 + $0x10] sm:$0xff]
    %v3763 = vld [vmem:[%s54 + $0x18] sm:$0xff]
    %v3764 = vld [vmem:[%s54 + $0x20] sm:$0xff]
    %v3765 = vld [vmem:[%s54 + $0x28] sm:$0xff]
    %v3766 = vld [vmem:[%s54 + $0x30] sm:$0xff]
    %v3767 = vld [vmem:[%s54 + $0x38] sm:$0xff]
    %v3768 = vld [vmem:[%s54 + $0x40] sm:$0xff]
    %v3769 = vld [vmem:[%s54 + $0x48] sm:$0xff]
    %v3770 = vld [vmem:[%s54 + $0x50] sm:$0xff]
    %v3771 = vld [vmem:[%s54 + $0x58] sm:$0xff]
    %v3772 = vld [vmem:[%s54 + $0x60] sm:$0xff]
    %v3773 = vld [vmem:[%s54 + $0x68] sm:$0xff]
    %v3774 = vld [vmem:[%s54 + $0x70] sm:$0xff]
    %v3775 = vld [vmem:[%s54 + $0x78] sm:$0xff]
    %v3776 = vmul.f32 %v3760, %v3683
    %v3777 = vmul.f32 %v3761, %v3688
    %v3778 = vmul.f32 %v3762, %v3693
    %v3779 = vmul.f32 %v3763, %v3698
    %v3780 = vmul.f32 %v3764, %v3703
    %v3781 = vmul.f32 %v3765, %v3708
    %v3782 = vmul.f32 %v3766, %v3713
    %v3783 = vmul.f32 %v3767, %v3718
    %v3784 = vmul.f32 %v3768, %v3723
    %v3785 = vmul.f32 %v3769, %v3728
    %v3786 = vmul.f32 %v3770, %v3733
    %v3787 = vmul.f32 %v3771, %v3738
    %v3788 = vmul.f32 %v3772, %v3743
    %v3789 = vmul.f32 %v3773, %v3748
    %v3790 = vmul.f32 %v3774, %v3753
    %v3791 = vmul.f32 %v3775, %v3758
    %v3792 = vmax.f32 %v3776, %v3780
    %v3793 = vmax.f32 %v3777, %v3781
    %v3794 = vmax.f32 %v3778, %v3782
    %v3795 = vmax.f32 %v3779, %v3783
    %v3796 = vmax.f32 %v3792, %v3784
    %v3797 = vmax.f32 %v3793, %v3785
    %v3798 = vmax.f32 %v3794, %v3786
    %v3799 = vmax.f32 %v3795, %v3787
    %v3800 = vmax.f32 %v3796, %v3788
    %v3801 = vmax.f32 %v3797, %v3789
    %v3802 = vmax.f32 %v3798, %v3790
    %v3803 = vmax.f32 %v3799, %v3791
    %v3804 = vmax.f32 %v3800, %v3801
    %v3805 = vmax.f32 %v3802, %v3803
    %v3806 = vmax.f32 %v3804, %v3805
    %v3807 = vrot.slane %v3806, 4
    %v3808 = vmax.f32 %v3806, %v3807
    %v3809 = vrot.slane %v3808, 2
    %v3810 = vmax.f32 %v3808, %v3809
    %v3811 = vrot.slane %v3810, 1
    %v3812 = vmax.f32 %v3810, %v3811
    %3813 = vst [vmem:[#allocation2 + $0x18] sm:$0x1] %v3812
    %v3814 = vld [vmem:[%s2] sm:$0xff]
    %v3815 = vld [vmem:[%s2 + $0x8] sm:$0xff]
    %v3816 = vld [vmem:[%s2 + $0x10] sm:$0xff]
    %v3817 = vld [vmem:[%s2 + $0x18] sm:$0xff]
    %v3818 = vld [vmem:[%s2 + $0x20] sm:$0xff]
    %v3819 = vld [vmem:[%s2 + $0x28] sm:$0xff]
    %v3820 = vld [vmem:[%s2 + $0x30] sm:$0xff]
    %v3821 = vld [vmem:[%s2 + $0x38] sm:$0xff]
    %v3822 = vld [vmem:[%s2 + $0x40] sm:$0xff]
    %v3823 = vld [vmem:[%s2 + $0x48] sm:$0xff]
    %v3824 = vld [vmem:[%s2 + $0x50] sm:$0xff]
    %v3825 = vld [vmem:[%s2 + $0x58] sm:$0xff]
    %v3826 = vld [vmem:[%s2 + $0x60] sm:$0xff]
    %v3827 = vld [vmem:[%s2 + $0x68] sm:$0xff]
    %v3828 = vld [vmem:[%s2 + $0x70] sm:$0xff]
    %v3829 = vld [vmem:[%s2 + $0x78] sm:$0xff]
    %3831 = vset.pattern.permute.xlu0 25
    %3832 = vperm.xlu0 %3831, %v3814
    %v3833 = vpop.permute.xlu0 %3832
    %3836 = vset.pattern.permute.xlu0 25
    %3837 = vperm.xlu0 %3836, %v3815
    %v3838 = vpop.permute.xlu0 %3837
    %3841 = vset.pattern.permute.xlu0 25
    %3842 = vperm.xlu0 %3841, %v3816
    %v3843 = vpop.permute.xlu0 %3842
    %3846 = vset.pattern.permute.xlu0 25
    %3847 = vperm.xlu0 %3846, %v3817
    %v3848 = vpop.permute.xlu0 %3847
    %3851 = vset.pattern.permute.xlu0 25
    %3852 = vperm.xlu0 %3851, %v3818
    %v3853 = vpop.permute.xlu0 %3852
    %3856 = vset.pattern.permute.xlu0 25
    %3857 = vperm.xlu0 %3856, %v3819
    %v3858 = vpop.permute.xlu0 %3857
    %3861 = vset.pattern.permute.xlu0 25
    %3862 = vperm.xlu0 %3861, %v3820
    %v3863 = vpop.permute.xlu0 %3862
    %3866 = vset.pattern.permute.xlu0 25
    %3867 = vperm.xlu0 %3866, %v3821
    %v3868 = vpop.permute.xlu0 %3867
    %3871 = vset.pattern.permute.xlu0 25
    %3872 = vperm.xlu0 %3871, %v3822
    %v3873 = vpop.permute.xlu0 %3872
    %3876 = vset.pattern.permute.xlu0 25
    %3877 = vperm.xlu0 %3876, %v3823
    %v3878 = vpop.permute.xlu0 %3877
    %3881 = vset.pattern.permute.xlu0 25
    %3882 = vperm.xlu0 %3881, %v3824
    %v3883 = vpop.permute.xlu0 %3882
    %3886 = vset.pattern.permute.xlu0 25
    %3887 = vperm.xlu0 %3886, %v3825
    %v3888 = vpop.permute.xlu0 %3887
    %3891 = vset.pattern.permute.xlu0 25
    %3892 = vperm.xlu0 %3891, %v3826
    %v3893 = vpop.permute.xlu0 %3892
    %3896 = vset.pattern.permute.xlu0 25
    %3897 = vperm.xlu0 %3896, %v3827
    %v3898 = vpop.permute.xlu0 %3897
    %3901 = vset.pattern.permute.xlu0 25
    %3902 = vperm.xlu0 %3901, %v3828
    %v3903 = vpop.permute.xlu0 %3902
    %3906 = vset.pattern.permute.xlu0 25
    %3907 = vperm.xlu0 %3906, %v3829
    %v3908 = vpop.permute.xlu0 %3907
    %v3910 = vld [vmem:[%s54] sm:$0xff]
    %v3911 = vld [vmem:[%s54 + $0x8] sm:$0xff]
    %v3912 = vld [vmem:[%s54 + $0x10] sm:$0xff]
    %v3913 = vld [vmem:[%s54 + $0x18] sm:$0xff]
    %v3914 = vld [vmem:[%s54 + $0x20] sm:$0xff]
    %v3915 = vld [vmem:[%s54 + $0x28] sm:$0xff]
    %v3916 = vld [vmem:[%s54 + $0x30] sm:$0xff]
    %v3917 = vld [vmem:[%s54 + $0x38] sm:$0xff]
    %v3918 = vld [vmem:[%s54 + $0x40] sm:$0xff]
    %v3919 = vld [vmem:[%s54 + $0x48] sm:$0xff]
    %v3920 = vld [vmem:[%s54 + $0x50] sm:$0xff]
    %v3921 = vld [vmem:[%s54 + $0x58] sm:$0xff]
    %v3922 = vld [vmem:[%s54 + $0x60] sm:$0xff]
    %v3923 = vld [vmem:[%s54 + $0x68] sm:$0xff]
    %v3924 = vld [vmem:[%s54 + $0x70] sm:$0xff]
    %v3925 = vld [vmem:[%s54 + $0x78] sm:$0xff]
    %v3926 = vmul.f32 %v3910, %v3833
    %v3927 = vmul.f32 %v3911, %v3838
    %v3928 = vmul.f32 %v3912, %v3843
    %v3929 = vmul.f32 %v3913, %v3848
    %v3930 = vmul.f32 %v3914, %v3853
    %v3931 = vmul.f32 %v3915, %v3858
    %v3932 = vmul.f32 %v3916, %v3863
    %v3933 = vmul.f32 %v3917, %v3868
    %v3934 = vmul.f32 %v3918, %v3873
    %v3935 = vmul.f32 %v3919, %v3878
    %v3936 = vmul.f32 %v3920, %v3883
    %v3937 = vmul.f32 %v3921, %v3888
    %v3938 = vmul.f32 %v3922, %v3893
    %v3939 = vmul.f32 %v3923, %v3898
    %v3940 = vmul.f32 %v3924, %v3903
    %v3941 = vmul.f32 %v3925, %v3908
    %v3942 = vmax.f32 %v3926, %v3930
    %v3943 = vmax.f32 %v3927, %v3931
    %v3944 = vmax.f32 %v3928, %v3932
    %v3945 = vmax.f32 %v3929, %v3933
    %v3946 = vmax.f32 %v3942, %v3934
    %v3947 = vmax.f32 %v3943, %v3935
    %v3948 = vmax.f32 %v3944, %v3936
    %v3949 = vmax.f32 %v3945, %v3937
    %v3950 = vmax.f32 %v3946, %v3938
    %v3951 = vmax.f32 %v3947, %v3939
    %v3952 = vmax.f32 %v3948, %v3940
    %v3953 = vmax.f32 %v3949, %v3941
    %v3954 = vmax.f32 %v3950, %v3951
    %v3955 = vmax.f32 %v3952, %v3953
    %v3956 = vmax.f32 %v3954, %v3955
    %v3957 = vrot.slane %v3956, 4
    %v3958 = vmax.f32 %v3956, %v3957
    %v3959 = vrot.slane %v3958, 2
    %v3960 = vmax.f32 %v3958, %v3959
    %v3961 = vrot.slane %v3960, 1
    %v3962 = vmax.f32 %v3960, %v3961
    %3963 = vst [vmem:[#allocation2 + $0x19] sm:$0x1] %v3962
    %v3964 = vld [vmem:[%s2] sm:$0xff]
    %v3965 = vld [vmem:[%s2 + $0x8] sm:$0xff]
    %v3966 = vld [vmem:[%s2 + $0x10] sm:$0xff]
    %v3967 = vld [vmem:[%s2 + $0x18] sm:$0xff]
    %v3968 = vld [vmem:[%s2 + $0x20] sm:$0xff]
    %v3969 = vld [vmem:[%s2 + $0x28] sm:$0xff]
    %v3970 = vld [vmem:[%s2 + $0x30] sm:$0xff]
    %v3971 = vld [vmem:[%s2 + $0x38] sm:$0xff]
    %v3972 = vld [vmem:[%s2 + $0x40] sm:$0xff]
    %v3973 = vld [vmem:[%s2 + $0x48] sm:$0xff]
    %v3974 = vld [vmem:[%s2 + $0x50] sm:$0xff]
    %v3975 = vld [vmem:[%s2 + $0x58] sm:$0xff]
    %v3976 = vld [vmem:[%s2 + $0x60] sm:$0xff]
    %v3977 = vld [vmem:[%s2 + $0x68] sm:$0xff]
    %v3978 = vld [vmem:[%s2 + $0x70] sm:$0xff]
    %v3979 = vld [vmem:[%s2 + $0x78] sm:$0xff]
    %3981 = vset.pattern.permute.xlu0 26
    %3982 = vperm.xlu0 %3981, %v3964
    %v3983 = vpop.permute.xlu0 %3982
    %3986 = vset.pattern.permute.xlu0 26
    %3987 = vperm.xlu0 %3986, %v3965
    %v3988 = vpop.permute.xlu0 %3987
    %3991 = vset.pattern.permute.xlu0 26
    %3992 = vperm.xlu0 %3991, %v3966
    %v3993 = vpop.permute.xlu0 %3992
    %3996 = vset.pattern.permute.xlu0 26
    %3997 = vperm.xlu0 %3996, %v3967
    %v3998 = vpop.permute.xlu0 %3997
    %4001 = vset.pattern.permute.xlu0 26
    %4002 = vperm.xlu0 %4001, %v3968
    %v4003 = vpop.permute.xlu0 %4002
    %4006 = vset.pattern.permute.xlu0 26
    %4007 = vperm.xlu0 %4006, %v3969
    %v4008 = vpop.permute.xlu0 %4007
    %4011 = vset.pattern.permute.xlu0 26
    %4012 = vperm.xlu0 %4011, %v3970
    %v4013 = vpop.permute.xlu0 %4012
    %4016 = vset.pattern.permute.xlu0 26
    %4017 = vperm.xlu0 %4016, %v3971
    %v4018 = vpop.permute.xlu0 %4017
    %4021 = vset.pattern.permute.xlu0 26
    %4022 = vperm.xlu0 %4021, %v3972
    %v4023 = vpop.permute.xlu0 %4022
    %4026 = vset.pattern.permute.xlu0 26
    %4027 = vperm.xlu0 %4026, %v3973
    %v4028 = vpop.permute.xlu0 %4027
    %4031 = vset.pattern.permute.xlu0 26
    %4032 = vperm.xlu0 %4031, %v3974
    %v4033 = vpop.permute.xlu0 %4032
    %4036 = vset.pattern.permute.xlu0 26
    %4037 = vperm.xlu0 %4036, %v3975
    %v4038 = vpop.permute.xlu0 %4037
    %4041 = vset.pattern.permute.xlu0 26
    %4042 = vperm.xlu0 %4041, %v3976
    %v4043 = vpop.permute.xlu0 %4042
    %4046 = vset.pattern.permute.xlu0 26
    %4047 = vperm.xlu0 %4046, %v3977
    %v4048 = vpop.permute.xlu0 %4047
    %4051 = vset.pattern.permute.xlu0 26
    %4052 = vperm.xlu0 %4051, %v3978
    %v4053 = vpop.permute.xlu0 %4052
    %4056 = vset.pattern.permute.xlu0 26
    %4057 = vperm.xlu0 %4056, %v3979
    %v4058 = vpop.permute.xlu0 %4057
    %v4060 = vld [vmem:[%s54] sm:$0xff]
    %v4061 = vld [vmem:[%s54 + $0x8] sm:$0xff]
    %v4062 = vld [vmem:[%s54 + $0x10] sm:$0xff]
    %v4063 = vld [vmem:[%s54 + $0x18] sm:$0xff]
    %v4064 = vld [vmem:[%s54 + $0x20] sm:$0xff]
    %v4065 = vld [vmem:[%s54 + $0x28] sm:$0xff]
    %v4066 = vld [vmem:[%s54 + $0x30] sm:$0xff]
    %v4067 = vld [vmem:[%s54 + $0x38] sm:$0xff]
    %v4068 = vld [vmem:[%s54 + $0x40] sm:$0xff]
    %v4069 = vld [vmem:[%s54 + $0x48] sm:$0xff]
    %v4070 = vld [vmem:[%s54 + $0x50] sm:$0xff]
    %v4071 = vld [vmem:[%s54 + $0x58] sm:$0xff]
    %v4072 = vld [vmem:[%s54 + $0x60] sm:$0xff]
    %v4073 = vld [vmem:[%s54 + $0x68] sm:$0xff]
    %v4074 = vld [vmem:[%s54 + $0x70] sm:$0xff]
    %v4075 = vld [vmem:[%s54 + $0x78] sm:$0xff]
    %v4076 = vmul.f32 %v4060, %v3983
    %v4077 = vmul.f32 %v4061, %v3988
    %v4078 = vmul.f32 %v4062, %v3993
    %v4079 = vmul.f32 %v4063, %v3998
    %v4080 = vmul.f32 %v4064, %v4003
    %v4081 = vmul.f32 %v4065, %v4008
    %v4082 = vmul.f32 %v4066, %v4013
    %v4083 = vmul.f32 %v4067, %v4018
    %v4084 = vmul.f32 %v4068, %v4023
    %v4085 = vmul.f32 %v4069, %v4028
    %v4086 = vmul.f32 %v4070, %v4033
    %v4087 = vmul.f32 %v4071, %v4038
    %v4088 = vmul.f32 %v4072, %v4043
    %v4089 = vmul.f32 %v4073, %v4048
    %v4090 = vmul.f32 %v4074, %v4053
    %v4091 = vmul.f32 %v4075, %v4058
    %v4092 = vmax.f32 %v4076, %v4080
    %v4093 = vmax.f32 %v4077, %v4081
    %v4094 = vmax.f32 %v4078, %v4082
    %v4095 = vmax.f32 %v4079, %v4083
    %v4096 = vmax.f32 %v4092, %v4084
    %v4097 = vmax.f32 %v4093, %v4085
    %v4098 = vmax.f32 %v4094, %v4086
    %v4099 = vmax.f32 %v4095, %v4087
    %v4100 = vmax.f32 %v4096, %v4088
    %v4101 = vmax.f32 %v4097, %v4089
    %v4102 = vmax.f32 %v4098, %v4090
    %v4103 = vmax.f32 %v4099, %v4091
    %v4104 = vmax.f32 %v4100, %v4101
    %v4105 = vmax.f32 %v4102, %v4103
    %v4106 = vmax.f32 %v4104, %v4105
    %v4107 = vrot.slane %v4106, 4
    %v4108 = vmax.f32 %v4106, %v4107
    %v4109 = vrot.slane %v4108, 2
    %v4110 = vmax.f32 %v4108, %v4109
    %v4111 = vrot.slane %v4110, 1
    %v4112 = vmax.f32 %v4110, %v4111
    %4113 = vst [vmem:[#allocation2 + $0x1a] sm:$0x1] %v4112
    %v4114 = vld [vmem:[%s2] sm:$0xff]
    %v4115 = vld [vmem:[%s2 + $0x8] sm:$0xff]
    %v4116 = vld [vmem:[%s2 + $0x10] sm:$0xff]
    %v4117 = vld [vmem:[%s2 + $0x18] sm:$0xff]
    %v4118 = vld [vmem:[%s2 + $0x20] sm:$0xff]
    %v4119 = vld [vmem:[%s2 + $0x28] sm:$0xff]
    %v4120 = vld [vmem:[%s2 + $0x30] sm:$0xff]
    %v4121 = vld [vmem:[%s2 + $0x38] sm:$0xff]
    %v4122 = vld [vmem:[%s2 + $0x40] sm:$0xff]
    %v4123 = vld [vmem:[%s2 + $0x48] sm:$0xff]
    %v4124 = vld [vmem:[%s2 + $0x50] sm:$0xff]
    %v4125 = vld [vmem:[%s2 + $0x58] sm:$0xff]
    %v4126 = vld [vmem:[%s2 + $0x60] sm:$0xff]
    %v4127 = vld [vmem:[%s2 + $0x68] sm:$0xff]
    %v4128 = vld [vmem:[%s2 + $0x70] sm:$0xff]
    %v4129 = vld [vmem:[%s2 + $0x78] sm:$0xff]
    %4131 = vset.pattern.permute.xlu0 27
    %4132 = vperm.xlu0 %4131, %v4114
    %v4133 = vpop.permute.xlu0 %4132
    %4136 = vset.pattern.permute.xlu0 27
    %4137 = vperm.xlu0 %4136, %v4115
    %v4138 = vpop.permute.xlu0 %4137
    %4141 = vset.pattern.permute.xlu0 27
    %4142 = vperm.xlu0 %4141, %v4116
    %v4143 = vpop.permute.xlu0 %4142
    %4146 = vset.pattern.permute.xlu0 27
    %4147 = vperm.xlu0 %4146, %v4117
    %v4148 = vpop.permute.xlu0 %4147
    %4151 = vset.pattern.permute.xlu0 27
    %4152 = vperm.xlu0 %4151, %v4118
    %v4153 = vpop.permute.xlu0 %4152
    %4156 = vset.pattern.permute.xlu0 27
    %4157 = vperm.xlu0 %4156, %v4119
    %v4158 = vpop.permute.xlu0 %4157
    %4161 = vset.pattern.permute.xlu0 27
    %4162 = vperm.xlu0 %4161, %v4120
    %v4163 = vpop.permute.xlu0 %4162
    %4166 = vset.pattern.permute.xlu0 27
    %4167 = vperm.xlu0 %4166, %v4121
    %v4168 = vpop.permute.xlu0 %4167
    %4171 = vset.pattern.permute.xlu0 27
    %4172 = vperm.xlu0 %4171, %v4122
    %v4173 = vpop.permute.xlu0 %4172
    %4176 = vset.pattern.permute.xlu0 27
    %4177 = vperm.xlu0 %4176, %v4123
    %v4178 = vpop.permute.xlu0 %4177
    %4181 = vset.pattern.permute.xlu0 27
    %4182 = vperm.xlu0 %4181, %v4124
    %v4183 = vpop.permute.xlu0 %4182
    %4186 = vset.pattern.permute.xlu0 27
    %4187 = vperm.xlu0 %4186, %v4125
    %v4188 = vpop.permute.xlu0 %4187
    %4191 = vset.pattern.permute.xlu0 27
    %4192 = vperm.xlu0 %4191, %v4126
    %v4193 = vpop.permute.xlu0 %4192
    %4196 = vset.pattern.permute.xlu0 27
    %4197 = vperm.xlu0 %4196, %v4127
    %v4198 = vpop.permute.xlu0 %4197
    %4201 = vset.pattern.permute.xlu0 27
    %4202 = vperm.xlu0 %4201, %v4128
    %v4203 = vpop.permute.xlu0 %4202
    %4206 = vset.pattern.permute.xlu0 27
    %4207 = vperm.xlu0 %4206, %v4129
    %v4208 = vpop.permute.xlu0 %4207
    %v4210 = vld [vmem:[%s54] sm:$0xff]
    %v4211 = vld [vmem:[%s54 + $0x8] sm:$0xff]
    %v4212 = vld [vmem:[%s54 + $0x10] sm:$0xff]
    %v4213 = vld [vmem:[%s54 + $0x18] sm:$0xff]
    %v4214 = vld [vmem:[%s54 + $0x20] sm:$0xff]
    %v4215 = vld [vmem:[%s54 + $0x28] sm:$0xff]
    %v4216 = vld [vmem:[%s54 + $0x30] sm:$0xff]
    %v4217 = vld [vmem:[%s54 + $0x38] sm:$0xff]
    %v4218 = vld [vmem:[%s54 + $0x40] sm:$0xff]
    %v4219 = vld [vmem:[%s54 + $0x48] sm:$0xff]
    %v4220 = vld [vmem:[%s54 + $0x50] sm:$0xff]
    %v4221 = vld [vmem:[%s54 + $0x58] sm:$0xff]
    %v4222 = vld [vmem:[%s54 + $0x60] sm:$0xff]
    %v4223 = vld [vmem:[%s54 + $0x68] sm:$0xff]
    %v4224 = vld [vmem:[%s54 + $0x70] sm:$0xff]
    %v4225 = vld [vmem:[%s54 + $0x78] sm:$0xff]
    %v4226 = vmul.f32 %v4210, %v4133
    %v4227 = vmul.f32 %v4211, %v4138
    %v4228 = vmul.f32 %v4212, %v4143
    %v4229 = vmul.f32 %v4213, %v4148
    %v4230 = vmul.f32 %v4214, %v4153
    %v4231 = vmul.f32 %v4215, %v4158
    %v4232 = vmul.f32 %v4216, %v4163
    %v4233 = vmul.f32 %v4217, %v4168
    %v4234 = vmul.f32 %v4218, %v4173
    %v4235 = vmul.f32 %v4219, %v4178
    %v4236 = vmul.f32 %v4220, %v4183
    %v4237 = vmul.f32 %v4221, %v4188
    %v4238 = vmul.f32 %v4222, %v4193
    %v4239 = vmul.f32 %v4223, %v4198
    %v4240 = vmul.f32 %v4224, %v4203
    %v4241 = vmul.f32 %v4225, %v4208
    %v4242 = vmax.f32 %v4226, %v4230
    %v4243 = vmax.f32 %v4227, %v4231
    %v4244 = vmax.f32 %v4228, %v4232
    %v4245 = vmax.f32 %v4229, %v4233
    %v4246 = vmax.f32 %v4242, %v4234
    %v4247 = vmax.f32 %v4243, %v4235
    %v4248 = vmax.f32 %v4244, %v4236
    %v4249 = vmax.f32 %v4245, %v4237
    %v4250 = vmax.f32 %v4246, %v4238
    %v4251 = vmax.f32 %v4247, %v4239
    %v4252 = vmax.f32 %v4248, %v4240
    %v4253 = vmax.f32 %v4249, %v4241
    %v4254 = vmax.f32 %v4250, %v4251
    %v4255 = vmax.f32 %v4252, %v4253
    %v4256 = vmax.f32 %v4254, %v4255
    %v4257 = vrot.slane %v4256, 4
    %v4258 = vmax.f32 %v4256, %v4257
    %v4259 = vrot.slane %v4258, 2
    %v4260 = vmax.f32 %v4258, %v4259
    %v4261 = vrot.slane %v4260, 1
    %v4262 = vmax.f32 %v4260, %v4261
    %4263 = vst [vmem:[#allocation2 + $0x1b] sm:$0x1] %v4262
    %v4264 = vld [vmem:[%s2] sm:$0xff]
    %v4265 = vld [vmem:[%s2 + $0x8] sm:$0xff]
    %v4266 = vld [vmem:[%s2 + $0x10] sm:$0xff]
    %v4267 = vld [vmem:[%s2 + $0x18] sm:$0xff]
    %v4268 = vld [vmem:[%s2 + $0x20] sm:$0xff]
    %v4269 = vld [vmem:[%s2 + $0x28] sm:$0xff]
    %v4270 = vld [vmem:[%s2 + $0x30] sm:$0xff]
    %v4271 = vld [vmem:[%s2 + $0x38] sm:$0xff]
    %v4272 = vld [vmem:[%s2 + $0x40] sm:$0xff]
    %v4273 = vld [vmem:[%s2 + $0x48] sm:$0xff]
    %v4274 = vld [vmem:[%s2 + $0x50] sm:$0xff]
    %v4275 = vld [vmem:[%s2 + $0x58] sm:$0xff]
    %v4276 = vld [vmem:[%s2 + $0x60] sm:$0xff]
    %v4277 = vld [vmem:[%s2 + $0x68] sm:$0xff]
    %v4278 = vld [vmem:[%s2 + $0x70] sm:$0xff]
    %v4279 = vld [vmem:[%s2 + $0x78] sm:$0xff]
    %4281 = vset.pattern.permute.xlu0 28
    %4282 = vperm.xlu0 %4281, %v4264
    %v4283 = vpop.permute.xlu0 %4282
    %4286 = vset.pattern.permute.xlu0 28
    %4287 = vperm.xlu0 %4286, %v4265
    %v4288 = vpop.permute.xlu0 %4287
    %4291 = vset.pattern.permute.xlu0 28
    %4292 = vperm.xlu0 %4291, %v4266
    %v4293 = vpop.permute.xlu0 %4292
    %4296 = vset.pattern.permute.xlu0 28
    %4297 = vperm.xlu0 %4296, %v4267
    %v4298 = vpop.permute.xlu0 %4297
    %4301 = vset.pattern.permute.xlu0 28
    %4302 = vperm.xlu0 %4301, %v4268
    %v4303 = vpop.permute.xlu0 %4302
    %4306 = vset.pattern.permute.xlu0 28
    %4307 = vperm.xlu0 %4306, %v4269
    %v4308 = vpop.permute.xlu0 %4307
    %4311 = vset.pattern.permute.xlu0 28
    %4312 = vperm.xlu0 %4311, %v4270
    %v4313 = vpop.permute.xlu0 %4312
    %4316 = vset.pattern.permute.xlu0 28
    %4317 = vperm.xlu0 %4316, %v4271
    %v4318 = vpop.permute.xlu0 %4317
    %4321 = vset.pattern.permute.xlu0 28
    %4322 = vperm.xlu0 %4321, %v4272
    %v4323 = vpop.permute.xlu0 %4322
    %4326 = vset.pattern.permute.xlu0 28
    %4327 = vperm.xlu0 %4326, %v4273
    %v4328 = vpop.permute.xlu0 %4327
    %4331 = vset.pattern.permute.xlu0 28
    %4332 = vperm.xlu0 %4331, %v4274
    %v4333 = vpop.permute.xlu0 %4332
    %4336 = vset.pattern.permute.xlu0 28
    %4337 = vperm.xlu0 %4336, %v4275
    %v4338 = vpop.permute.xlu0 %4337
    %4341 = vset.pattern.permute.xlu0 28
    %4342 = vperm.xlu0 %4341, %v4276
    %v4343 = vpop.permute.xlu0 %4342
    %4346 = vset.pattern.permute.xlu0 28
    %4347 = vperm.xlu0 %4346, %v4277
    %v4348 = vpop.permute.xlu0 %4347
    %4351 = vset.pattern.permute.xlu0 28
    %4352 = vperm.xlu0 %4351, %v4278
    %v4353 = vpop.permute.xlu0 %4352
    %4356 = vset.pattern.permute.xlu0 28
    %4357 = vperm.xlu0 %4356, %v4279
    %v4358 = vpop.permute.xlu0 %4357
    %v4360 = vld [vmem:[%s54] sm:$0xff]
    %v4361 = vld [vmem:[%s54 + $0x8] sm:$0xff]
    %v4362 = vld [vmem:[%s54 + $0x10] sm:$0xff]
    %v4363 = vld [vmem:[%s54 + $0x18] sm:$0xff]
    %v4364 = vld [vmem:[%s54 + $0x20] sm:$0xff]
    %v4365 = vld [vmem:[%s54 + $0x28] sm:$0xff]
    %v4366 = vld [vmem:[%s54 + $0x30] sm:$0xff]
    %v4367 = vld [vmem:[%s54 + $0x38] sm:$0xff]
    %v4368 = vld [vmem:[%s54 + $0x40] sm:$0xff]
    %v4369 = vld [vmem:[%s54 + $0x48] sm:$0xff]
    %v4370 = vld [vmem:[%s54 + $0x50] sm:$0xff]
    %v4371 = vld [vmem:[%s54 + $0x58] sm:$0xff]
    %v4372 = vld [vmem:[%s54 + $0x60] sm:$0xff]
    %v4373 = vld [vmem:[%s54 + $0x68] sm:$0xff]
    %v4374 = vld [vmem:[%s54 + $0x70] sm:$0xff]
    %v4375 = vld [vmem:[%s54 + $0x78] sm:$0xff]
    %v4376 = vmul.f32 %v4360, %v4283
    %v4377 = vmul.f32 %v4361, %v4288
    %v4378 = vmul.f32 %v4362, %v4293
    %v4379 = vmul.f32 %v4363, %v4298
    %v4380 = vmul.f32 %v4364, %v4303
    %v4381 = vmul.f32 %v4365, %v4308
    %v4382 = vmul.f32 %v4366, %v4313
    %v4383 = vmul.f32 %v4367, %v4318
    %v4384 = vmul.f32 %v4368, %v4323
    %v4385 = vmul.f32 %v4369, %v4328
    %v4386 = vmul.f32 %v4370, %v4333
    %v4387 = vmul.f32 %v4371, %v4338
    %v4388 = vmul.f32 %v4372, %v4343
    %v4389 = vmul.f32 %v4373, %v4348
    %v4390 = vmul.f32 %v4374, %v4353
    %v4391 = vmul.f32 %v4375, %v4358
    %v4392 = vmax.f32 %v4376, %v4380
    %v4393 = vmax.f32 %v4377, %v4381
    %v4394 = vmax.f32 %v4378, %v4382
    %v4395 = vmax.f32 %v4379, %v4383
    %v4396 = vmax.f32 %v4392, %v4384
    %v4397 = vmax.f32 %v4393, %v4385
    %v4398 = vmax.f32 %v4394, %v4386
    %v4399 = vmax.f32 %v4395, %v4387
    %v4400 = vmax.f32 %v4396, %v4388
    %v4401 = vmax.f32 %v4397, %v4389
    %v4402 = vmax.f32 %v4398, %v4390
    %v4403 = vmax.f32 %v4399, %v4391
    %v4404 = vmax.f32 %v4400, %v4401
    %v4405 = vmax.f32 %v4402, %v4403
    %v4406 = vmax.f32 %v4404, %v4405
    %v4407 = vrot.slane %v4406, 4
    %v4408 = vmax.f32 %v4406, %v4407
    %v4409 = vrot.slane %v4408, 2
    %v4410 = vmax.f32 %v4408, %v4409
    %v4411 = vrot.slane %v4410, 1
    %v4412 = vmax.f32 %v4410, %v4411
    %4413 = vst [vmem:[#allocation2 + $0x1c] sm:$0x1] %v4412
    %v4414 = vld [vmem:[%s2] sm:$0xff]
    %v4415 = vld [vmem:[%s2 + $0x8] sm:$0xff]
    %v4416 = vld [vmem:[%s2 + $0x10] sm:$0xff]
    %v4417 = vld [vmem:[%s2 + $0x18] sm:$0xff]
    %v4418 = vld [vmem:[%s2 + $0x20] sm:$0xff]
    %v4419 = vld [vmem:[%s2 + $0x28] sm:$0xff]
    %v4420 = vld [vmem:[%s2 + $0x30] sm:$0xff]
    %v4421 = vld [vmem:[%s2 + $0x38] sm:$0xff]
    %v4422 = vld [vmem:[%s2 + $0x40] sm:$0xff]
    %v4423 = vld [vmem:[%s2 + $0x48] sm:$0xff]
    %v4424 = vld [vmem:[%s2 + $0x50] sm:$0xff]
    %v4425 = vld [vmem:[%s2 + $0x58] sm:$0xff]
    %v4426 = vld [vmem:[%s2 + $0x60] sm:$0xff]
    %v4427 = vld [vmem:[%s2 + $0x68] sm:$0xff]
    %v4428 = vld [vmem:[%s2 + $0x70] sm:$0xff]
    %v4429 = vld [vmem:[%s2 + $0x78] sm:$0xff]
    %4431 = vset.pattern.permute.xlu0 29
    %4432 = vperm.xlu0 %4431, %v4414
    %v4433 = vpop.permute.xlu0 %4432
    %4436 = vset.pattern.permute.xlu0 29
    %4437 = vperm.xlu0 %4436, %v4415
    %v4438 = vpop.permute.xlu0 %4437
    %4441 = vset.pattern.permute.xlu0 29
    %4442 = vperm.xlu0 %4441, %v4416
    %v4443 = vpop.permute.xlu0 %4442
    %4446 = vset.pattern.permute.xlu0 29
    %4447 = vperm.xlu0 %4446, %v4417
    %v4448 = vpop.permute.xlu0 %4447
    %4451 = vset.pattern.permute.xlu0 29
    %4452 = vperm.xlu0 %4451, %v4418
    %v4453 = vpop.permute.xlu0 %4452
    %4456 = vset.pattern.permute.xlu0 29
    %4457 = vperm.xlu0 %4456, %v4419
    %v4458 = vpop.permute.xlu0 %4457
    %4461 = vset.pattern.permute.xlu0 29
    %4462 = vperm.xlu0 %4461, %v4420
    %v4463 = vpop.permute.xlu0 %4462
    %4466 = vset.pattern.permute.xlu0 29
    %4467 = vperm.xlu0 %4466, %v4421
    %v4468 = vpop.permute.xlu0 %4467
    %4471 = vset.pattern.permute.xlu0 29
    %4472 = vperm.xlu0 %4471, %v4422
    %v4473 = vpop.permute.xlu0 %4472
    %4476 = vset.pattern.permute.xlu0 29
    %4477 = vperm.xlu0 %4476, %v4423
    %v4478 = vpop.permute.xlu0 %4477
    %4481 = vset.pattern.permute.xlu0 29
    %4482 = vperm.xlu0 %4481, %v4424
    %v4483 = vpop.permute.xlu0 %4482
    %4486 = vset.pattern.permute.xlu0 29
    %4487 = vperm.xlu0 %4486, %v4425
    %v4488 = vpop.permute.xlu0 %4487
    %4491 = vset.pattern.permute.xlu0 29
    %4492 = vperm.xlu0 %4491, %v4426
    %v4493 = vpop.permute.xlu0 %4492
    %4496 = vset.pattern.permute.xlu0 29
    %4497 = vperm.xlu0 %4496, %v4427
    %v4498 = vpop.permute.xlu0 %4497
    %4501 = vset.pattern.permute.xlu0 29
    %4502 = vperm.xlu0 %4501, %v4428
    %v4503 = vpop.permute.xlu0 %4502
    %4506 = vset.pattern.permute.xlu0 29
    %4507 = vperm.xlu0 %4506, %v4429
    %v4508 = vpop.permute.xlu0 %4507
    %v4510 = vld [vmem:[%s54] sm:$0xff]
    %v4511 = vld [vmem:[%s54 + $0x8] sm:$0xff]
    %v4512 = vld [vmem:[%s54 + $0x10] sm:$0xff]
    %v4513 = vld [vmem:[%s54 + $0x18] sm:$0xff]
    %v4514 = vld [vmem:[%s54 + $0x20] sm:$0xff]
    %v4515 = vld [vmem:[%s54 + $0x28] sm:$0xff]
    %v4516 = vld [vmem:[%s54 + $0x30] sm:$0xff]
    %v4517 = vld [vmem:[%s54 + $0x38] sm:$0xff]
    %v4518 = vld [vmem:[%s54 + $0x40] sm:$0xff]
    %v4519 = vld [vmem:[%s54 + $0x48] sm:$0xff]
    %v4520 = vld [vmem:[%s54 + $0x50] sm:$0xff]
    %v4521 = vld [vmem:[%s54 + $0x58] sm:$0xff]
    %v4522 = vld [vmem:[%s54 + $0x60] sm:$0xff]
    %v4523 = vld [vmem:[%s54 + $0x68] sm:$0xff]
    %v4524 = vld [vmem:[%s54 + $0x70] sm:$0xff]
    %v4525 = vld [vmem:[%s54 + $0x78] sm:$0xff]
    %v4526 = vmul.f32 %v4510, %v4433
    %v4527 = vmul.f32 %v4511, %v4438
    %v4528 = vmul.f32 %v4512, %v4443
    %v4529 = vmul.f32 %v4513, %v4448
    %v4530 = vmul.f32 %v4514, %v4453
    %v4531 = vmul.f32 %v4515, %v4458
    %v4532 = vmul.f32 %v4516, %v4463
    %v4533 = vmul.f32 %v4517, %v4468
    %v4534 = vmul.f32 %v4518, %v4473
    %v4535 = vmul.f32 %v4519, %v4478
    %v4536 = vmul.f32 %v4520, %v4483
    %v4537 = vmul.f32 %v4521, %v4488
    %v4538 = vmul.f32 %v4522, %v4493
    %v4539 = vmul.f32 %v4523, %v4498
    %v4540 = vmul.f32 %v4524, %v4503
    %v4541 = vmul.f32 %v4525, %v4508
    %v4542 = vmax.f32 %v4526, %v4530
    %v4543 = vmax.f32 %v4527, %v4531
    %v4544 = vmax.f32 %v4528, %v4532
    %v4545 = vmax.f32 %v4529, %v4533
    %v4546 = vmax.f32 %v4542, %v4534
    %v4547 = vmax.f32 %v4543, %v4535
    %v4548 = vmax.f32 %v4544, %v4536
    %v4549 = vmax.f32 %v4545, %v4537
    %v4550 = vmax.f32 %v4546, %v4538
    %v4551 = vmax.f32 %v4547, %v4539
    %v4552 = vmax.f32 %v4548, %v4540
    %v4553 = vmax.f32 %v4549, %v4541
    %v4554 = vmax.f32 %v4550, %v4551
    %v4555 = vmax.f32 %v4552, %v4553
    %v4556 = vmax.f32 %v4554, %v4555
    %v4557 = vrot.slane %v4556, 4
    %v4558 = vmax.f32 %v4556, %v4557
    %v4559 = vrot.slane %v4558, 2
    %v4560 = vmax.f32 %v4558, %v4559
    %v4561 = vrot.slane %v4560, 1
    %v4562 = vmax.f32 %v4560, %v4561
    %4563 = vst [vmem:[#allocation2 + $0x1d] sm:$0x1] %v4562
    %v4564 = vld [vmem:[%s2] sm:$0xff]
    %v4565 = vld [vmem:[%s2 + $0x8] sm:$0xff]
    %v4566 = vld [vmem:[%s2 + $0x10] sm:$0xff]
    %v4567 = vld [vmem:[%s2 + $0x18] sm:$0xff]
    %v4568 = vld [vmem:[%s2 + $0x20] sm:$0xff]
    %v4569 = vld [vmem:[%s2 + $0x28] sm:$0xff]
    %v4570 = vld [vmem:[%s2 + $0x30] sm:$0xff]
    %v4571 = vld [vmem:[%s2 + $0x38] sm:$0xff]
    %v4572 = vld [vmem:[%s2 + $0x40] sm:$0xff]
    %v4573 = vld [vmem:[%s2 + $0x48] sm:$0xff]
    %v4574 = vld [vmem:[%s2 + $0x50] sm:$0xff]
    %v4575 = vld [vmem:[%s2 + $0x58] sm:$0xff]
    %v4576 = vld [vmem:[%s2 + $0x60] sm:$0xff]
    %v4577 = vld [vmem:[%s2 + $0x68] sm:$0xff]
    %v4578 = vld [vmem:[%s2 + $0x70] sm:$0xff]
    %v4579 = vld [vmem:[%s2 + $0x78] sm:$0xff]
    %4581 = vset.pattern.permute.xlu0 30
    %4582 = vperm.xlu0 %4581, %v4564
    %v4583 = vpop.permute.xlu0 %4582
    %4586 = vset.pattern.permute.xlu0 30
    %4587 = vperm.xlu0 %4586, %v4565
    %v4588 = vpop.permute.xlu0 %4587
    %4591 = vset.pattern.permute.xlu0 30
    %4592 = vperm.xlu0 %4591, %v4566
    %v4593 = vpop.permute.xlu0 %4592
    %4596 = vset.pattern.permute.xlu0 30
    %4597 = vperm.xlu0 %4596, %v4567
    %v4598 = vpop.permute.xlu0 %4597
    %4601 = vset.pattern.permute.xlu0 30
    %4602 = vperm.xlu0 %4601, %v4568
    %v4603 = vpop.permute.xlu0 %4602
    %4606 = vset.pattern.permute.xlu0 30
    %4607 = vperm.xlu0 %4606, %v4569
    %v4608 = vpop.permute.xlu0 %4607
    %4611 = vset.pattern.permute.xlu0 30
    %4612 = vperm.xlu0 %4611, %v4570
    %v4613 = vpop.permute.xlu0 %4612
    %4616 = vset.pattern.permute.xlu0 30
    %4617 = vperm.xlu0 %4616, %v4571
    %v4618 = vpop.permute.xlu0 %4617
    %4621 = vset.pattern.permute.xlu0 30
    %4622 = vperm.xlu0 %4621, %v4572
    %v4623 = vpop.permute.xlu0 %4622
    %4626 = vset.pattern.permute.xlu0 30
    %4627 = vperm.xlu0 %4626, %v4573
    %v4628 = vpop.permute.xlu0 %4627
    %4631 = vset.pattern.permute.xlu0 30
    %4632 = vperm.xlu0 %4631, %v4574
    %v4633 = vpop.permute.xlu0 %4632
    %4636 = vset.pattern.permute.xlu0 30
    %4637 = vperm.xlu0 %4636, %v4575
    %v4638 = vpop.permute.xlu0 %4637
    %4641 = vset.pattern.permute.xlu0 30
    %4642 = vperm.xlu0 %4641, %v4576
    %v4643 = vpop.permute.xlu0 %4642
    %4646 = vset.pattern.permute.xlu0 30
    %4647 = vperm.xlu0 %4646, %v4577
    %v4648 = vpop.permute.xlu0 %4647
    %4651 = vset.pattern.permute.xlu0 30
    %4652 = vperm.xlu0 %4651, %v4578
    %v4653 = vpop.permute.xlu0 %4652
    %4656 = vset.pattern.permute.xlu0 30
    %4657 = vperm.xlu0 %4656, %v4579
    %v4658 = vpop.permute.xlu0 %4657
    %v4660 = vld [vmem:[%s54] sm:$0xff]
    %v4661 = vld [vmem:[%s54 + $0x8] sm:$0xff]
    %v4662 = vld [vmem:[%s54 + $0x10] sm:$0xff]
    %v4663 = vld [vmem:[%s54 + $0x18] sm:$0xff]
    %v4664 = vld [vmem:[%s54 + $0x20] sm:$0xff]
    %v4665 = vld [vmem:[%s54 + $0x28] sm:$0xff]
    %v4666 = vld [vmem:[%s54 + $0x30] sm:$0xff]
    %v4667 = vld [vmem:[%s54 + $0x38] sm:$0xff]
    %v4668 = vld [vmem:[%s54 + $0x40] sm:$0xff]
    %v4669 = vld [vmem:[%s54 + $0x48] sm:$0xff]
    %v4670 = vld [vmem:[%s54 + $0x50] sm:$0xff]
    %v4671 = vld [vmem:[%s54 + $0x58] sm:$0xff]
    %v4672 = vld [vmem:[%s54 + $0x60] sm:$0xff]
    %v4673 = vld [vmem:[%s54 + $0x68] sm:$0xff]
    %v4674 = vld [vmem:[%s54 + $0x70] sm:$0xff]
    %v4675 = vld [vmem:[%s54 + $0x78] sm:$0xff]
    %v4676 = vmul.f32 %v4660, %v4583
    %v4677 = vmul.f32 %v4661, %v4588
    %v4678 = vmul.f32 %v4662, %v4593
    %v4679 = vmul.f32 %v4663, %v4598
    %v4680 = vmul.f32 %v4664, %v4603
    %v4681 = vmul.f32 %v4665, %v4608
    %v4682 = vmul.f32 %v4666, %v4613
    %v4683 = vmul.f32 %v4667, %v4618
    %v4684 = vmul.f32 %v4668, %v4623
    %v4685 = vmul.f32 %v4669, %v4628
    %v4686 = vmul.f32 %v4670, %v4633
    %v4687 = vmul.f32 %v4671, %v4638
    %v4688 = vmul.f32 %v4672, %v4643
    %v4689 = vmul.f32 %v4673, %v4648
    %v4690 = vmul.f32 %v4674, %v4653
    %v4691 = vmul.f32 %v4675, %v4658
    %v4692 = vmax.f32 %v4676, %v4680
    %v4693 = vmax.f32 %v4677, %v4681
    %v4694 = vmax.f32 %v4678, %v4682
    %v4695 = vmax.f32 %v4679, %v4683
    %v4696 = vmax.f32 %v4692, %v4684
    %v4697 = vmax.f32 %v4693, %v4685
    %v4698 = vmax.f32 %v4694, %v4686
    %v4699 = vmax.f32 %v4695, %v4687
    %v4700 = vmax.f32 %v4696, %v4688
    %v4701 = vmax.f32 %v4697, %v4689
    %v4702 = vmax.f32 %v4698, %v4690
    %v4703 = vmax.f32 %v4699, %v4691
    %v4704 = vmax.f32 %v4700, %v4701
    %v4705 = vmax.f32 %v4702, %v4703
    %v4706 = vmax.f32 %v4704, %v4705
    %v4707 = vrot.slane %v4706, 4
    %v4708 = vmax.f32 %v4706, %v4707
    %v4709 = vrot.slane %v4708, 2
    %v4710 = vmax.f32 %v4708, %v4709
    %v4711 = vrot.slane %v4710, 1
    %v4712 = vmax.f32 %v4710, %v4711
    %4713 = vst [vmem:[#allocation2 + $0x1e] sm:$0x1] %v4712
    %v4714 = vld [vmem:[%s2] sm:$0xff]
    %v4715 = vld [vmem:[%s2 + $0x8] sm:$0xff]
    %v4716 = vld [vmem:[%s2 + $0x10] sm:$0xff]
    %v4717 = vld [vmem:[%s2 + $0x18] sm:$0xff]
    %v4718 = vld [vmem:[%s2 + $0x20] sm:$0xff]
    %v4719 = vld [vmem:[%s2 + $0x28] sm:$0xff]
    %v4720 = vld [vmem:[%s2 + $0x30] sm:$0xff]
    %v4721 = vld [vmem:[%s2 + $0x38] sm:$0xff]
    %v4722 = vld [vmem:[%s2 + $0x40] sm:$0xff]
    %v4723 = vld [vmem:[%s2 + $0x48] sm:$0xff]
    %v4724 = vld [vmem:[%s2 + $0x50] sm:$0xff]
    %v4725 = vld [vmem:[%s2 + $0x58] sm:$0xff]
    %v4726 = vld [vmem:[%s2 + $0x60] sm:$0xff]
    %v4727 = vld [vmem:[%s2 + $0x68] sm:$0xff]
    %v4728 = vld [vmem:[%s2 + $0x70] sm:$0xff]
    %v4729 = vld [vmem:[%s2 + $0x78] sm:$0xff]
    %4731 = vset.pattern.permute.xlu0 31
    %4732 = vperm.xlu0 %4731, %v4714
    %v4733 = vpop.permute.xlu0 %4732
    %4736 = vset.pattern.permute.xlu0 31
    %4737 = vperm.xlu0 %4736, %v4715
    %v4738 = vpop.permute.xlu0 %4737
    %4741 = vset.pattern.permute.xlu0 31
    %4742 = vperm.xlu0 %4741, %v4716
    %v4743 = vpop.permute.xlu0 %4742
    %4746 = vset.pattern.permute.xlu0 31
    %4747 = vperm.xlu0 %4746, %v4717
    %v4748 = vpop.permute.xlu0 %4747
    %4751 = vset.pattern.permute.xlu0 31
    %4752 = vperm.xlu0 %4751, %v4718
    %v4753 = vpop.permute.xlu0 %4752
    %4756 = vset.pattern.permute.xlu0 31
    %4757 = vperm.xlu0 %4756, %v4719
    %v4758 = vpop.permute.xlu0 %4757
    %4761 = vset.pattern.permute.xlu0 31
    %4762 = vperm.xlu0 %4761, %v4720
    %v4763 = vpop.permute.xlu0 %4762
    %4766 = vset.pattern.permute.xlu0 31
    %4767 = vperm.xlu0 %4766, %v4721
    %v4768 = vpop.permute.xlu0 %4767
    %4771 = vset.pattern.permute.xlu0 31
    %4772 = vperm.xlu0 %4771, %v4722
    %v4773 = vpop.permute.xlu0 %4772
    %4776 = vset.pattern.permute.xlu0 31
    %4777 = vperm.xlu0 %4776, %v4723
    %v4778 = vpop.permute.xlu0 %4777
    %4781 = vset.pattern.permute.xlu0 31
    %4782 = vperm.xlu0 %4781, %v4724
    %v4783 = vpop.permute.xlu0 %4782
    %4786 = vset.pattern.permute.xlu0 31
    %4787 = vperm.xlu0 %4786, %v4725
    %v4788 = vpop.permute.xlu0 %4787
    %4791 = vset.pattern.permute.xlu0 31
    %4792 = vperm.xlu0 %4791, %v4726
    %v4793 = vpop.permute.xlu0 %4792
    %4796 = vset.pattern.permute.xlu0 31
    %4797 = vperm.xlu0 %4796, %v4727
    %v4798 = vpop.permute.xlu0 %4797
    %4801 = vset.pattern.permute.xlu0 31
    %4802 = vperm.xlu0 %4801, %v4728
    %v4803 = vpop.permute.xlu0 %4802
    %4806 = vset.pattern.permute.xlu0 31
    %4807 = vperm.xlu0 %4806, %v4729
    %v4808 = vpop.permute.xlu0 %4807
    %v4810 = vld [vmem:[%s54] sm:$0xff]
    %v4811 = vld [vmem:[%s54 + $0x8] sm:$0xff]
    %v4812 = vld [vmem:[%s54 + $0x10] sm:$0xff]
    %v4813 = vld [vmem:[%s54 + $0x18] sm:$0xff]
    %v4814 = vld [vmem:[%s54 + $0x20] sm:$0xff]
    %v4815 = vld [vmem:[%s54 + $0x28] sm:$0xff]
    %v4816 = vld [vmem:[%s54 + $0x30] sm:$0xff]
    %v4817 = vld [vmem:[%s54 + $0x38] sm:$0xff]
    %v4818 = vld [vmem:[%s54 + $0x40] sm:$0xff]
    %v4819 = vld [vmem:[%s54 + $0x48] sm:$0xff]
    %v4820 = vld [vmem:[%s54 + $0x50] sm:$0xff]
    %v4821 = vld [vmem:[%s54 + $0x58] sm:$0xff]
    %v4822 = vld [vmem:[%s54 + $0x60] sm:$0xff]
    %v4823 = vld [vmem:[%s54 + $0x68] sm:$0xff]
    %v4824 = vld [vmem:[%s54 + $0x70] sm:$0xff]
    %v4825 = vld [vmem:[%s54 + $0x78] sm:$0xff]
    %v4826 = vmul.f32 %v4810, %v4733
    %v4827 = vmul.f32 %v4811, %v4738
    %v4828 = vmul.f32 %v4812, %v4743
    %v4829 = vmul.f32 %v4813, %v4748
    %v4830 = vmul.f32 %v4814, %v4753
    %v4831 = vmul.f32 %v4815, %v4758
    %v4832 = vmul.f32 %v4816, %v4763
    %v4833 = vmul.f32 %v4817, %v4768
    %v4834 = vmul.f32 %v4818, %v4773
    %v4835 = vmul.f32 %v4819, %v4778
    %v4836 = vmul.f32 %v4820, %v4783
    %v4837 = vmul.f32 %v4821, %v4788
    %v4838 = vmul.f32 %v4822, %v4793
    %v4839 = vmul.f32 %v4823, %v4798
    %v4840 = vmul.f32 %v4824, %v4803
    %v4841 = vmul.f32 %v4825, %v4808
    %v4842 = vmax.f32 %v4826, %v4830
    %v4843 = vmax.f32 %v4827, %v4831
    %v4844 = vmax.f32 %v4828, %v4832
    %v4845 = vmax.f32 %v4829, %v4833
    %v4846 = vmax.f32 %v4842, %v4834
    %v4847 = vmax.f32 %v4843, %v4835
    %v4848 = vmax.f32 %v4844, %v4836
    %v4849 = vmax.f32 %v4845, %v4837
    %v4850 = vmax.f32 %v4846, %v4838
    %v4851 = vmax.f32 %v4847, %v4839
    %v4852 = vmax.f32 %v4848, %v4840
    %v4853 = vmax.f32 %v4849, %v4841
    %v4854 = vmax.f32 %v4850, %v4851
    %v4855 = vmax.f32 %v4852, %v4853
    %v4856 = vmax.f32 %v4854, %v4855
    %v4857 = vrot.slane %v4856, 4
    %v4858 = vmax.f32 %v4856, %v4857
    %v4859 = vrot.slane %v4858, 2
    %v4860 = vmax.f32 %v4858, %v4859
    %v4861 = vrot.slane %v4860, 1
    %v4862 = vmax.f32 %v4860, %v4861
    %4863 = vst [vmem:[#allocation2 + $0x1f] sm:$0x1] %v4862
    %v4864 = vld [vmem:[%s3] sm:$0xff]
    %v4865 = vld [vmem:[%s3 + $0x8] sm:$0xff]
    %v4866 = vld [vmem:[#allocation2] sm:$0xff]
    %v4867 = vld [vmem:[#allocation2 + $0x8] sm:$0xff]
    %v4868 = vld [vmem:[#allocation2 + $0x10] sm:$0xff]
    %v4869 = vld [vmem:[#allocation2 + $0x18] sm:$0xff]
    %v4870 = vld [vmem:[%s4] sm:$0xff]
    %v4871 = vld [vmem:[%s4 + $0x8] sm:$0xff]
    %4873 = vset.pattern.permute.xlu0 0
    %4874 = vperm.xlu0 %4873, %v4870
    %v4875 = vpop.permute.xlu0 %4874
    %4878 = vset.pattern.permute.xlu0 0
    %4879 = vperm.xlu0 %4878, %v4871
    %v4880 = vpop.permute.xlu0 %4879
    %vm4882 = vcmask 261120
    %v4884 = vsel %vm4882, %v4864, 0
    %v4887 = vsel %vm4882, %v4865, 0
    %4889 = vmatprep.subr.mxu0 0.0
    %4890 = vmatpush1.msra.mxu0 0.0
    %4891 = vmatprep.subr.mxu0 0.0
    %4892 = vmatpush1.msra.mxu0 0.0
    %4893 = vmatprep.subr.mxu0 0.0
    %4894 = vmatpush1.msra.mxu0 0.0
    %4895 = vmatprep.subr.mxu0 0.0
    %4896 = vmatpush1.msra.mxu0 0.0
    %4897 = vmatprep.subr.mxu0 0.0
    %4898 = vmatpush1.msra.mxu0 0.0
    %4899 = vmatprep.subr.mxu0 0.0
    %4900 = vmatpush1.msra.mxu0 0.0
    %4901 = vmatprep.subr.mxu0 0.0
    %4902 = vmatpush1.msra.mxu0 0.0
    %4903 = vmatprep.subr.mxu0 0.0
    %4904 = vmatpush1.msra.mxu0 0.0
    %4905 = vmatprep.subr.mxu0 0.0
    %4906 = vmatpush1.msra.mxu0 0.0
    %4907 = vmatprep.subr.mxu0 0.0
    %4908 = vmatpush1.msra.mxu0 0.0
    %4909 = vmatprep.subr.mxu0 0.0
    %4910 = vmatpush1.msra.mxu0 0.0
    %4911 = vmatprep.subr.mxu0 0.0
    %4912 = vmatpush1.msra.mxu0 0.0
    %4913 = vmatprep.subr.mxu0 0.0
    %v4914 = vand.u32 %v4869, 4294901760
    %4915 = vmatpush1.msra.mxu0 %v4914
    %4916 = vmatprep.subr.mxu0 0.0
    %v4917 = vand.u32 %v4868, 4294901760
    %4918 = vmatpush1.msra.mxu0 %v4917
    %4919 = vmatprep.subr.mxu0 0.0
    %v4920 = vand.u32 %v4867, 4294901760
    %4921 = vmatpush1.msra.mxu0 %v4920
    %4922 = vmatprep.subr.mxu0 0.0
    %v4923 = vand.u32 %v4866, 4294901760
    %4924 = vmatpush1.msra.mxu0 %v4923
    %4925 = vmatprep.subr.mxu0 0.0
    %4926 = vmatpush2.msra.mxu0 0.0
    %4927 = vmatprep.subr.mxu0 0.0
    %4928 = vmatpush2.msra.mxu0 0.0
    %4929 = vmatprep.subr.mxu0 0.0
    %4930 = vmatpush2.msra.mxu0 0.0
    %4931 = vmatprep.subr.mxu0 0.0
    %4932 = vmatpush2.msra.mxu0 0.0
    %4933 = vmatprep.subr.mxu0 0.0
    %4934 = vmatpush2.msra.mxu0 0.0
    %4935 = vmatprep.subr.mxu0 0.0
    %4936 = vmatpush2.msra.mxu0 0.0
    %4937 = vmatprep.subr.mxu0 0.0
    %4938 = vmatpush2.msra.mxu0 0.0
    %4939 = vmatprep.subr.mxu0 0.0
    %4940 = vmatpush2.msra.mxu0 0.0
    %4941 = vmatprep.subr.mxu0 0.0
    %4942 = vmatpush2.msra.mxu0 0.0
    %4943 = vmatprep.subr.mxu0 0.0
    %4944 = vmatpush2.msra.mxu0 0.0
    %4945 = vmatprep.subr.mxu0 0.0
    %4946 = vmatpush2.msra.mxu0 0.0
    %4947 = vmatprep.subr.mxu0 0.0
    %4948 = vmatpush2.msra.mxu0 0.0
    %4949 = vmatprep.subr.mxu0 0.0
    %4950 = vmatpush2.msra.mxu0 0.0
    %4951 = vmatprep.subr.mxu0 0.0
    %4952 = vmatpush2.msra.mxu0 0.0
    %4953 = vmatprep.subr.mxu0 0.0
    %4954 = vmatpush2.msra.mxu0 0.0
    %4955 = vmatprep.subr.mxu0 0.0
    %4956 = vmatpush2.msra.mxu0 0.0
    %4957 = vmatprep.mubr.f32.mxu0 0.0
    %v4958 = vand.u32 %v4884, 4294901760
    %v4959 = vsub.f32 %v4884, %v4958
    %v4960 = vand.u32 %v4959, 4294901760
    %v4961 = vsub.f32 %v4959, %v4960
    %v4962 = vand.u32 %v4961, 4294901760
    %4963 = vmatmul.mubr.f32.gmra.mxu0 %v4962
    %v4964 = vpop.f32.mrf.mxu0
    %v4965 = vadd.f32 %v4875, %v4964
    %v4966 = vpop.f32.mrf.mxu0
    %4967 = vmatprep.mubr.f32.mxu0 0.0
    %v4968 = vand.u32 %v4887, 4294901760
    %v4969 = vsub.f32 %v4887, %v4968
    %v4970 = vand.u32 %v4969, 4294901760
    %v4971 = vsub.f32 %v4969, %v4970
    %v4972 = vand.u32 %v4971, 4294901760
    %4973 = vmatmul.mubr.f32.gmra.mxu0 %v4972
    %v4974 = vpop.f32.mrf.mxu0
    %v4975 = vadd.f32 %v4880, %v4974
    %v4976 = vpop.f32.mrf.mxu0
    %4977 = vdwg.mxu0
    %4978 = vmatprep.subr.mxu0 0.0
    %4979 = vmatpush1.msra.mxu0 0.0
    %4980 = vmatprep.subr.mxu0 0.0
    %4981 = vmatpush1.msra.mxu0 0.0
    %4982 = vmatprep.subr.mxu0 0.0
    %4983 = vmatpush1.msra.mxu0 0.0
    %4984 = vmatprep.subr.mxu0 0.0
    %4985 = vmatpush1.msra.mxu0 0.0
    %4986 = vmatprep.subr.mxu0 0.0
    %4987 = vmatpush1.msra.mxu0 0.0
    %4988 = vmatprep.subr.mxu0 0.0
    %4989 = vmatpush1.msra.mxu0 0.0
    %4990 = vmatprep.subr.mxu0 0.0
    %4991 = vmatpush1.msra.mxu0 0.0
    %4992 = vmatprep.subr.mxu0 0.0
    %4993 = vmatpush1.msra.mxu0 0.0
    %4994 = vmatprep.subr.mxu0 0.0
    %4995 = vmatpush1.msra.mxu0 0.0
    %4996 = vmatprep.subr.mxu0 0.0
    %4997 = vmatpush1.msra.mxu0 0.0
    %4998 = vmatprep.subr.mxu0 0.0
    %4999 = vmatpush1.msra.mxu0 0.0
    %5000 = vmatprep.subr.mxu0 0.0
    %5001 = vmatpush1.msra.mxu0 0.0
    %5002 = vmatprep.subr.mxu0 0.0
    %v5003 = vand.u32 %v4869, 4294901760
    %v5004 = vsub.f32 %v4869, %v5003
    %v5005 = vand.u32 %v5004, 4294901760
    %v5006 = vsub.f32 %v5004, %v5005
    %v5007 = vand.u32 %v5006, 4294901760
    %5008 = vmatpush1.msra.mxu0 %v5007
    %5009 = vmatprep.subr.mxu0 0.0
    %v5010 = vand.u32 %v4868, 4294901760
    %v5011 = vsub.f32 %v4868, %v5010
    %v5012 = vand.u32 %v5011, 4294901760
    %v5013 = vsub.f32 %v5011, %v5012
    %v5014 = vand.u32 %v5013, 4294901760
    %5015 = vmatpush1.msra.mxu0 %v5014
    %5016 = vmatprep.subr.mxu0 0.0
    %v5017 = vand.u32 %v4867, 4294901760
    %v5018 = vsub.f32 %v4867, %v5017
    %v5019 = vand.u32 %v5018, 4294901760
    %v5020 = vsub.f32 %v5018, %v5019
    %v5021 = vand.u32 %v5020, 4294901760
    %5022 = vmatpush1.msra.mxu0 %v5021
    %5023 = vmatprep.subr.mxu0 0.0
    %v5024 = vand.u32 %v4866, 4294901760
    %v5025 = vsub.f32 %v4866, %v5024
    %v5026 = vand.u32 %v5025, 4294901760
    %v5027 = vsub.f32 %v5025, %v5026
    %v5028 = vand.u32 %v5027, 4294901760
    %5029 = vmatpush1.msra.mxu0 %v5028
    %5030 = vmatprep.subr.mxu0 0.0
    %5031 = vmatpush2.msra.mxu0 0.0
    %5032 = vmatprep.subr.mxu0 0.0
    %5033 = vmatpush2.msra.mxu0 0.0
    %5034 = vmatprep.subr.mxu0 0.0
    %5035 = vmatpush2.msra.mxu0 0.0
    %5036 = vmatprep.subr.mxu0 0.0
    %5037 = vmatpush2.msra.mxu0 0.0
    %5038 = vmatprep.subr.mxu0 0.0
    %5039 = vmatpush2.msra.mxu0 0.0
    %5040 = vmatprep.subr.mxu0 0.0
    %5041 = vmatpush2.msra.mxu0 0.0
    %5042 = vmatprep.subr.mxu0 0.0
    %5043 = vmatpush2.msra.mxu0 0.0
    %5044 = vmatprep.subr.mxu0 0.0
    %5045 = vmatpush2.msra.mxu0 0.0
    %5046 = vmatprep.subr.mxu0 0.0
    %5047 = vmatpush2.msra.mxu0 0.0
    %5048 = vmatprep.subr.mxu0 0.0
    %5049 = vmatpush2.msra.mxu0 0.0
    %5050 = vmatprep.subr.mxu0 0.0
    %5051 = vmatpush2.msra.mxu0 0.0
    %5052 = vmatprep.subr.mxu0 0.0
    %5053 = vmatpush2.msra.mxu0 0.0
    %5054 = vmatprep.subr.mxu0 0.0
    %5055 = vmatpush2.msra.mxu0 0.0
    %5056 = vmatprep.subr.mxu0 0.0
    %5057 = vmatpush2.msra.mxu0 0.0
    %5058 = vmatprep.subr.mxu0 0.0
    %5059 = vmatpush2.msra.mxu0 0.0
    %5060 = vmatprep.subr.mxu0 0.0
    %5061 = vmatpush2.msra.mxu0 0.0
    %5062 = vmatprep.mubr.f32.mxu0 0.0
    %v5063 = vand.u32 %v4884, 4294901760
    %5064 = vmatmul.mubr.f32.gmra.mxu0 %v5063
    %v5065 = vpop.f32.mrf.mxu0
    %v5066 = vadd.f32 %v4965, %v5065
    %v5067 = vpop.f32.mrf.mxu0
    %5068 = vmatprep.mubr.f32.mxu0 0.0
    %v5069 = vand.u32 %v4887, 4294901760
    %5070 = vmatmul.mubr.f32.gmra.mxu0 %v5069
    %v5071 = vpop.f32.mrf.mxu0
    %v5072 = vadd.f32 %v4975, %v5071
    %v5073 = vpop.f32.mrf.mxu0
    %5074 = vdwg.mxu0
    %5075 = vmatprep.subr.mxu0 0.0
    %5076 = vmatpush1.msra.mxu0 0.0
    %5077 = vmatprep.subr.mxu0 0.0
    %5078 = vmatpush1.msra.mxu0 0.0
    %5079 = vmatprep.subr.mxu0 0.0
    %5080 = vmatpush1.msra.mxu0 0.0
    %5081 = vmatprep.subr.mxu0 0.0
    %5082 = vmatpush1.msra.mxu0 0.0
    %5083 = vmatprep.subr.mxu0 0.0
    %5084 = vmatpush1.msra.mxu0 0.0
    %5085 = vmatprep.subr.mxu0 0.0
    %5086 = vmatpush1.msra.mxu0 0.0
    %5087 = vmatprep.subr.mxu0 0.0
    %5088 = vmatpush1.msra.mxu0 0.0
    %5089 = vmatprep.subr.mxu0 0.0
    %5090 = vmatpush1.msra.mxu0 0.0
    %5091 = vmatprep.subr.mxu0 0.0
    %5092 = vmatpush1.msra.mxu0 0.0
    %5093 = vmatprep.subr.mxu0 0.0
    %5094 = vmatpush1.msra.mxu0 0.0
    %5095 = vmatprep.subr.mxu0 0.0
    %5096 = vmatpush1.msra.mxu0 0.0
    %5097 = vmatprep.subr.mxu0 0.0
    %5098 = vmatpush1.msra.mxu0 0.0
    %5099 = vmatprep.subr.mxu0 0.0
    %v5100 = vand.u32 %v4869, 4294901760
    %v5101 = vsub.f32 %v4869, %v5100
    %5102 = vmatpush1.msra.mxu0 %v5101
    %5103 = vmatprep.subr.mxu0 0.0
    %v5104 = vand.u32 %v4868, 4294901760
    %v5105 = vsub.f32 %v4868, %v5104
    %5106 = vmatpush1.msra.mxu0 %v5105
    %5107 = vmatprep.subr.mxu0 0.0
    %v5108 = vand.u32 %v4867, 4294901760
    %v5109 = vsub.f32 %v4867, %v5108
    %5110 = vmatpush1.msra.mxu0 %v5109
    %5111 = vmatprep.subr.mxu0 0.0
    %v5112 = vand.u32 %v4866, 4294901760
    %v5113 = vsub.f32 %v4866, %v5112
    %5114 = vmatpush1.msra.mxu0 %v5113
    %5115 = vmatprep.subr.mxu0 0.0
    %5116 = vmatpush2.msra.mxu0 0.0
    %5117 = vmatprep.subr.mxu0 0.0
    %5118 = vmatpush2.msra.mxu0 0.0
    %5119 = vmatprep.subr.mxu0 0.0
    %5120 = vmatpush2.msra.mxu0 0.0
    %5121 = vmatprep.subr.mxu0 0.0
    %5122 = vmatpush2.msra.mxu0 0.0
    %5123 = vmatprep.subr.mxu0 0.0
    %5124 = vmatpush2.msra.mxu0 0.0
    %5125 = vmatprep.subr.mxu0 0.0
    %5126 = vmatpush2.msra.mxu0 0.0
    %5127 = vmatprep.subr.mxu0 0.0
    %5128 = vmatpush2.msra.mxu0 0.0
    %5129 = vmatprep.subr.mxu0 0.0
    %5130 = vmatpush2.msra.mxu0 0.0
    %5131 = vmatprep.subr.mxu0 0.0
    %5132 = vmatpush2.msra.mxu0 0.0
    %5133 = vmatprep.subr.mxu0 0.0
    %5134 = vmatpush2.msra.mxu0 0.0
    %5135 = vmatprep.subr.mxu0 0.0
    %5136 = vmatpush2.msra.mxu0 0.0
    %5137 = vmatprep.subr.mxu0 0.0
    %5138 = vmatpush2.msra.mxu0 0.0
    %5139 = vmatprep.subr.mxu0 0.0
    %5140 = vmatpush2.msra.mxu0 0.0
    %5141 = vmatprep.subr.mxu0 0.0
    %5142 = vmatpush2.msra.mxu0 0.0
    %5143 = vmatprep.subr.mxu0 0.0
    %5144 = vmatpush2.msra.mxu0 0.0
    %5145 = vmatprep.subr.mxu0 0.0
    %5146 = vmatpush2.msra.mxu0 0.0
    %5147 = vmatprep.mubr.f32.mxu0 0.0
    %v5148 = vand.u32 %v4884, 4294901760
    %v5149 = vsub.f32 %v4884, %v5148
    %5150 = vmatmul.mubr.f32.gmra.mxu0 %v5149
    %v5151 = vpop.f32.mrf.mxu0
    %v5152 = vadd.f32 %v5066, %v5151
    %v5153 = vpop.f32.mrf.mxu0
    %5154 = vmatprep.mubr.f32.mxu0 0.0
    %v5155 = vand.u32 %v4887, 4294901760
    %v5156 = vsub.f32 %v4887, %v5155
    %5157 = vmatmul.mubr.f32.gmra.mxu0 %v5156
    %v5158 = vpop.f32.mrf.mxu0
    %v5159 = vadd.f32 %v5072, %v5158
    %v5160 = vpop.f32.mrf.mxu0
    %5161 = vdwg.mxu0
    %5162 = vmatprep.subr.mxu0 0.0
    %5163 = vmatpush1.msra.mxu0 0.0
    %5164 = vmatprep.subr.mxu0 0.0
    %5165 = vmatpush1.msra.mxu0 0.0
    %5166 = vmatprep.subr.mxu0 0.0
    %5167 = vmatpush1.msra.mxu0 0.0
    %5168 = vmatprep.subr.mxu0 0.0
    %5169 = vmatpush1.msra.mxu0 0.0
    %5170 = vmatprep.subr.mxu0 0.0
    %5171 = vmatpush1.msra.mxu0 0.0
    %5172 = vmatprep.subr.mxu0 0.0
    %5173 = vmatpush1.msra.mxu0 0.0
    %5174 = vmatprep.subr.mxu0 0.0
    %5175 = vmatpush1.msra.mxu0 0.0
    %5176 = vmatprep.subr.mxu0 0.0
    %5177 = vmatpush1.msra.mxu0 0.0
    %5178 = vmatprep.subr.mxu0 0.0
    %5179 = vmatpush1.msra.mxu0 0.0
    %5180 = vmatprep.subr.mxu0 0.0
    %5181 = vmatpush1.msra.mxu0 0.0
    %5182 = vmatprep.subr.mxu0 0.0
    %5183 = vmatpush1.msra.mxu0 0.0
    %5184 = vmatprep.subr.mxu0 0.0
    %5185 = vmatpush1.msra.mxu0 0.0
    %5186 = vmatprep.subr.mxu0 0.0
    %v5187 = vand.u32 %v4869, 4294901760
    %5188 = vmatpush1.msra.mxu0 %v5187
    %5189 = vmatprep.subr.mxu0 0.0
    %v5190 = vand.u32 %v4868, 4294901760
    %5191 = vmatpush1.msra.mxu0 %v5190
    %5192 = vmatprep.subr.mxu0 0.0
    %v5193 = vand.u32 %v4867, 4294901760
    %5194 = vmatpush1.msra.mxu0 %v5193
    %5195 = vmatprep.subr.mxu0 0.0
    %v5196 = vand.u32 %v4866, 4294901760
    %5197 = vmatpush1.msra.mxu0 %v5196
    %5198 = vmatprep.subr.mxu0 0.0
    %5199 = vmatpush2.msra.mxu0 0.0
    %5200 = vmatprep.subr.mxu0 0.0
    %5201 = vmatpush2.msra.mxu0 0.0
    %5202 = vmatprep.subr.mxu0 0.0
    %5203 = vmatpush2.msra.mxu0 0.0
    %5204 = vmatprep.subr.mxu0 0.0
    %5205 = vmatpush2.msra.mxu0 0.0
    %5206 = vmatprep.subr.mxu0 0.0
    %5207 = vmatpush2.msra.mxu0 0.0
    %5208 = vmatprep.subr.mxu0 0.0
    %5209 = vmatpush2.msra.mxu0 0.0
    %5210 = vmatprep.subr.mxu0 0.0
    %5211 = vmatpush2.msra.mxu0 0.0
    %5212 = vmatprep.subr.mxu0 0.0
    %5213 = vmatpush2.msra.mxu0 0.0
    %5214 = vmatprep.subr.mxu0 0.0
    %5215 = vmatpush2.msra.mxu0 0.0
    %5216 = vmatprep.subr.mxu0 0.0
    %5217 = vmatpush2.msra.mxu0 0.0
    %5218 = vmatprep.subr.mxu0 0.0
    %5219 = vmatpush2.msra.mxu0 0.0
    %5220 = vmatprep.subr.mxu0 0.0
    %5221 = vmatpush2.msra.mxu0 0.0
    %5222 = vmatprep.subr.mxu0 0.0
    %5223 = vmatpush2.msra.mxu0 0.0
    %5224 = vmatprep.subr.mxu0 0.0
    %5225 = vmatpush2.msra.mxu0 0.0
    %5226 = vmatprep.subr.mxu0 0.0
    %5227 = vmatpush2.msra.mxu0 0.0
    %5228 = vmatprep.subr.mxu0 0.0
    %5229 = vmatpush2.msra.mxu0 0.0
    %5230 = vmatprep.mubr.f32.mxu0 0.0
    %v5231 = vand.u32 %v4884, 4294901760
    %v5232 = vsub.f32 %v4884, %v5231
    %v5233 = vand.u32 %v5232, 4294901760
    %5234 = vmatmul.mubr.f32.gmra.mxu0 %v5233
    %v5235 = vpop.f32.mrf.mxu0
    %v5236 = vadd.f32 %v5152, %v5235
    %v5237 = vpop.f32.mrf.mxu0
    %5238 = vmatprep.mubr.f32.mxu0 0.0
    %v5239 = vand.u32 %v4887, 4294901760
    %v5240 = vsub.f32 %v4887, %v5239
    %v5241 = vand.u32 %v5240, 4294901760
    %5242 = vmatmul.mubr.f32.gmra.mxu0 %v5241
    %v5243 = vpop.f32.mrf.mxu0
    %v5244 = vadd.f32 %v5159, %v5243
    %v5245 = vpop.f32.mrf.mxu0
    %5246 = vdwg.mxu0
    %5247 = vmatprep.subr.mxu0 0.0
    %5248 = vmatpush1.msra.mxu0 0.0
    %5249 = vmatprep.subr.mxu0 0.0
    %5250 = vmatpush1.msra.mxu0 0.0
    %5251 = vmatprep.subr.mxu0 0.0
    %5252 = vmatpush1.msra.mxu0 0.0
    %5253 = vmatprep.subr.mxu0 0.0
    %5254 = vmatpush1.msra.mxu0 0.0
    %5255 = vmatprep.subr.mxu0 0.0
    %5256 = vmatpush1.msra.mxu0 0.0
    %5257 = vmatprep.subr.mxu0 0.0
    %5258 = vmatpush1.msra.mxu0 0.0
    %5259 = vmatprep.subr.mxu0 0.0
    %5260 = vmatpush1.msra.mxu0 0.0
    %5261 = vmatprep.subr.mxu0 0.0
    %5262 = vmatpush1.msra.mxu0 0.0
    %5263 = vmatprep.subr.mxu0 0.0
    %5264 = vmatpush1.msra.mxu0 0.0
    %5265 = vmatprep.subr.mxu0 0.0
    %5266 = vmatpush1.msra.mxu0 0.0
    %5267 = vmatprep.subr.mxu0 0.0
    %5268 = vmatpush1.msra.mxu0 0.0
    %5269 = vmatprep.subr.mxu0 0.0
    %5270 = vmatpush1.msra.mxu0 0.0
    %5271 = vmatprep.subr.mxu0 0.0
    %v5272 = vand.u32 %v4869, 4294901760
    %v5273 = vsub.f32 %v4869, %v5272
    %v5274 = vand.u32 %v5273, 4294901760
    %5275 = vmatpush1.msra.mxu0 %v5274
    %5276 = vmatprep.subr.mxu0 0.0
    %v5277 = vand.u32 %v4868, 4294901760
    %v5278 = vsub.f32 %v4868, %v5277
    %v5279 = vand.u32 %v5278, 4294901760
    %5280 = vmatpush1.msra.mxu0 %v5279
    %5281 = vmatprep.subr.mxu0 0.0
    %v5282 = vand.u32 %v4867, 4294901760
    %v5283 = vsub.f32 %v4867, %v5282
    %v5284 = vand.u32 %v5283, 4294901760
    %5285 = vmatpush1.msra.mxu0 %v5284
    %5286 = vmatprep.subr.mxu0 0.0
    %v5287 = vand.u32 %v4866, 4294901760
    %v5288 = vsub.f32 %v4866, %v5287
    %v5289 = vand.u32 %v5288, 4294901760
    %5290 = vmatpush1.msra.mxu0 %v5289
    %5291 = vmatprep.subr.mxu0 0.0
    %5292 = vmatpush2.msra.mxu0 0.0
    %5293 = vmatprep.subr.mxu0 0.0
    %5294 = vmatpush2.msra.mxu0 0.0
    %5295 = vmatprep.subr.mxu0 0.0
    %5296 = vmatpush2.msra.mxu0 0.0
    %5297 = vmatprep.subr.mxu0 0.0
    %5298 = vmatpush2.msra.mxu0 0.0
    %5299 = vmatprep.subr.mxu0 0.0
    %5300 = vmatpush2.msra.mxu0 0.0
    %5301 = vmatprep.subr.mxu0 0.0
    %5302 = vmatpush2.msra.mxu0 0.0
    %5303 = vmatprep.subr.mxu0 0.0
    %5304 = vmatpush2.msra.mxu0 0.0
    %5305 = vmatprep.subr.mxu0 0.0
    %5306 = vmatpush2.msra.mxu0 0.0
    %5307 = vmatprep.subr.mxu0 0.0
    %5308 = vmatpush2.msra.mxu0 0.0
    %5309 = vmatprep.subr.mxu0 0.0
    %5310 = vmatpush2.msra.mxu0 0.0
    %5311 = vmatprep.subr.mxu0 0.0
    %5312 = vmatpush2.msra.mxu0 0.0
    %5313 = vmatprep.subr.mxu0 0.0
    %5314 = vmatpush2.msra.mxu0 0.0
    %5315 = vmatprep.subr.mxu0 0.0
    %5316 = vmatpush2.msra.mxu0 0.0
    %5317 = vmatprep.subr.mxu0 0.0
    %5318 = vmatpush2.msra.mxu0 0.0
    %5319 = vmatprep.subr.mxu0 0.0
    %5320 = vmatpush2.msra.mxu0 0.0
    %5321 = vmatprep.subr.mxu0 0.0
    %5322 = vmatpush2.msra.mxu0 0.0
    %5323 = vmatprep.mubr.f32.mxu0 0.0
    %v5324 = vand.u32 %v4884, 4294901760
    %5325 = vmatmul.mubr.f32.gmra.mxu0 %v5324
    %v5326 = vpop.f32.mrf.mxu0
    %v5327 = vadd.f32 %v5236, %v5326
    %v5328 = vpop.f32.mrf.mxu0
    %5329 = vmatprep.mubr.f32.mxu0 0.0
    %v5330 = vand.u32 %v4887, 4294901760
    %5331 = vmatmul.mubr.f32.gmra.mxu0 %v5330
    %v5332 = vpop.f32.mrf.mxu0
    %v5333 = vadd.f32 %v5244, %v5332
    %v5334 = vpop.f32.mrf.mxu0
    %5335 = vdwg.mxu0
    %5336 = vmatprep.subr.mxu0 0.0
    %5337 = vmatpush1.msra.mxu0 0.0
    %5338 = vmatprep.subr.mxu0 0.0
    %5339 = vmatpush1.msra.mxu0 0.0
    %5340 = vmatprep.subr.mxu0 0.0
    %5341 = vmatpush1.msra.mxu0 0.0
    %5342 = vmatprep.subr.mxu0 0.0
    %5343 = vmatpush1.msra.mxu0 0.0
    %5344 = vmatprep.subr.mxu0 0.0
    %5345 = vmatpush1.msra.mxu0 0.0
    %5346 = vmatprep.subr.mxu0 0.0
    %5347 = vmatpush1.msra.mxu0 0.0
    %5348 = vmatprep.subr.mxu0 0.0
    %5349 = vmatpush1.msra.mxu0 0.0
    %5350 = vmatprep.subr.mxu0 0.0
    %5351 = vmatpush1.msra.mxu0 0.0
    %5352 = vmatprep.subr.mxu0 0.0
    %5353 = vmatpush1.msra.mxu0 0.0
    %5354 = vmatprep.subr.mxu0 0.0
    %5355 = vmatpush1.msra.mxu0 0.0
    %5356 = vmatprep.subr.mxu0 0.0
    %5357 = vmatpush1.msra.mxu0 0.0
    %5358 = vmatprep.subr.mxu0 0.0
    %5359 = vmatpush1.msra.mxu0 0.0
    %5360 = vmatprep.subr.mxu0 0.0
    %v5361 = vand.u32 %v4869, 4294901760
    %5362 = vmatpush1.msra.mxu0 %v5361
    %5363 = vmatprep.subr.mxu0 0.0
    %v5364 = vand.u32 %v4868, 4294901760
    %5365 = vmatpush1.msra.mxu0 %v5364
    %5366 = vmatprep.subr.mxu0 0.0
    %v5367 = vand.u32 %v4867, 4294901760
    %5368 = vmatpush1.msra.mxu0 %v5367
    %5369 = vmatprep.subr.mxu0 0.0
    %v5370 = vand.u32 %v4866, 4294901760
    %5371 = vmatpush1.msra.mxu0 %v5370
    %5372 = vmatprep.subr.mxu0 0.0
    %5373 = vmatpush2.msra.mxu0 0.0
    %5374 = vmatprep.subr.mxu0 0.0
    %5375 = vmatpush2.msra.mxu0 0.0
    %5376 = vmatprep.subr.mxu0 0.0
    %5377 = vmatpush2.msra.mxu0 0.0
    %5378 = vmatprep.subr.mxu0 0.0
    %5379 = vmatpush2.msra.mxu0 0.0
    %5380 = vmatprep.subr.mxu0 0.0
    %5381 = vmatpush2.msra.mxu0 0.0
    %5382 = vmatprep.subr.mxu0 0.0
    %5383 = vmatpush2.msra.mxu0 0.0
    %5384 = vmatprep.subr.mxu0 0.0
    %5385 = vmatpush2.msra.mxu0 0.0
    %5386 = vmatprep.subr.mxu0 0.0
    %5387 = vmatpush2.msra.mxu0 0.0
    %5388 = vmatprep.subr.mxu0 0.0
    %5389 = vmatpush2.msra.mxu0 0.0
    %5390 = vmatprep.subr.mxu0 0.0
    %5391 = vmatpush2.msra.mxu0 0.0
    %5392 = vmatprep.subr.mxu0 0.0
    %5393 = vmatpush2.msra.mxu0 0.0
    %5394 = vmatprep.subr.mxu0 0.0
    %5395 = vmatpush2.msra.mxu0 0.0
    %5396 = vmatprep.subr.mxu0 0.0
    %5397 = vmatpush2.msra.mxu0 0.0
    %5398 = vmatprep.subr.mxu0 0.0
    %5399 = vmatpush2.msra.mxu0 0.0
    %5400 = vmatprep.subr.mxu0 0.0
    %5401 = vmatpush2.msra.mxu0 0.0
    %5402 = vmatprep.subr.mxu0 0.0
    %5403 = vmatpush2.msra.mxu0 0.0
    %5404 = vmatprep.mubr.f32.mxu0 0.0
    %v5405 = vand.u32 %v4884, 4294901760
    %5406 = vmatmul.mubr.f32.gmra.mxu0 %v5405
    %v5407 = vpop.f32.mrf.mxu0
    %v5408 = vadd.f32 %v5327, %v5407
    %v5409 = vpop.f32.mrf.mxu0
    %5410 = vmatprep.mubr.f32.mxu0 0.0
    %v5411 = vand.u32 %v4887, 4294901760
    %5412 = vmatmul.mubr.f32.gmra.mxu0 %v5411
    %v5413 = vpop.f32.mrf.mxu0
    %v5414 = vadd.f32 %v5333, %v5413
    %v5415 = vpop.f32.mrf.mxu0
    %5416 = vdwg.mxu0
    %v5417 = vld [vmem:[#allocation6] sm:$0xff]
    %v5418 = vld [vmem:[#allocation6 + $0x8] sm:$0xff]
    %v5419 = vld [vmem:[#allocation3] sm:$0xff]
    %v5420 = vld [vmem:[#allocation3 + $0x8] sm:$0xff]
    %v5421 = vld [vmem:[#allocation3 + $0x10] sm:$0xff]
    %v5422 = vld [vmem:[#allocation3 + $0x18] sm:$0xff]
    %v5423 = vld [vmem:[#allocation3 + $0x20] sm:$0xff]
    %v5424 = vld [vmem:[#allocation3 + $0x28] sm:$0xff]
    %v5425 = vld [vmem:[#allocation3 + $0x30] sm:$0xff]
    %v5426 = vld [vmem:[#allocation3 + $0x38] sm:$0xff]
    %v5427 = vld [vmem:[#allocation3 + $0x40] sm:$0xff]
    %v5428 = vld [vmem:[#allocation3 + $0x48] sm:$0xff]
    %v5429 = vld [vmem:[#allocation3 + $0x50] sm:$0xff]
    %v5430 = vld [vmem:[#allocation3 + $0x58] sm:$0xff]
    %v5431 = vld [vmem:[#allocation3 + $0x60] sm:$0xff]
    %v5432 = vld [vmem:[#allocation3 + $0x68] sm:$0xff]
    %v5433 = vld [vmem:[#allocation3 + $0x70] sm:$0xff]
    %v5434 = vld [vmem:[#allocation3 + $0x78] sm:$0xff]
    %5435 = vmatprep.subr.mxu0 0.0
    %v5436 = vand.u32 %v5434, 4294901760
    %5437 = vmatpush1.msra.mxu0 %v5436
    %5438 = vmatprep.subr.mxu0 0.0
    %v5439 = vand.u32 %v5433, 4294901760
    %5440 = vmatpush1.msra.mxu0 %v5439
    %5441 = vmatprep.subr.mxu0 0.0
    %v5442 = vand.u32 %v5432, 4294901760
    %5443 = vmatpush1.msra.mxu0 %v5442
    %5444 = vmatprep.subr.mxu0 0.0
    %v5445 = vand.u32 %v5431, 4294901760
    %5446 = vmatpush1.msra.mxu0 %v5445
    %5447 = vmatprep.subr.mxu0 0.0
    %v5448 = vand.u32 %v5430, 4294901760
    %5449 = vmatpush1.msra.mxu0 %v5448
    %5450 = vmatprep.subr.mxu0 0.0
    %v5451 = vand.u32 %v5429, 4294901760
    %5452 = vmatpush1.msra.mxu0 %v5451
    %5453 = vmatprep.subr.mxu0 0.0
    %v5454 = vand.u32 %v5428, 4294901760
    %5455 = vmatpush1.msra.mxu0 %v5454
    %5456 = vmatprep.subr.mxu0 0.0
    %v5457 = vand.u32 %v5427, 4294901760
    %5458 = vmatpush1.msra.mxu0 %v5457
    %5459 = vmatprep.subr.mxu0 0.0
    %v5460 = vand.u32 %v5426, 4294901760
    %5461 = vmatpush1.msra.mxu0 %v5460
    %5462 = vmatprep.subr.mxu0 0.0
    %v5463 = vand.u32 %v5425, 4294901760
    %5464 = vmatpush1.msra.mxu0 %v5463
    %5465 = vmatprep.subr.mxu0 0.0
    %v5466 = vand.u32 %v5424, 4294901760
    %5467 = vmatpush1.msra.mxu0 %v5466
    %5468 = vmatprep.subr.mxu0 0.0
    %v5469 = vand.u32 %v5423, 4294901760
    %5470 = vmatpush1.msra.mxu0 %v5469
    %5471 = vmatprep.subr.mxu0 0.0
    %v5472 = vand.u32 %v5422, 4294901760
    %5473 = vmatpush1.msra.mxu0 %v5472
    %5474 = vmatprep.subr.mxu0 0.0
    %v5475 = vand.u32 %v5421, 4294901760
    %5476 = vmatpush1.msra.mxu0 %v5475
    %5477 = vmatprep.subr.mxu0 0.0
    %v5478 = vand.u32 %v5420, 4294901760
    %5479 = vmatpush1.msra.mxu0 %v5478
    %5480 = vmatprep.subr.mxu0 0.0
    %v5481 = vand.u32 %v5419, 4294901760
    %5482 = vmatpush1.msra.mxu0 %v5481
    %5483 = vmatprep.subr.mxu0 0.0
    %5484 = vmatpush2.msra.mxu0 0.0
    %5485 = vmatprep.subr.mxu0 0.0
    %5486 = vmatpush2.msra.mxu0 0.0
    %5487 = vmatprep.subr.mxu0 0.0
    %5488 = vmatpush2.msra.mxu0 0.0
    %5489 = vmatprep.subr.mxu0 0.0
    %5490 = vmatpush2.msra.mxu0 0.0
    %5491 = vmatprep.subr.mxu0 0.0
    %5492 = vmatpush2.msra.mxu0 0.0
    %5493 = vmatprep.subr.mxu0 0.0
    %5494 = vmatpush2.msra.mxu0 0.0
    %5495 = vmatprep.subr.mxu0 0.0
    %5496 = vmatpush2.msra.mxu0 0.0
    %5497 = vmatprep.subr.mxu0 0.0
    %5498 = vmatpush2.msra.mxu0 0.0
    %5499 = vmatprep.subr.mxu0 0.0
    %5500 = vmatpush2.msra.mxu0 0.0
    %5501 = vmatprep.subr.mxu0 0.0
    %5502 = vmatpush2.msra.mxu0 0.0
    %5503 = vmatprep.subr.mxu0 0.0
    %5504 = vmatpush2.msra.mxu0 0.0
    %5505 = vmatprep.subr.mxu0 0.0
    %5506 = vmatpush2.msra.mxu0 0.0
    %5507 = vmatprep.subr.mxu0 0.0
    %5508 = vmatpush2.msra.mxu0 0.0
    %5509 = vmatprep.subr.mxu0 0.0
    %5510 = vmatpush2.msra.mxu0 0.0
    %5511 = vmatprep.subr.mxu0 0.0
    %5512 = vmatpush2.msra.mxu0 0.0
    %5513 = vmatprep.subr.mxu0 0.0
    %5514 = vmatpush2.msra.mxu0 0.0
    %5515 = vmatprep.mubr.f32.mxu0 0.0
    %v5516 = vand.u32 %v5408, 4294901760
    %v5517 = vsub.f32 %v5408, %v5516
    %v5518 = vand.u32 %v5517, 4294901760
    %v5519 = vsub.f32 %v5517, %v5518
    %v5520 = vand.u32 %v5519, 4294901760
    %5521 = vmatmul.mubr.f32.gmra.mxu0 %v5520
    %v5522 = vpop.f32.mrf.mxu0
    %v5523 = vadd.f32 0.0, %v5522
    %v5524 = vpop.f32.mrf.mxu0
    %5525 = vmatprep.mubr.f32.mxu0 0.0
    %v5526 = vand.u32 %v5414, 4294901760
    %v5527 = vsub.f32 %v5414, %v5526
    %v5528 = vand.u32 %v5527, 4294901760
    %v5529 = vsub.f32 %v5527, %v5528
    %v5530 = vand.u32 %v5529, 4294901760
    %5531 = vmatmul.mubr.f32.gmra.mxu0 %v5530
    %v5532 = vpop.f32.mrf.mxu0
    %v5533 = vadd.f32 0.0, %v5532
    %v5534 = vpop.f32.mrf.mxu0
    %5535 = vdwg.mxu0
    %5536 = vmatprep.subr.mxu0 0.0
    %v5537 = vand.u32 %v5434, 4294901760
    %v5538 = vsub.f32 %v5434, %v5537
    %v5539 = vand.u32 %v5538, 4294901760
    %v5540 = vsub.f32 %v5538, %v5539
    %v5541 = vand.u32 %v5540, 4294901760
    %5542 = vmatpush1.msra.mxu0 %v5541
    %5543 = vmatprep.subr.mxu0 0.0
    %v5544 = vand.u32 %v5433, 4294901760
    %v5545 = vsub.f32 %v5433, %v5544
    %v5546 = vand.u32 %v5545, 4294901760
    %v5547 = vsub.f32 %v5545, %v5546
    %v5548 = vand.u32 %v5547, 4294901760
    %5549 = vmatpush1.msra.mxu0 %v5548
    %5550 = vmatprep.subr.mxu0 0.0
    %v5551 = vand.u32 %v5432, 4294901760
    %v5552 = vsub.f32 %v5432, %v5551
    %v5553 = vand.u32 %v5552, 4294901760
    %v5554 = vsub.f32 %v5552, %v5553
    %v5555 = vand.u32 %v5554, 4294901760
    %5556 = vmatpush1.msra.mxu0 %v5555
    %5557 = vmatprep.subr.mxu0 0.0
    %v5558 = vand.u32 %v5431, 4294901760
    %v5559 = vsub.f32 %v5431, %v5558
    %v5560 = vand.u32 %v5559, 4294901760
    %v5561 = vsub.f32 %v5559, %v5560
    %v5562 = vand.u32 %v5561, 4294901760
    %5563 = vmatpush1.msra.mxu0 %v5562
    %5564 = vmatprep.subr.mxu0 0.0
    %v5565 = vand.u32 %v5430, 4294901760
    %v5566 = vsub.f32 %v5430, %v5565
    %v5567 = vand.u32 %v5566, 4294901760
    %v5568 = vsub.f32 %v5566, %v5567
    %v5569 = vand.u32 %v5568, 4294901760
    %5570 = vmatpush1.msra.mxu0 %v5569
    %5571 = vmatprep.subr.mxu0 0.0
    %v5572 = vand.u32 %v5429, 4294901760
    %v5573 = vsub.f32 %v5429, %v5572
    %v5574 = vand.u32 %v5573, 4294901760
    %v5575 = vsub.f32 %v5573, %v5574
    %v5576 = vand.u32 %v5575, 4294901760
    %5577 = vmatpush1.msra.mxu0 %v5576
    %5578 = vmatprep.subr.mxu0 0.0
    %v5579 = vand.u32 %v5428, 4294901760
    %v5580 = vsub.f32 %v5428, %v5579
    %v5581 = vand.u32 %v5580, 4294901760
    %v5582 = vsub.f32 %v5580, %v5581
    %v5583 = vand.u32 %v5582, 4294901760
    %5584 = vmatpush1.msra.mxu0 %v5583
    %5585 = vmatprep.subr.mxu0 0.0
    %v5586 = vand.u32 %v5427, 4294901760
    %v5587 = vsub.f32 %v5427, %v5586
    %v5588 = vand.u32 %v5587, 4294901760
    %v5589 = vsub.f32 %v5587, %v5588
    %v5590 = vand.u32 %v5589, 4294901760
    %5591 = vmatpush1.msra.mxu0 %v5590
    %5592 = vmatprep.subr.mxu0 0.0
    %v5593 = vand.u32 %v5426, 4294901760
    %v5594 = vsub.f32 %v5426, %v5593
    %v5595 = vand.u32 %v5594, 4294901760
    %v5596 = vsub.f32 %v5594, %v5595
    %v5597 = vand.u32 %v5596, 4294901760
    %5598 = vmatpush1.msra.mxu0 %v5597
    %5599 = vmatprep.subr.mxu0 0.0
    %v5600 = vand.u32 %v5425, 4294901760
    %v5601 = vsub.f32 %v5425, %v5600
    %v5602 = vand.u32 %v5601, 4294901760
    %v5603 = vsub.f32 %v5601, %v5602
    %v5604 = vand.u32 %v5603, 4294901760
    %5605 = vmatpush1.msra.mxu0 %v5604
    %5606 = vmatprep.subr.mxu0 0.0
    %v5607 = vand.u32 %v5424, 4294901760
    %v5608 = vsub.f32 %v5424, %v5607
    %v5609 = vand.u32 %v5608, 4294901760
    %v5610 = vsub.f32 %v5608, %v5609
    %v5611 = vand.u32 %v5610, 4294901760
    %5612 = vmatpush1.msra.mxu0 %v5611
    %5613 = vmatprep.subr.mxu0 0.0
    %v5614 = vand.u32 %v5423, 4294901760
    %v5615 = vsub.f32 %v5423, %v5614
    %v5616 = vand.u32 %v5615, 4294901760
    %v5617 = vsub.f32 %v5615, %v5616
    %v5618 = vand.u32 %v5617, 4294901760
    %5619 = vmatpush1.msra.mxu0 %v5618
    %5620 = vmatprep.subr.mxu0 0.0
    %v5621 = vand.u32 %v5422, 4294901760
    %v5622 = vsub.f32 %v5422, %v5621
    %v5623 = vand.u32 %v5622, 4294901760
    %v5624 = vsub.f32 %v5622, %v5623
    %v5625 = vand.u32 %v5624, 4294901760
    %5626 = vmatpush1.msra.mxu0 %v5625
    %5627 = vmatprep.subr.mxu0 0.0
    %v5628 = vand.u32 %v5421, 4294901760
    %v5629 = vsub.f32 %v5421, %v5628
    %v5630 = vand.u32 %v5629, 4294901760
    %v5631 = vsub.f32 %v5629, %v5630
    %v5632 = vand.u32 %v5631, 4294901760
    %5633 = vmatpush1.msra.mxu0 %v5632
    %5634 = vmatprep.subr.mxu0 0.0
    %v5635 = vand.u32 %v5420, 4294901760
    %v5636 = vsub.f32 %v5420, %v5635
    %v5637 = vand.u32 %v5636, 4294901760
    %v5638 = vsub.f32 %v5636, %v5637
    %v5639 = vand.u32 %v5638, 4294901760
    %5640 = vmatpush1.msra.mxu0 %v5639
    %5641 = vmatprep.subr.mxu0 0.0
    %v5642 = vand.u32 %v5419, 4294901760
    %v5643 = vsub.f32 %v5419, %v5642
    %v5644 = vand.u32 %v5643, 4294901760
    %v5645 = vsub.f32 %v5643, %v5644
    %v5646 = vand.u32 %v5645, 4294901760
    %5647 = vmatpush1.msra.mxu0 %v5646
    %5648 = vmatprep.subr.mxu0 0.0
    %5649 = vmatpush2.msra.mxu0 0.0
    %5650 = vmatprep.subr.mxu0 0.0
    %5651 = vmatpush2.msra.mxu0 0.0
    %5652 = vmatprep.subr.mxu0 0.0
    %5653 = vmatpush2.msra.mxu0 0.0
    %5654 = vmatprep.subr.mxu0 0.0
    %5655 = vmatpush2.msra.mxu0 0.0
    %5656 = vmatprep.subr.mxu0 0.0
    %5657 = vmatpush2.msra.mxu0 0.0
    %5658 = vmatprep.subr.mxu0 0.0
    %5659 = vmatpush2.msra.mxu0 0.0
    %5660 = vmatprep.subr.mxu0 0.0
    %5661 = vmatpush2.msra.mxu0 0.0
    %5662 = vmatprep.subr.mxu0 0.0
    %5663 = vmatpush2.msra.mxu0 0.0
    %5664 = vmatprep.subr.mxu0 0.0
    %5665 = vmatpush2.msra.mxu0 0.0
    %5666 = vmatprep.subr.mxu0 0.0
    %5667 = vmatpush2.msra.mxu0 0.0
    %5668 = vmatprep.subr.mxu0 0.0
    %5669 = vmatpush2.msra.mxu0 0.0
    %5670 = vmatprep.subr.mxu0 0.0
    %5671 = vmatpush2.msra.mxu0 0.0
    %5672 = vmatprep.subr.mxu0 0.0
    %5673 = vmatpush2.msra.mxu0 0.0
    %5674 = vmatprep.subr.mxu0 0.0
    %5675 = vmatpush2.msra.mxu0 0.0
    %5676 = vmatprep.subr.mxu0 0.0
    %5677 = vmatpush2.msra.mxu0 0.0
    %5678 = vmatprep.subr.mxu0 0.0
    %5679 = vmatpush2.msra.mxu0 0.0
    %5680 = vmatprep.mubr.f32.mxu0 0.0
    %v5681 = vand.u32 %v5408, 4294901760
    %5682 = vmatmul.mubr.f32.gmra.mxu0 %v5681
    %v5683 = vpop.f32.mrf.mxu0
    %v5684 = vadd.f32 %v5523, %v5683
    %v5685 = vpop.f32.mrf.mxu0
    %5686 = vmatprep.mubr.f32.mxu0 0.0
    %v5687 = vand.u32 %v5414, 4294901760
    %5688 = vmatmul.mubr.f32.gmra.mxu0 %v5687
    %v5689 = vpop.f32.mrf.mxu0
    %v5690 = vadd.f32 %v5533, %v5689
    %v5691 = vpop.f32.mrf.mxu0
    %5692 = vdwg.mxu0
    %5693 = vmatprep.subr.mxu0 0.0
    %v5694 = vand.u32 %v5434, 4294901760
    %v5695 = vsub.f32 %v5434, %v5694
    %5696 = vmatpush1.msra.mxu0 %v5695
    %5697 = vmatprep.subr.mxu0 0.0
    %v5698 = vand.u32 %v5433, 4294901760
    %v5699 = vsub.f32 %v5433, %v5698
    %5700 = vmatpush1.msra.mxu0 %v5699
    %5701 = vmatprep.subr.mxu0 0.0
    %v5702 = vand.u32 %v5432, 4294901760
    %v5703 = vsub.f32 %v5432, %v5702
    %5704 = vmatpush1.msra.mxu0 %v5703
    %5705 = vmatprep.subr.mxu0 0.0
    %v5706 = vand.u32 %v5431, 4294901760
    %v5707 = vsub.f32 %v5431, %v5706
    %5708 = vmatpush1.msra.mxu0 %v5707
    %5709 = vmatprep.subr.mxu0 0.0
    %v5710 = vand.u32 %v5430, 4294901760
    %v5711 = vsub.f32 %v5430, %v5710
    %5712 = vmatpush1.msra.mxu0 %v5711
    %5713 = vmatprep.subr.mxu0 0.0
    %v5714 = vand.u32 %v5429, 4294901760
    %v5715 = vsub.f32 %v5429, %v5714
    %5716 = vmatpush1.msra.mxu0 %v5715
    %5717 = vmatprep.subr.mxu0 0.0
    %v5718 = vand.u32 %v5428, 4294901760
    %v5719 = vsub.f32 %v5428, %v5718
    %5720 = vmatpush1.msra.mxu0 %v5719
    %5721 = vmatprep.subr.mxu0 0.0
    %v5722 = vand.u32 %v5427, 4294901760
    %v5723 = vsub.f32 %v5427, %v5722
    %5724 = vmatpush1.msra.mxu0 %v5723
    %5725 = vmatprep.subr.mxu0 0.0
    %v5726 = vand.u32 %v5426, 4294901760
    %v5727 = vsub.f32 %v5426, %v5726
    %5728 = vmatpush1.msra.mxu0 %v5727
    %5729 = vmatprep.subr.mxu0 0.0
    %v5730 = vand.u32 %v5425, 4294901760
    %v5731 = vsub.f32 %v5425, %v5730
    %5732 = vmatpush1.msra.mxu0 %v5731
    %5733 = vmatprep.subr.mxu0 0.0
    %v5734 = vand.u32 %v5424, 4294901760
    %v5735 = vsub.f32 %v5424, %v5734
    %5736 = vmatpush1.msra.mxu0 %v5735
    %5737 = vmatprep.subr.mxu0 0.0
    %v5738 = vand.u32 %v5423, 4294901760
    %v5739 = vsub.f32 %v5423, %v5738
    %5740 = vmatpush1.msra.mxu0 %v5739
    %5741 = vmatprep.subr.mxu0 0.0
    %v5742 = vand.u32 %v5422, 4294901760
    %v5743 = vsub.f32 %v5422, %v5742
    %5744 = vmatpush1.msra.mxu0 %v5743
    %5745 = vmatprep.subr.mxu0 0.0
    %v5746 = vand.u32 %v5421, 4294901760
    %v5747 = vsub.f32 %v5421, %v5746
    %5748 = vmatpush1.msra.mxu0 %v5747
    %5749 = vmatprep.subr.mxu0 0.0
    %v5750 = vand.u32 %v5420, 4294901760
    %v5751 = vsub.f32 %v5420, %v5750
    %5752 = vmatpush1.msra.mxu0 %v5751
    %5753 = vmatprep.subr.mxu0 0.0
    %v5754 = vand.u32 %v5419, 4294901760
    %v5755 = vsub.f32 %v5419, %v5754
    %5756 = vmatpush1.msra.mxu0 %v5755
    %5757 = vmatprep.subr.mxu0 0.0
    %5758 = vmatpush2.msra.mxu0 0.0
    %5759 = vmatprep.subr.mxu0 0.0
    %5760 = vmatpush2.msra.mxu0 0.0
    %5761 = vmatprep.subr.mxu0 0.0
    %5762 = vmatpush2.msra.mxu0 0.0
    %5763 = vmatprep.subr.mxu0 0.0
    %5764 = vmatpush2.msra.mxu0 0.0
    %5765 = vmatprep.subr.mxu0 0.0
    %5766 = vmatpush2.msra.mxu0 0.0
    %5767 = vmatprep.subr.mxu0 0.0
    %5768 = vmatpush2.msra.mxu0 0.0
    %5769 = vmatprep.subr.mxu0 0.0
    %5770 = vmatpush2.msra.mxu0 0.0
    %5771 = vmatprep.subr.mxu0 0.0
    %5772 = vmatpush2.msra.mxu0 0.0
    %5773 = vmatprep.subr.mxu0 0.0
    %5774 = vmatpush2.msra.mxu0 0.0
    %5775 = vmatprep.subr.mxu0 0.0
    %5776 = vmatpush2.msra.mxu0 0.0
    %5777 = vmatprep.subr.mxu0 0.0
    %5778 = vmatpush2.msra.mxu0 0.0
    %5779 = vmatprep.subr.mxu0 0.0
    %5780 = vmatpush2.msra.mxu0 0.0
    %5781 = vmatprep.subr.mxu0 0.0
    %5782 = vmatpush2.msra.mxu0 0.0
    %5783 = vmatprep.subr.mxu0 0.0
    %5784 = vmatpush2.msra.mxu0 0.0
    %5785 = vmatprep.subr.mxu0 0.0
    %5786 = vmatpush2.msra.mxu0 0.0
    %5787 = vmatprep.subr.mxu0 0.0
    %5788 = vmatpush2.msra.mxu0 0.0
    %5789 = vmatprep.mubr.f32.mxu0 0.0
    %v5790 = vand.u32 %v5408, 4294901760
    %v5791 = vsub.f32 %v5408, %v5790
    %5792 = vmatmul.mubr.f32.gmra.mxu0 %v5791
    %v5793 = vpop.f32.mrf.mxu0
    %v5794 = vadd.f32 %v5684, %v5793
    %v5795 = vpop.f32.mrf.mxu0
    %5796 = vmatprep.mubr.f32.mxu0 0.0
    %v5797 = vand.u32 %v5414, 4294901760
    %v5798 = vsub.f32 %v5414, %v5797
    %5799 = vmatmul.mubr.f32.gmra.mxu0 %v5798
    %v5800 = vpop.f32.mrf.mxu0
    %v5801 = vadd.f32 %v5690, %v5800
    %v5802 = vpop.f32.mrf.mxu0
    %5803 = vdwg.mxu0
    %5804 = vmatprep.subr.mxu0 0.0
    %v5805 = vand.u32 %v5434, 4294901760
    %5806 = vmatpush1.msra.mxu0 %v5805
    %5807 = vmatprep.subr.mxu0 0.0
    %v5808 = vand.u32 %v5433, 4294901760
    %5809 = vmatpush1.msra.mxu0 %v5808
    %5810 = vmatprep.subr.mxu0 0.0
    %v5811 = vand.u32 %v5432, 4294901760
    %5812 = vmatpush1.msra.mxu0 %v5811
    %5813 = vmatprep.subr.mxu0 0.0
    %v5814 = vand.u32 %v5431, 4294901760
    %5815 = vmatpush1.msra.mxu0 %v5814
    %5816 = vmatprep.subr.mxu0 0.0
    %v5817 = vand.u32 %v5430, 4294901760
    %5818 = vmatpush1.msra.mxu0 %v5817
    %5819 = vmatprep.subr.mxu0 0.0
    %v5820 = vand.u32 %v5429, 4294901760
    %5821 = vmatpush1.msra.mxu0 %v5820
    %5822 = vmatprep.subr.mxu0 0.0
    %v5823 = vand.u32 %v5428, 4294901760
    %5824 = vmatpush1.msra.mxu0 %v5823
    %5825 = vmatprep.subr.mxu0 0.0
    %v5826 = vand.u32 %v5427, 4294901760
    %5827 = vmatpush1.msra.mxu0 %v5826
    %5828 = vmatprep.subr.mxu0 0.0
    %v5829 = vand.u32 %v5426, 4294901760
    %5830 = vmatpush1.msra.mxu0 %v5829
    %5831 = vmatprep.subr.mxu0 0.0
    %v5832 = vand.u32 %v5425, 4294901760
    %5833 = vmatpush1.msra.mxu0 %v5832
    %5834 = vmatprep.subr.mxu0 0.0
    %v5835 = vand.u32 %v5424, 4294901760
    %5836 = vmatpush1.msra.mxu0 %v5835
    %5837 = vmatprep.subr.mxu0 0.0
    %v5838 = vand.u32 %v5423, 4294901760
    %5839 = vmatpush1.msra.mxu0 %v5838
    %5840 = vmatprep.subr.mxu0 0.0
    %v5841 = vand.u32 %v5422, 4294901760
    %5842 = vmatpush1.msra.mxu0 %v5841
    %5843 = vmatprep.subr.mxu0 0.0
    %v5844 = vand.u32 %v5421, 4294901760
    %5845 = vmatpush1.msra.mxu0 %v5844
    %5846 = vmatprep.subr.mxu0 0.0
    %v5847 = vand.u32 %v5420, 4294901760
    %5848 = vmatpush1.msra.mxu0 %v5847
    %5849 = vmatprep.subr.mxu0 0.0
    %v5850 = vand.u32 %v5419, 4294901760
    %5851 = vmatpush1.msra.mxu0 %v5850
    %5852 = vmatprep.subr.mxu0 0.0
    %5853 = vmatpush2.msra.mxu0 0.0
    %5854 = vmatprep.subr.mxu0 0.0
    %5855 = vmatpush2.msra.mxu0 0.0
    %5856 = vmatprep.subr.mxu0 0.0
    %5857 = vmatpush2.msra.mxu0 0.0
    %5858 = vmatprep.subr.mxu0 0.0
    %5859 = vmatpush2.msra.mxu0 0.0
    %5860 = vmatprep.subr.mxu0 0.0
    %5861 = vmatpush2.msra.mxu0 0.0
    %5862 = vmatprep.subr.mxu0 0.0
    %5863 = vmatpush2.msra.mxu0 0.0
    %5864 = vmatprep.subr.mxu0 0.0
    %5865 = vmatpush2.msra.mxu0 0.0
    %5866 = vmatprep.subr.mxu0 0.0
    %5867 = vmatpush2.msra.mxu0 0.0
    %5868 = vmatprep.subr.mxu0 0.0
    %5869 = vmatpush2.msra.mxu0 0.0
    %5870 = vmatprep.subr.mxu0 0.0
    %5871 = vmatpush2.msra.mxu0 0.0
    %5872 = vmatprep.subr.mxu0 0.0
    %5873 = vmatpush2.msra.mxu0 0.0
    %5874 = vmatprep.subr.mxu0 0.0
    %5875 = vmatpush2.msra.mxu0 0.0
    %5876 = vmatprep.subr.mxu0 0.0
    %5877 = vmatpush2.msra.mxu0 0.0
    %5878 = vmatprep.subr.mxu0 0.0
    %5879 = vmatpush2.msra.mxu0 0.0
    %5880 = vmatprep.subr.mxu0 0.0
    %5881 = vmatpush2.msra.mxu0 0.0
    %5882 = vmatprep.subr.mxu0 0.0
    %5883 = vmatpush2.msra.mxu0 0.0
    %5884 = vmatprep.mubr.f32.mxu0 0.0
    %v5885 = vand.u32 %v5408, 4294901760
    %v5886 = vsub.f32 %v5408, %v5885
    %v5887 = vand.u32 %v5886, 4294901760
    %5888 = vmatmul.mubr.f32.gmra.mxu0 %v5887
    %v5889 = vpop.f32.mrf.mxu0
    %v5890 = vadd.f32 %v5794, %v5889
    %v5891 = vpop.f32.mrf.mxu0
    %5892 = vmatprep.mubr.f32.mxu0 0.0
    %v5893 = vand.u32 %v5414, 4294901760
    %v5894 = vsub.f32 %v5414, %v5893
    %v5895 = vand.u32 %v5894, 4294901760
    %5896 = vmatmul.mubr.f32.gmra.mxu0 %v5895
    %v5897 = vpop.f32.mrf.mxu0
    %v5898 = vadd.f32 %v5801, %v5897
    %v5899 = vpop.f32.mrf.mxu0
    %5900 = vdwg.mxu0
    %5901 = vmatprep.subr.mxu0 0.0
    %v5902 = vand.u32 %v5434, 4294901760
    %v5903 = vsub.f32 %v5434, %v5902
    %v5904 = vand.u32 %v5903, 4294901760
    %5905 = vmatpush1.msra.mxu0 %v5904
    %5906 = vmatprep.subr.mxu0 0.0
    %v5907 = vand.u32 %v5433, 4294901760
    %v5908 = vsub.f32 %v5433, %v5907
    %v5909 = vand.u32 %v5908, 4294901760
    %5910 = vmatpush1.msra.mxu0 %v5909
    %5911 = vmatprep.subr.mxu0 0.0
    %v5912 = vand.u32 %v5432, 4294901760
    %v5913 = vsub.f32 %v5432, %v5912
    %v5914 = vand.u32 %v5913, 4294901760
    %5915 = vmatpush1.msra.mxu0 %v5914
    %5916 = vmatprep.subr.mxu0 0.0
    %v5917 = vand.u32 %v5431, 4294901760
    %v5918 = vsub.f32 %v5431, %v5917
    %v5919 = vand.u32 %v5918, 4294901760
    %5920 = vmatpush1.msra.mxu0 %v5919
    %5921 = vmatprep.subr.mxu0 0.0
    %v5922 = vand.u32 %v5430, 4294901760
    %v5923 = vsub.f32 %v5430, %v5922
    %v5924 = vand.u32 %v5923, 4294901760
    %5925 = vmatpush1.msra.mxu0 %v5924
    %5926 = vmatprep.subr.mxu0 0.0
    %v5927 = vand.u32 %v5429, 4294901760
    %v5928 = vsub.f32 %v5429, %v5927
    %v5929 = vand.u32 %v5928, 4294901760
    %5930 = vmatpush1.msra.mxu0 %v5929
    %5931 = vmatprep.subr.mxu0 0.0
    %v5932 = vand.u32 %v5428, 4294901760
    %v5933 = vsub.f32 %v5428, %v5932
    %v5934 = vand.u32 %v5933, 4294901760
    %5935 = vmatpush1.msra.mxu0 %v5934
    %5936 = vmatprep.subr.mxu0 0.0
    %v5937 = vand.u32 %v5427, 4294901760
    %v5938 = vsub.f32 %v5427, %v5937
    %v5939 = vand.u32 %v5938, 4294901760
    %5940 = vmatpush1.msra.mxu0 %v5939
    %5941 = vmatprep.subr.mxu0 0.0
    %v5942 = vand.u32 %v5426, 4294901760
    %v5943 = vsub.f32 %v5426, %v5942
    %v5944 = vand.u32 %v5943, 4294901760
    %5945 = vmatpush1.msra.mxu0 %v5944
    %5946 = vmatprep.subr.mxu0 0.0
    %v5947 = vand.u32 %v5425, 4294901760
    %v5948 = vsub.f32 %v5425, %v5947
    %v5949 = vand.u32 %v5948, 4294901760
    %5950 = vmatpush1.msra.mxu0 %v5949
    %5951 = vmatprep.subr.mxu0 0.0
    %v5952 = vand.u32 %v5424, 4294901760
    %v5953 = vsub.f32 %v5424, %v5952
    %v5954 = vand.u32 %v5953, 4294901760
    %5955 = vmatpush1.msra.mxu0 %v5954
    %5956 = vmatprep.subr.mxu0 0.0
    %v5957 = vand.u32 %v5423, 4294901760
    %v5958 = vsub.f32 %v5423, %v5957
    %v5959 = vand.u32 %v5958, 4294901760
    %5960 = vmatpush1.msra.mxu0 %v5959
    %5961 = vmatprep.subr.mxu0 0.0
    %v5962 = vand.u32 %v5422, 4294901760
    %v5963 = vsub.f32 %v5422, %v5962
    %v5964 = vand.u32 %v5963, 4294901760
    %5965 = vmatpush1.msra.mxu0 %v5964
    %5966 = vmatprep.subr.mxu0 0.0
    %v5967 = vand.u32 %v5421, 4294901760
    %v5968 = vsub.f32 %v5421, %v5967
    %v5969 = vand.u32 %v5968, 4294901760
    %5970 = vmatpush1.msra.mxu0 %v5969
    %5971 = vmatprep.subr.mxu0 0.0
    %v5972 = vand.u32 %v5420, 4294901760
    %v5973 = vsub.f32 %v5420, %v5972
    %v5974 = vand.u32 %v5973, 4294901760
    %5975 = vmatpush1.msra.mxu0 %v5974
    %5976 = vmatprep.subr.mxu0 0.0
    %v5977 = vand.u32 %v5419, 4294901760
    %v5978 = vsub.f32 %v5419, %v5977
    %v5979 = vand.u32 %v5978, 4294901760
    %5980 = vmatpush1.msra.mxu0 %v5979
    %5981 = vmatprep.subr.mxu0 0.0
    %5982 = vmatpush2.msra.mxu0 0.0
    %5983 = vmatprep.subr.mxu0 0.0
    %5984 = vmatpush2.msra.mxu0 0.0
    %5985 = vmatprep.subr.mxu0 0.0
    %5986 = vmatpush2.msra.mxu0 0.0
    %5987 = vmatprep.subr.mxu0 0.0
    %5988 = vmatpush2.msra.mxu0 0.0
    %5989 = vmatprep.subr.mxu0 0.0
    %5990 = vmatpush2.msra.mxu0 0.0
    %5991 = vmatprep.subr.mxu0 0.0
    %5992 = vmatpush2.msra.mxu0 0.0
    %5993 = vmatprep.subr.mxu0 0.0
    %5994 = vmatpush2.msra.mxu0 0.0
    %5995 = vmatprep.subr.mxu0 0.0
    %5996 = vmatpush2.msra.mxu0 0.0
    %5997 = vmatprep.subr.mxu0 0.0
    %5998 = vmatpush2.msra.mxu0 0.0
    %5999 = vmatprep.subr.mxu0 0.0
    %6000 = vmatpush2.msra.mxu0 0.0
    %6001 = vmatprep.subr.mxu0 0.0
    %6002 = vmatpush2.msra.mxu0 0.0
    %6003 = vmatprep.subr.mxu0 0.0
    %6004 = vmatpush2.msra.mxu0 0.0
    %6005 = vmatprep.subr.mxu0 0.0
    %6006 = vmatpush2.msra.mxu0 0.0
    %6007 = vmatprep.subr.mxu0 0.0
    %6008 = vmatpush2.msra.mxu0 0.0
    %6009 = vmatprep.subr.mxu0 0.0
    %6010 = vmatpush2.msra.mxu0 0.0
    %6011 = vmatprep.subr.mxu0 0.0
    %6012 = vmatpush2.msra.mxu0 0.0
    %6013 = vmatprep.mubr.f32.mxu0 0.0
    %v6014 = vand.u32 %v5408, 4294901760
    %6015 = vmatmul.mubr.f32.gmra.mxu0 %v6014
    %v6016 = vpop.f32.mrf.mxu0
    %v6017 = vadd.f32 %v5890, %v6016
    %v6018 = vpop.f32.mrf.mxu0
    %6019 = vmatprep.mubr.f32.mxu0 0.0
    %v6020 = vand.u32 %v5414, 4294901760
    %6021 = vmatmul.mubr.f32.gmra.mxu0 %v6020
    %v6022 = vpop.f32.mrf.mxu0
    %v6023 = vadd.f32 %v5898, %v6022
    %v6024 = vpop.f32.mrf.mxu0
    %6025 = vdwg.mxu0
    %6026 = vmatprep.subr.mxu0 0.0
    %v6027 = vand.u32 %v5434, 4294901760
    %6028 = vmatpush1.msra.mxu0 %v6027
    %6029 = vmatprep.subr.mxu0 0.0
    %v6030 = vand.u32 %v5433, 4294901760
    %6031 = vmatpush1.msra.mxu0 %v6030
    %6032 = vmatprep.subr.mxu0 0.0
    %v6033 = vand.u32 %v5432, 4294901760
    %6034 = vmatpush1.msra.mxu0 %v6033
    %6035 = vmatprep.subr.mxu0 0.0
    %v6036 = vand.u32 %v5431, 4294901760
    %6037 = vmatpush1.msra.mxu0 %v6036
    %6038 = vmatprep.subr.mxu0 0.0
    %v6039 = vand.u32 %v5430, 4294901760
    %6040 = vmatpush1.msra.mxu0 %v6039
    %6041 = vmatprep.subr.mxu0 0.0
    %v6042 = vand.u32 %v5429, 4294901760
    %6043 = vmatpush1.msra.mxu0 %v6042
    %6044 = vmatprep.subr.mxu0 0.0
    %v6045 = vand.u32 %v5428, 4294901760
    %6046 = vmatpush1.msra.mxu0 %v6045
    %6047 = vmatprep.subr.mxu0 0.0
    %v6048 = vand.u32 %v5427, 4294901760
    %6049 = vmatpush1.msra.mxu0 %v6048
    %6050 = vmatprep.subr.mxu0 0.0
    %v6051 = vand.u32 %v5426, 4294901760
    %6052 = vmatpush1.msra.mxu0 %v6051
    %6053 = vmatprep.subr.mxu0 0.0
    %v6054 = vand.u32 %v5425, 4294901760
    %6055 = vmatpush1.msra.mxu0 %v6054
    %6056 = vmatprep.subr.mxu0 0.0
    %v6057 = vand.u32 %v5424, 4294901760
    %6058 = vmatpush1.msra.mxu0 %v6057
    %6059 = vmatprep.subr.mxu0 0.0
    %v6060 = vand.u32 %v5423, 4294901760
    %6061 = vmatpush1.msra.mxu0 %v6060
    %6062 = vmatprep.subr.mxu0 0.0
    %v6063 = vand.u32 %v5422, 4294901760
    %6064 = vmatpush1.msra.mxu0 %v6063
    %6065 = vmatprep.subr.mxu0 0.0
    %v6066 = vand.u32 %v5421, 4294901760
    %6067 = vmatpush1.msra.mxu0 %v6066
    %6068 = vmatprep.subr.mxu0 0.0
    %v6069 = vand.u32 %v5420, 4294901760
    %6070 = vmatpush1.msra.mxu0 %v6069
    %6071 = vmatprep.subr.mxu0 0.0
    %v6072 = vand.u32 %v5419, 4294901760
    %6073 = vmatpush1.msra.mxu0 %v6072
    %6074 = vmatprep.subr.mxu0 0.0
    %6075 = vmatpush2.msra.mxu0 0.0
    %6076 = vmatprep.subr.mxu0 0.0
    %6077 = vmatpush2.msra.mxu0 0.0
    %6078 = vmatprep.subr.mxu0 0.0
    %6079 = vmatpush2.msra.mxu0 0.0
    %6080 = vmatprep.subr.mxu0 0.0
    %6081 = vmatpush2.msra.mxu0 0.0
    %6082 = vmatprep.subr.mxu0 0.0
    %6083 = vmatpush2.msra.mxu0 0.0
    %6084 = vmatprep.subr.mxu0 0.0
    %6085 = vmatpush2.msra.mxu0 0.0
    %6086 = vmatprep.subr.mxu0 0.0
    %6087 = vmatpush2.msra.mxu0 0.0
    %6088 = vmatprep.subr.mxu0 0.0
    %6089 = vmatpush2.msra.mxu0 0.0
    %6090 = vmatprep.subr.mxu0 0.0
    %6091 = vmatpush2.msra.mxu0 0.0
    %6092 = vmatprep.subr.mxu0 0.0
    %6093 = vmatpush2.msra.mxu0 0.0
    %6094 = vmatprep.subr.mxu0 0.0
    %6095 = vmatpush2.msra.mxu0 0.0
    %6096 = vmatprep.subr.mxu0 0.0
    %6097 = vmatpush2.msra.mxu0 0.0
    %6098 = vmatprep.subr.mxu0 0.0
    %6099 = vmatpush2.msra.mxu0 0.0
    %6100 = vmatprep.subr.mxu0 0.0
    %6101 = vmatpush2.msra.mxu0 0.0
    %6102 = vmatprep.subr.mxu0 0.0
    %6103 = vmatpush2.msra.mxu0 0.0
    %6104 = vmatprep.subr.mxu0 0.0
    %6105 = vmatpush2.msra.mxu0 0.0
    %6106 = vmatprep.mubr.f32.mxu0 0.0
    %v6107 = vand.u32 %v5408, 4294901760
    %6108 = vmatmul.mubr.f32.gmra.mxu0 %v6107
    %v6109 = vpop.f32.mrf.mxu0
    %v6110 = vadd.f32 %v6017, %v6109
    %v6111 = vpop.f32.mrf.mxu0
    %6112 = vmatprep.mubr.f32.mxu0 0.0
    %v6113 = vand.u32 %v5414, 4294901760
    %6114 = vmatmul.mubr.f32.gmra.mxu0 %v6113
    %v6115 = vpop.f32.mrf.mxu0
    %v6116 = vadd.f32 %v6023, %v6115
    %v6117 = vpop.f32.mrf.mxu0
    %6118 = vdwg.mxu0
    %v6119 = vadd.f32 %v5417, %v6110
    %v6120 = vadd.f32 %v5418, %v6116
    %6121 = vst [vmem:[#allocation6] sm:$0xff] %v6119
    %6122 = vst [vmem:[#allocation6 + $0x8] sm:$0xff] %v6120
    // Predicated region
    $region30: #{tpu_custom_call.1} parent=1 // pred_check
      %p6123 = pneg %p58
    $region31: #{tpu_custom_call.1} parent=1 // pred_check_branch
      %6125 = sbr.rel (%p6123) target = $region33
    $region32: #{tpu_custom_call.1} parent=1 // pred_region
      %v6126 = vld [vmem:[#allocation6] sm:$0xff]
      %v6127 = vld [vmem:[#allocation6 + $0x8] sm:$0xff]
      %v6128 = vmul.f32 %v6126, 0.104166664
      %v6129 = vmul.f32 %v6127, 0.104166664
      %6130 = vst [vmem:[#allocation6] sm:$0xff] %v6128
      %6131 = vst [vmem:[#allocation6 + $0x8] sm:$0xff] %v6129
    $region33: #{tpu_custom_call.1} parent=1 // pred_fallthru
      _
    // Predicated region
    $region34: #{tpu_custom_call.1} parent=1 // pred_check
      _
    $region35: #{tpu_custom_call.1} parent=1 // pred_check_branch
      %6133 = sbr.rel (0) target = $region37
    $region36: #{tpu_custom_call.1} parent=1 // pred_region
      %s6135 = ssub.s32 256, 256
      %6136 = vsyncadd [#allocation5], %s6135
      %s6137 = sshll.u32 [#allocation6], 4
      %s6138 = int_to_ptr.vmem [resolvable:$true] %s6137
      %6143 = dma.vmem_to_hbm [thread:$0]  %s6138, 256, %s5, [#allocation5], 128, 128, 8
    $region37: #{tpu_custom_call.1} parent=1 // pred_fallthru
      _
    // Predicated region
    $region38: #{tpu_custom_call.1} parent=1 // pred_check
      _
    $region39: #{tpu_custom_call.1} parent=1 // pred_check_branch
      %6145 = sbr.rel (0) target = $region41
    $region40: #{tpu_custom_call.1} parent=1 // pred_region
      %6146 = dma.done [#allocation5], 256
    $region41: #{tpu_custom_call.1} parent=1 // pred_fallthru
      _
    %6147 = vsyncpa [#allocation4], 1
    %6148 = vsyncpa [#allocation5], 1

</llo_original>
